<compile_context>
chip_gen: v7x
topology: tpu7x:2x2x1
jax: 0.10.0
libtpu: 0.0.40
codegen_flags: <defaults>
</compile_context>

<pallas_src>
import functools

import jax
import jax.numpy as jnp
from jax.experimental import pallas as pl
from jax.experimental.pallas import tpu as pltpu

_PADR = 16  # guard rows on each side of the flat h1 scratch (never zeroed)


# ------------------------------ fused kernel --------------------------------

def _bottleneck_kernel(x_ref, w1_ref, b1_ref, w2_ref, b2_ref, w3_ref, b3_ref,
                       o_ref, h1f_ref, acc_ref, *, H, W, TH):
    """Fused 1x1+BN1+ReLU -> 3x3+BN2+ReLU -> 1x1+BN3 + residual + ReLU.

    One grid step = one TH-row tile of one image, all activations flattened:
      x_ref : (1, H*W, Cin)  bf16       w*_ref: bf16 (BN folded), b*_ref: f32
      o_ref : (1, TH*W, Cout) bf16
      h1f_ref: VMEM ((TH+2)*W + 2*_PADR, P) bf16  flat stage-1 output (+halo)
      acc_ref: VMEM (TH*W, P) f32                 3x3 accumulator
    """
    M = TH * W                           # flattened output positions per tile
    r = pl.program_id(1)
    nrt = pl.num_programs(1)
    row0 = r * TH                        # first image row of this tile

    w1 = w1_ref[...]
    b1 = b1_ref[...]

    def stage1(row_start, nrows):        # 1x1 conv (+folded BN1) + ReLU, f32
        xs = x_ref[0, pl.ds(pl.multiple_of(row_start * W, W), nrows * W), :]
        h = jnp.dot(xs, w1, preferred_element_type=jnp.float32)
        return jnp.maximum(h + b1, 0.0)

    # ---- stage 1: interior rows of this tile ---------------------------------
    h1f_ref[pl.ds(_PADR + W, M), :] = stage1(row0, TH).astype(h1f_ref.dtype)

    # ---- stage 1: 1-row halos, recomputed per tile so tiles stay independent.
    # Zeroed (== the 3x3 conv's zero padding) at the image top/bottom boundary.
    top = stage1(jnp.maximum(row0 - 1, 0), 1) * jnp.where(r > 0, 1.0, 0.0)
    h1f_ref[pl.ds(_PADR, W), :] = top.astype(h1f_ref.dtype)
    bot = stage1(jnp.minimum(row0 + TH, H - 1), 1) * jnp.where(r < nrt - 1, 1.0, 0.0)
    h1f_ref[pl.ds(_PADR + W + M, W), :] = bot.astype(h1f_ref.dtype)

    # ---- stage 2: 3x3 conv (stride 1, pad 1, + folded BN2) + ReLU -------------
    # Tap (dy, dx) for output position m lives at flat index
    #   _PADR + dy*W + (dx-1) + m; left/right image edges are column-masked
    #   (jnp.where -> NaN-safe against the uninitialized guard rows).
    col = jax.lax.broadcasted_iota(jnp.int32, (M, 1), 0) % W
    not_left = col != 0                  # dx == 0 reads column w-1
    not_right = col != W - 1             # dx == 2 reads column w+1

    for dy in range(3):
        for dx in range(3):
            patch = h1f_ref[pl.ds(_PADR + dy * W + dx - 1, M), :]
            if dx == 0:
                patch = jnp.where(not_left, patch, 0)
            elif dx == 2:
                patch = jnp.where(not_right, patch, 0)
            t = jnp.dot(patch, w2_ref[dy, dx], preferred_element_type=jnp.float32)
            if dy == 0 and dx == 0:
                acc_ref[...] = t         # full overwrite: no cross-tile state
            else:
                acc_ref[...] += t
    h2 = jnp.maximum(acc_ref[...] + b2_ref[...], 0.0).astype(jnp.bfloat16)

    # ---- stage 3: 1x1 conv (+ folded BN3) + identity residual + ReLU ----------
    y = jnp.dot(h2, w3_ref[...], preferred_element_type=jnp.float32)
    resid = x_ref[0, pl.ds(pl.multiple_of(row0 * W, W), M), :].astype(jnp.float32)
    y = y + b3_ref[...] + resid
    o_ref[0, :, :] = jnp.maximum(y, 0.0).astype(o_ref.dtype)   # bf16 HBM write


# -------------------------------- wrapper ------------------------------------

def _pick_tile_rows(H, target):
    th = min(target, H)
    while H % th:
        th -= 1
    return th


def bottleneck_forward(x_nchw, params, *, tile_rows=8):
    """Pallas Bottleneck.forward (stride=1, identity residual).

    NCHW f32 in, NCHW f32 out.  The kernel's HBM output is bf16; the final f32
    cast is wrapper plumbing for the reference comparison (keep bf16 downstream
    in a real network).
    """
    x = jnp.transpose(x_nchw, (0, 2, 3, 1))                    # NCHW -> NHWC
    N, H, W, Cin = x.shape
    P = params["w1"].shape[1]
    Cout = params["w3"].shape[1]
    assert Cin == Cout, "identity residual requires inplanes == planes * expansion"

    TH = _pick_tile_rows(H, tile_rows)
    assert TH == H or (TH * W) % 8 == 0, "row tile must be sublane-divisible"

    # Fold BN scale into conv weights; bf16 MXU operands, f32 biases.
    w1 = (params["w1"] * params["s1"]).astype(jnp.bfloat16)
    w2 = (params["w2"] * params["s2"].reshape(1, 1, 1, P)).astype(jnp.bfloat16)
    w3 = (params["w3"] * params["s3"]).astype(jnp.bfloat16)
    b1, b2, b3 = params["b1"], params["b2"], params["b3"]

    # Flatten spatial dims OUTSIDE the kernel (free, contiguous) so the kernel
    # never reshapes activations (avoids bf16 (16,128) sublane relayout copies).
    xf = x.astype(jnp.bfloat16).reshape(N, H * W, Cin)

    kernel = functools.partial(_bottleneck_kernel, H=H, W=W, TH=TH)
    const2 = lambda n, r: (0, 0)

    out = pl.pallas_call(
        kernel,
        out_shape=jax.ShapeDtypeStruct((N, H * W, Cout), jnp.bfloat16),
        grid=(N, H // TH),
        in_specs=[
            pl.BlockSpec((1, H * W, Cin), lambda n, r: (n, 0, 0)),   # resident/img
            pl.BlockSpec((Cin, P), const2),
            pl.BlockSpec((1, P), const2),
            pl.BlockSpec((3, 3, P, P), lambda n, r: (0, 0, 0, 0)),
            pl.BlockSpec((1, P), const2),
            pl.BlockSpec((P, Cout), const2),
            pl.BlockSpec((1, Cout), const2),
        ],
        out_specs=pl.BlockSpec((1, TH * W, Cout), lambda n, r: (n, r, 0)),
        scratch_shapes=[
            pltpu.VMEM(((TH + 2) * W + 2 * _PADR, P), jnp.bfloat16),  # flat h1+halo
            pltpu.VMEM((TH * W, P), jnp.float32),                     # 3x3 acc
        ],
        compiler_params=pltpu.CompilerParams(
            # independent row tiles -> both axes parallel (megacore on v7x)
            dimension_semantics=("parallel", "parallel"),
            # TODO(synk): re-derive per generation (<=48 MiB on v7x's 64 MiB VMEM,
            #             raise toward 64-96 MiB on v5e/v6e for bigger tiles).
            vmem_limit_bytes=32 * 1024 * 1024,
        ),
    )(xf, w1, b1, w2, b2, w3, b3)
    # TODO(synk): single-buffer the constant weight blocks (pipeline_mode=
    #             pl.Buffered(1)) once verified on the target JAX version —
    #             saves ~9 MB at the deepest ResNet stage on v7x.
    # TODO(synk): for P >= 128, K-fold the 9 taps via an im2col scratch into one
    #             (M, 9P) x (9P, P) matmul (better v6e/v7x MXU fill); at P < 128
    #             the lane-concat relayout outweighs the gain.

    out = out.reshape(N, H, W, Cout).astype(jnp.float32)
    return jnp.transpose(out, (0, 3, 1, 2))                    # NHWC -> NCHW


# -------------------------- reference (pure JAX, f32) -------------------------

def bottleneck_reference(x_nchw, p):
    x = jnp.transpose(x_nchw, (0, 2, 3, 1)).astype(jnp.float32)
    dn = ("NHWC", "HWIO", "NHWC")
    h = jax.lax.conv_general_dilated(x, p["w1"][None, None], (1, 1), "VALID",
                                     dimension_numbers=dn)
    h = jnp.maximum(h * p["s1"] + p["b1"], 0.0)
    h = jax.lax.conv_general_dilated(h, p["w2"], (1, 1), "SAME",
                                     dimension_numbers=dn)
    h = jnp.maximum(h * p["s2"] + p["b2"], 0.0)
    h = jax.lax.conv_general_dilated(h, p["w3"][None, None], (1, 1), "VALID",
                                     dimension_numbers=dn)
    h = jnp.maximum(h * p["s3"] + p["b3"] + x, 0.0)
    return jnp.transpose(h, (0, 3, 1, 2))


# ------------------------- deterministic parameters --------------------------

def make_params(key, inplanes, planes):
    expansion = 4
    cout = planes * expansion
    ks = jax.random.split(key, 16)

    def fold_bn(kg, kb, km, kv, c):
        gamma = 1.0 + 0.1 * jax.random.normal(kg, (c,), jnp.float32)
        beta = 0.1 * jax.random.normal(kb, (c,), jnp.float32)
        mean = 0.1 * jax.random.normal(km, (c,), jnp.float32)
        var = 1.0 + 0.1 * jax.random.uniform(kv, (c,), jnp.float32)
        scale = gamma / jnp.sqrt(var + 1e-5)
        bias = beta - mean * scale
        return scale.reshape(1, c), bias.reshape(1, c)

    s1, b1 = fold_bn(ks[3], ks[4], ks[5], ks[6], planes)
    s2, b2 = fold_bn(ks[7], ks[8], ks[9], ks[10], planes)
    s3, b3 = fold_bn(ks[11], ks[12], ks[13], ks[14], cout)

    return {
        # conv weights channels-last: (Cin, Cout) for 1x1, HWIO for 3x3
        "w1": 0.2 * jax.random.normal(ks[0], (inplanes, planes), jnp.float32),
        "w2": 0.2 * jax.random.normal(ks[1], (3, 3, planes, planes), jnp.float32),
        "w3": 0.2 * jax.random.normal(ks[2], (planes, cout), jnp.float32),
        "s1": s1, "b1": b1, "s2": s2, "b2": b2, "s3": s3, "b3": b3,
    }


# ---------------------------------- main --------------------------------------

if __name__ == "__main__":
    key = jax.random.PRNGKey(0)
    k_x, k_p = jax.random.split(key)

    # inplanes == planes*4 -> identity residual (no downsample branch)
    N, inplanes, planes, H, W = 2, 16, 4, 16, 16
    x = jax.random.normal(k_x, (N, inplanes, H, W), jnp.float32)   # NCHW, PyTorch-like
    params = make_params(k_p, inplanes, planes)

    out = jax.jit(bottleneck_forward)(x, params)
    out = jax.block_until_ready(out)

    ref = bottleneck_reference(x, params)
    assert out.shape == (N, planes * 4, H, W)
    max_err = float(jnp.max(jnp.abs(out - ref)))
    # bf16 matmul operands + bf16 output (f32 accumulation) vs f32 reference.
    assert jnp.allclose(out, ref, rtol=5e-2, atol=1e-1), max_err

    print("KERNEL_OK")
</pallas_src>

<mosaic_0001>
module attributes {stable_mosaic.version = 11 : i64} {
  func.func @_bottleneck_kernel(%arg0: i32, %arg1: i32, %arg2: memref<1x256x16xbf16, #tpu.memory_space<vmem>>, %arg3: memref<16x4xbf16, #tpu.memory_space<vmem>>, %arg4: memref<1x4xf32, #tpu.memory_space<vmem>>, %arg5: memref<3x3x4x4xbf16, #tpu.memory_space<vmem>>, %arg6: memref<1x4xf32, #tpu.memory_space<vmem>>, %arg7: memref<4x16xbf16, #tpu.memory_space<vmem>>, %arg8: memref<1x16xf32, #tpu.memory_space<vmem>>, %arg9: memref<1x128x16xbf16, #tpu.memory_space<vmem>>, %arg10: memref<192x4xbf16, #tpu.memory_space<vmem>>, %arg11: memref<128x4xf32, #tpu.memory_space<vmem>>) attributes {dimension_semantics = [#tpu.dimension_semantics<parallel>, #tpu.dimension_semantics<parallel>], iteration_bounds = array<i64: 2, 2>, scalar_prefetch = 0 : i64, scratch_operands = 2 : i64, tpu.core_type = #tpu.core_type<tc>, window_params = [{transform_indices = @transform_0, window_bounds = array<i64: 1, 256, 16>}, {pipeline_mode = #tpu.pipeline_mode<synchronous>, transform_indices = @transform_1, window_bounds = array<i64: 16, 4>}, {pipeline_mode = #tpu.pipeline_mode<synchronous>, transform_indices = @transform_2, window_bounds = array<i64: 1, 4>}, {pipeline_mode = #tpu.pipeline_mode<synchronous>, transform_indices = @transform_3, window_bounds = array<i64: 3, 3, 4, 4>}, {pipeline_mode = #tpu.pipeline_mode<synchronous>, transform_indices = @transform_4, window_bounds = array<i64: 1, 4>}, {pipeline_mode = #tpu.pipeline_mode<synchronous>, transform_indices = @transform_5, window_bounds = array<i64: 4, 16>}, {pipeline_mode = #tpu.pipeline_mode<synchronous>, transform_indices = @transform_6, window_bounds = array<i64: 1, 16>}, {transform_indices = @transform_7, window_bounds = array<i64: 1, 128, 16>}]} {
    %c8_i32 = arith.constant 8 : i32
    %0 = arith.muli %arg1, %c8_i32 : i32
    %c0 = arith.constant 0 : index
    %c0_0 = arith.constant 0 : index
    %1 = vector.load %arg3[%c0, %c0_0] : memref<16x4xbf16, #tpu.memory_space<vmem>>, vector<16x4xbf16>
    %c0_1 = arith.constant 0 : index
    %c0_2 = arith.constant 0 : index
    %2 = vector.load %arg4[%c0_1, %c0_2] : memref<1x4xf32, #tpu.memory_space<vmem>>, vector<1x4xf32>
    %c16_i32 = arith.constant 16 : i32
    %3 = arith.muli %0, %c16_i32 : i32
    %4 = tpu.assume_multiple %3, 16 : i32
    %c0_3 = arith.constant 0 : index
    %5 = arith.index_cast %4 : i32 to index
    %c0_4 = arith.constant 0 : index
    %6 = vector.load %arg2[%c0_3, %5, %c0_4] : memref<1x256x16xbf16, #tpu.memory_space<vmem>>, vector<1x128x16xbf16>
    %7 = vector.shape_cast %6 : vector<1x128x16xbf16> to vector<128x16xbf16>
    %cst = arith.constant dense<0.000000e+00> : vector<128x4xf32>
    %8 = tpu.matmul %7, %1, %cst {dimension_numbers = #tpu.dot_dimension_numbers<[1], [0], [0], [1], [0, 0, 1, 1], [], []>} : vector<128x16xbf16>, vector<16x4xbf16>, vector<128x4xf32> -> vector<128x4xf32>
    %9 = vector.broadcast %2 : vector<1x4xf32> to vector<128x4xf32>
    %10 = arith.addf %8, %9 : vector<128x4xf32>
    %cst_5 = arith.constant 0.000000e+00 : f32
    %11 = vector.broadcast %cst_5 : f32 to vector<128x4xf32>
    %12 = arith.maximumf %10, %11 : vector<128x4xf32>
    %13 = arith.truncf %12 : vector<128x4xf32> to vector<128x4xbf16>
    %c32 = arith.constant 32 : index
    %c0_6 = arith.constant 0 : index
    %14 = vector.load %arg10[%c32, %c0_6] : memref<192x4xbf16, #tpu.memory_space<vmem>>, vector<128x4xbf16>
    tpu.vector_store %arg10[%c32, %c0_6], %13 {strides = array<i32>} : memref<192x4xbf16, #tpu.memory_space<vmem>>, vector<128x4xbf16>,
    %c1_i32 = arith.constant 1 : i32
    %15 = arith.subi %0, %c1_i32 : i32
    %c0_i32 = arith.constant 0 : i32
    %16 = arith.maxsi %15, %c0_i32 : i32
    %c16_i32_7 = arith.constant 16 : i32
    %17 = arith.muli %16, %c16_i32_7 : i32
    %18 = tpu.assume_multiple %17, 16 : i32
    %c0_8 = arith.constant 0 : index
    %19 = arith.index_cast %18 : i32 to index
    %c0_9 = arith.constant 0 : index
    %20 = vector.load %arg2[%c0_8, %19, %c0_9] : memref<1x256x16xbf16, #tpu.memory_space<vmem>>, vector<1x16x16xbf16>
    %21 = vector.shape_cast %20 : vector<1x16x16xbf16> to vector<16x16xbf16>
    %cst_10 = arith.constant dense<0.000000e+00> : vector<16x4xf32>
    %22 = tpu.matmul %21, %1, %cst_10 {dimension_numbers = #tpu.dot_dimension_numbers<[1], [0], [0], [1], [0, 0, 1, 1], [], []>} : vector<16x16xbf16>, vector<16x4xbf16>, vector<16x4xf32> -> vector<16x4xf32>
    %23 = vector.broadcast %2 : vector<1x4xf32> to vector<16x4xf32>
    %24 = arith.addf %22, %23 : vector<16x4xf32>
    %cst_11 = arith.constant 0.000000e+00 : f32
    %25 = vector.broadcast %cst_11 : f32 to vector<16x4xf32>
    %26 = arith.maximumf %24, %25 : vector<16x4xf32>
    %c0_i32_12 = arith.constant 0 : i32
    %27 = arith.cmpi sgt, %arg1, %c0_i32_12 : i32
    %cst_13 = arith.constant 1.000000e+00 : f32
    %cst_14 = arith.constant 0.000000e+00 : f32
    %28 = arith.select %27, %cst_13, %cst_14 : f32
    %29 = vector.broadcast %28 : f32 to vector<16x4xf32>
    %30 = arith.mulf %26, %29 : vector<16x4xf32>
    %31 = arith.truncf %30 : vector<16x4xf32> to vector<16x4xbf16>
    %c16 = arith.constant 16 : index
    %c0_15 = arith.constant 0 : index
    %32 = vector.load %arg10[%c16, %c0_15] : memref<192x4xbf16, #tpu.memory_space<vmem>>, vector<16x4xbf16>
    tpu.vector_store %arg10[%c16, %c0_15], %31 {strides = array<i32>} : memref<192x4xbf16, #tpu.memory_space<vmem>>, vector<16x4xbf16>,
    %c8_i32_16 = arith.constant 8 : i32
    %33 = arith.addi %0, %c8_i32_16 : i32
    %c15_i32 = arith.constant 15 : i32
    %34 = arith.minsi %33, %c15_i32 : i32
    %c16_i32_17 = arith.constant 16 : i32
    %35 = arith.muli %34, %c16_i32_17 : i32
    %36 = tpu.assume_multiple %35, 16 : i32
    %c0_18 = arith.constant 0 : index
    %37 = arith.index_cast %36 : i32 to index
    %c0_19 = arith.constant 0 : index
    %38 = vector.load %arg2[%c0_18, %37, %c0_19] : memref<1x256x16xbf16, #tpu.memory_space<vmem>>, vector<1x16x16xbf16>
    %39 = vector.shape_cast %38 : vector<1x16x16xbf16> to vector<16x16xbf16>
    %cst_20 = arith.constant dense<0.000000e+00> : vector<16x4xf32>
    %40 = tpu.matmul %39, %1, %cst_20 {dimension_numbers = #tpu.dot_dimension_numbers<[1], [0], [0], [1], [0, 0, 1, 1], [], []>} : vector<16x16xbf16>, vector<16x4xbf16>, vector<16x4xf32> -> vector<16x4xf32>
    %41 = vector.broadcast %2 : vector<1x4xf32> to vector<16x4xf32>
    %42 = arith.addf %40, %41 : vector<16x4xf32>
    %cst_21 = arith.constant 0.000000e+00 : f32
    %43 = vector.broadcast %cst_21 : f32 to vector<16x4xf32>
    %44 = arith.maximumf %42, %43 : vector<16x4xf32>
    %c1_i32_22 = arith.constant 1 : i32
    %45 = arith.cmpi slt, %arg1, %c1_i32_22 : i32
    %cst_23 = arith.constant 1.000000e+00 : f32
    %cst_24 = arith.constant 0.000000e+00 : f32
    %46 = arith.select %45, %cst_23, %cst_24 : f32
    %47 = vector.broadcast %46 : f32 to vector<16x4xf32>
    %48 = arith.mulf %44, %47 : vector<16x4xf32>
    %49 = arith.truncf %48 : vector<16x4xf32> to vector<16x4xbf16>
    %c160 = arith.constant 160 : index
    %c0_25 = arith.constant 0 : index
    %50 = vector.load %arg10[%c160, %c0_25] : memref<192x4xbf16, #tpu.memory_space<vmem>>, vector<16x4xbf16>
    tpu.vector_store %arg10[%c160, %c0_25], %49 {strides = array<i32>} : memref<192x4xbf16, #tpu.memory_space<vmem>>, vector<16x4xbf16>,
    %51 = tpu.iota {dimensions = array<i32: 0>} : vector<128x1xi32>
    %c16_i32_26 = arith.constant 16 : i32
    %c0_i32_27 = arith.constant 0 : i32
    %52 = arith.cmpi eq, %c16_i32_26, %c0_i32_27 : i32
    %c1_i32_28 = arith.constant 1 : i32
    %53 = arith.select %52, %c1_i32_28, %c16_i32_26 : i32
    %54 = vector.broadcast %53 : i32 to vector<128x1xi32>
    %55 = arith.remsi %51, %54 : vector<128x1xi32>
    %c0_i32_29 = arith.constant 0 : i32
    %56 = vector.broadcast %c0_i32_29 : i32 to vector<128x1xi32>
    %57 = arith.cmpi ne, %55, %56 : vector<128x1xi32>
    %c0_i32_30 = arith.constant 0 : i32
    %58 = vector.broadcast %c0_i32_30 : i32 to vector<128x1xi32>
    %59 = arith.cmpi slt, %55, %58 : vector<128x1xi32>
    %c0_i32_31 = arith.constant 0 : i32
    %60 = arith.cmpi slt, %53, %c0_i32_31 : i32
    %61 = vector.broadcast %60 : i1 to vector<128x1xi1>
    %62 = vector.broadcast %61 : vector<128x1xi1> to vector<128x1xi1>
    %63 = arith.xori %59, %62 : vector<128x1xi1>
    %64 = arith.andi %63, %57 : vector<128x1xi1>
    %65 = vector.broadcast %53 : i32 to vector<128x1xi32>
    %66 = arith.addi %55, %65 : vector<128x1xi32>
    %67 = arith.select %64, %66, %55 : vector<128x1xi1>, vector<128x1xi32>
    %c0_i32_32 = arith.constant 0 : i32
    %68 = vector.broadcast %c0_i32_32 : i32 to vector<128x1xi32>
    %69 = arith.cmpi ne, %67, %68 : vector<128x1xi32>
    %c15_i32_33 = arith.constant 15 : i32
    %70 = vector.broadcast %c15_i32_33 : i32 to vector<128x1xi32>
    %71 = arith.cmpi ne, %67, %70 : vector<128x1xi32>
    %c15 = arith.constant 15 : index
    %c0_34 = arith.constant 0 : index
    %72 = vector.load %arg10[%c15, %c0_34] : memref<192x4xbf16, #tpu.memory_space<vmem>>, vector<128x4xbf16>
    %c0_i32_35 = arith.constant 0 : i32
    %73 = arith.sitofp %c0_i32_35 : i32 to bf16
    %74 = vector.shape_cast %69 : vector<128x1xi1> to vector<128x1xi1>
    %75 = vector.broadcast %74 : vector<128x1xi1> to vector<128x4xi1>
    %76 = vector.broadcast %73 : bf16 to vector<128x4xbf16>
    %77 = arith.select %75, %72, %76 : vector<128x4xi1>, vector<128x4xbf16>
    %c0_36 = arith.constant 0 : index
    %c0_37 = arith.constant 0 : index
    %c0_38 = arith.constant 0 : index
    %c0_39 = arith.constant 0 : index
    %78 = vector.load %arg5[%c0_36, %c0_37, %c0_38, %c0_39] : memref<3x3x4x4xbf16, #tpu.memory_space<vmem>>, vector<1x1x4x4xbf16>
    %79 = vector.shape_cast %78 : vector<1x1x4x4xbf16> to vector<4x4xbf16>
    %cst_40 = arith.constant dense<0.000000e+00> : vector<128x4xf32>
    %80 = tpu.matmul %77, %79, %cst_40 {dimension_numbers = #tpu.dot_dimension_numbers<[1], [0], [0], [1], [0, 0, 1, 1], [], []>} : vector<128x4xbf16>, vector<4x4xbf16>, vector<128x4xf32> -> vector<128x4xf32>
    %c0_41 = arith.constant 0 : index
    %c0_42 = arith.constant 0 : index
    %81 = vector.load %arg11[%c0_41, %c0_42] : memref<128x4xf32, #tpu.memory_space<vmem>>, vector<128x4xf32>
    tpu.vector_store %arg11[%c0_41, %c0_42], %80 {strides = array<i32>} : memref<128x4xf32, #tpu.memory_space<vmem>>, vector<128x4xf32>,
    %c16_43 = arith.constant 16 : index
    %c0_44 = arith.constant 0 : index
    %82 = vector.load %arg10[%c16_43, %c0_44] : memref<192x4xbf16, #tpu.memory_space<vmem>>, vector<128x4xbf16>
    %c0_45 = arith.constant 0 : index
    %c1 = arith.constant 1 : index
    %c0_46 = arith.constant 0 : index
    %c0_47 = arith.constant 0 : index
    %83 = vector.load %arg5[%c0_45, %c1, %c0_46, %c0_47] : memref<3x3x4x4xbf16, #tpu.memory_space<vmem>>, vector<1x1x4x4xbf16>
    %84 = vector.shape_cast %83 : vector<1x1x4x4xbf16> to vector<4x4xbf16>
    %cst_48 = arith.constant dense<0.000000e+00> : vector<128x4xf32>
    %85 = tpu.matmul %82, %84, %cst_48 {dimension_numbers = #tpu.dot_dimension_numbers<[1], [0], [0], [1], [0, 0, 1, 1], [], []>} : vector<128x4xbf16>, vector<4x4xbf16>, vector<128x4xf32> -> vector<128x4xf32>
    %c0_49 = arith.constant 0 : index
    %c0_50 = arith.constant 0 : index
    %86 = vector.load %arg11[%c0_49, %c0_50] : memref<128x4xf32, #tpu.memory_space<vmem>>, vector<128x4xf32>
    %87 = arith.addf %86, %85 : vector<128x4xf32>
    %c0_51 = arith.constant 0 : index
    %c0_52 = arith.constant 0 : index
    %88 = vector.load %arg11[%c0_51, %c0_52] : memref<128x4xf32, #tpu.memory_space<vmem>>, vector<128x4xf32>
    tpu.vector_store %arg11[%c0_51, %c0_52], %87 {strides = array<i32>} : memref<128x4xf32, #tpu.memory_space<vmem>>, vector<128x4xf32>,
    %c17 = arith.constant 17 : index
    %c0_53 = arith.constant 0 : index
    %89 = vector.load %arg10[%c17, %c0_53] : memref<192x4xbf16, #tpu.memory_space<vmem>>, vector<128x4xbf16>
    %c0_i32_54 = arith.constant 0 : i32
    %90 = arith.sitofp %c0_i32_54 : i32 to bf16
    %91 = vector.shape_cast %71 : vector<128x1xi1> to vector<128x1xi1>
    %92 = vector.broadcast %91 : vector<128x1xi1> to vector<128x4xi1>
    %93 = vector.broadcast %90 : bf16 to vector<128x4xbf16>
    %94 = arith.select %92, %89, %93 : vector<128x4xi1>, vector<128x4xbf16>
    %c0_55 = arith.constant 0 : index
    %c2 = arith.constant 2 : index
    %c0_56 = arith.constant 0 : index
    %c0_57 = arith.constant 0 : index
    %95 = vector.load %arg5[%c0_55, %c2, %c0_56, %c0_57] : memref<3x3x4x4xbf16, #tpu.memory_space<vmem>>, vector<1x1x4x4xbf16>
    %96 = vector.shape_cast %95 : vector<1x1x4x4xbf16> to vector<4x4xbf16>
    %cst_58 = arith.constant dense<0.000000e+00> : vector<128x4xf32>
    %97 = tpu.matmul %94, %96, %cst_58 {dimension_numbers = #tpu.dot_dimension_numbers<[1], [0], [0], [1], [0, 0, 1, 1], [], []>} : vector<128x4xbf16>, vector<4x4xbf16>, vector<128x4xf32> -> vector<128x4xf32>
    %c0_59 = arith.constant 0 : index
    %c0_60 = arith.constant 0 : index
    %98 = vector.load %arg11[%c0_59, %c0_60] : memref<128x4xf32, #tpu.memory_space<vmem>>, vector<128x4xf32>
    %99 = arith.addf %98, %97 : vector<128x4xf32>
    %c0_61 = arith.constant 0 : index
    %c0_62 = arith.constant 0 : index
    %100 = vector.load %arg11[%c0_61, %c0_62] : memref<128x4xf32, #tpu.memory_space<vmem>>, vector<128x4xf32>
    tpu.vector_store %arg11[%c0_61, %c0_62], %99 {strides = array<i32>} : memref<128x4xf32, #tpu.memory_space<vmem>>, vector<128x4xf32>,
    %c31 = arith.constant 31 : index
    %c0_63 = arith.constant 0 : index
    %101 = vector.load %arg10[%c31, %c0_63] : memref<192x4xbf16, #tpu.memory_space<vmem>>, vector<128x4xbf16>
    %c0_i32_64 = arith.constant 0 : i32
    %102 = arith.sitofp %c0_i32_64 : i32 to bf16
    %103 = vector.shape_cast %69 : vector<128x1xi1> to vector<128x1xi1>
    %104 = vector.broadcast %103 : vector<128x1xi1> to vector<128x4xi1>
    %105 = vector.broadcast %102 : bf16 to vector<128x4xbf16>
    %106 = arith.select %104, %101, %105 : vector<128x4xi1>, vector<128x4xbf16>
    %c1_65 = arith.constant 1 : index
    %c0_66 = arith.constant 0 : index
    %c0_67 = arith.constant 0 : index
    %c0_68 = arith.constant 0 : index
    %107 = vector.load %arg5[%c1_65, %c0_66, %c0_67, %c0_68] : memref<3x3x4x4xbf16, #tpu.memory_space<vmem>>, vector<1x1x4x4xbf16>
    %108 = vector.shape_cast %107 : vector<1x1x4x4xbf16> to vector<4x4xbf16>
    %cst_69 = arith.constant dense<0.000000e+00> : vector<128x4xf32>
    %109 = tpu.matmul %106, %108, %cst_69 {dimension_numbers = #tpu.dot_dimension_numbers<[1], [0], [0], [1], [0, 0, 1, 1], [], []>} : vector<128x4xbf16>, vector<4x4xbf16>, vector<128x4xf32> -> vector<128x4xf32>
    %c0_70 = arith.constant 0 : index
    %c0_71 = arith.constant 0 : index
    %110 = vector.load %arg11[%c0_70, %c0_71] : memref<128x4xf32, #tpu.memory_space<vmem>>, vector<128x4xf32>
    %111 = arith.addf %110, %109 : vector<128x4xf32>
    %c0_72 = arith.constant 0 : index
    %c0_73 = arith.constant 0 : index
    %112 = vector.load %arg11[%c0_72, %c0_73] : memref<128x4xf32, #tpu.memory_space<vmem>>, vector<128x4xf32>
    tpu.vector_store %arg11[%c0_72, %c0_73], %111 {strides = array<i32>} : memref<128x4xf32, #tpu.memory_space<vmem>>, vector<128x4xf32>,
    %c32_74 = arith.constant 32 : index
    %c0_75 = arith.constant 0 : index
    %113 = vector.load %arg10[%c32_74, %c0_75] : memref<192x4xbf16, #tpu.memory_space<vmem>>, vector<128x4xbf16>
    %c1_76 = arith.constant 1 : index
    %c1_77 = arith.constant 1 : index
    %c0_78 = arith.constant 0 : index
    %c0_79 = arith.constant 0 : index
    %114 = vector.load %arg5[%c1_76, %c1_77, %c0_78, %c0_79] : memref<3x3x4x4xbf16, #tpu.memory_space<vmem>>, vector<1x1x4x4xbf16>
    %115 = vector.shape_cast %114 : vector<1x1x4x4xbf16> to vector<4x4xbf16>
    %cst_80 = arith.constant dense<0.000000e+00> : vector<128x4xf32>
    %116 = tpu.matmul %113, %115, %cst_80 {dimension_numbers = #tpu.dot_dimension_numbers<[1], [0], [0], [1], [0, 0, 1, 1], [], []>} : vector<128x4xbf16>, vector<4x4xbf16>, vector<128x4xf32> -> vector<128x4xf32>
    %c0_81 = arith.constant 0 : index
    %c0_82 = arith.constant 0 : index
    %117 = vector.load %arg11[%c0_81, %c0_82] : memref<128x4xf32, #tpu.memory_space<vmem>>, vector<128x4xf32>
    %118 = arith.addf %117, %116 : vector<128x4xf32>
    %c0_83 = arith.constant 0 : index
    %c0_84 = arith.constant 0 : index
    %119 = vector.load %arg11[%c0_83, %c0_84] : memref<128x4xf32, #tpu.memory_space<vmem>>, vector<128x4xf32>
    tpu.vector_store %arg11[%c0_83, %c0_84], %118 {strides = array<i32>} : memref<128x4xf32, #tpu.memory_space<vmem>>, vector<128x4xf32>,
    %c33 = arith.constant 33 : index
    %c0_85 = arith.constant 0 : index
    %120 = vector.load %arg10[%c33, %c0_85] : memref<192x4xbf16, #tpu.memory_space<vmem>>, vector<128x4xbf16>
    %c0_i32_86 = arith.constant 0 : i32
    %121 = arith.sitofp %c0_i32_86 : i32 to bf16
    %122 = vector.shape_cast %71 : vector<128x1xi1> to vector<128x1xi1>
    %123 = vector.broadcast %122 : vector<128x1xi1> to vector<128x4xi1>
    %124 = vector.broadcast %121 : bf16 to vector<128x4xbf16>
    %125 = arith.select %123, %120, %124 : vector<128x4xi1>, vector<128x4xbf16>
    %c1_87 = arith.constant 1 : index
    %c2_88 = arith.constant 2 : index
    %c0_89 = arith.constant 0 : index
    %c0_90 = arith.constant 0 : index
    %126 = vector.load %arg5[%c1_87, %c2_88, %c0_89, %c0_90] : memref<3x3x4x4xbf16, #tpu.memory_space<vmem>>, vector<1x1x4x4xbf16>
    %127 = vector.shape_cast %126 : vector<1x1x4x4xbf16> to vector<4x4xbf16>
    %cst_91 = arith.constant dense<0.000000e+00> : vector<128x4xf32>
    %128 = tpu.matmul %125, %127, %cst_91 {dimension_numbers = #tpu.dot_dimension_numbers<[1], [0], [0], [1], [0, 0, 1, 1], [], []>} : vector<128x4xbf16>, vector<4x4xbf16>, vector<128x4xf32> -> vector<128x4xf32>
    %c0_92 = arith.constant 0 : index
    %c0_93 = arith.constant 0 : index
    %129 = vector.load %arg11[%c0_92, %c0_93] : memref<128x4xf32, #tpu.memory_space<vmem>>, vector<128x4xf32>
    %130 = arith.addf %129, %128 : vector<128x4xf32>
    %c0_94 = arith.constant 0 : index
    %c0_95 = arith.constant 0 : index
    %131 = vector.load %arg11[%c0_94, %c0_95] : memref<128x4xf32, #tpu.memory_space<vmem>>, vector<128x4xf32>
    tpu.vector_store %arg11[%c0_94, %c0_95], %130 {strides = array<i32>} : memref<128x4xf32, #tpu.memory_space<vmem>>, vector<128x4xf32>,
    %c47 = arith.constant 47 : index
    %c0_96 = arith.constant 0 : index
    %132 = vector.load %arg10[%c47, %c0_96] : memref<192x4xbf16, #tpu.memory_space<vmem>>, vector<128x4xbf16>
    %c0_i32_97 = arith.constant 0 : i32
    %133 = arith.sitofp %c0_i32_97 : i32 to bf16
    %134 = vector.shape_cast %69 : vector<128x1xi1> to vector<128x1xi1>
    %135 = vector.broadcast %134 : vector<128x1xi1> to vector<128x4xi1>
    %136 = vector.broadcast %133 : bf16 to vector<128x4xbf16>
    %137 = arith.select %135, %132, %136 : vector<128x4xi1>, vector<128x4xbf16>
    %c2_98 = arith.constant 2 : index
    %c0_99 = arith.constant 0 : index
    %c0_100 = arith.constant 0 : index
    %c0_101 = arith.constant 0 : index
    %138 = vector.load %arg5[%c2_98, %c0_99, %c0_100, %c0_101] : memref<3x3x4x4xbf16, #tpu.memory_space<vmem>>, vector<1x1x4x4xbf16>
    %139 = vector.shape_cast %138 : vector<1x1x4x4xbf16> to vector<4x4xbf16>
    %cst_102 = arith.constant dense<0.000000e+00> : vector<128x4xf32>
    %140 = tpu.matmul %137, %139, %cst_102 {dimension_numbers = #tpu.dot_dimension_numbers<[1], [0], [0], [1], [0, 0, 1, 1], [], []>} : vector<128x4xbf16>, vector<4x4xbf16>, vector<128x4xf32> -> vector<128x4xf32>
    %c0_103 = arith.constant 0 : index
    %c0_104 = arith.constant 0 : index
    %141 = vector.load %arg11[%c0_103, %c0_104] : memref<128x4xf32, #tpu.memory_space<vmem>>, vector<128x4xf32>
    %142 = arith.addf %141, %140 : vector<128x4xf32>
    %c0_105 = arith.constant 0 : index
    %c0_106 = arith.constant 0 : index
    %143 = vector.load %arg11[%c0_105, %c0_106] : memref<128x4xf32, #tpu.memory_space<vmem>>, vector<128x4xf32>
    tpu.vector_store %arg11[%c0_105, %c0_106], %142 {strides = array<i32>} : memref<128x4xf32, #tpu.memory_space<vmem>>, vector<128x4xf32>,
    %c48 = arith.constant 48 : index
    %c0_107 = arith.constant 0 : index
    %144 = vector.load %arg10[%c48, %c0_107] : memref<192x4xbf16, #tpu.memory_space<vmem>>, vector<128x4xbf16>
    %c2_108 = arith.constant 2 : index
    %c1_109 = arith.constant 1 : index
    %c0_110 = arith.constant 0 : index
    %c0_111 = arith.constant 0 : index
    %145 = vector.load %arg5[%c2_108, %c1_109, %c0_110, %c0_111] : memref<3x3x4x4xbf16, #tpu.memory_space<vmem>>, vector<1x1x4x4xbf16>
    %146 = vector.shape_cast %145 : vector<1x1x4x4xbf16> to vector<4x4xbf16>
    %cst_112 = arith.constant dense<0.000000e+00> : vector<128x4xf32>
    %147 = tpu.matmul %144, %146, %cst_112 {dimension_numbers = #tpu.dot_dimension_numbers<[1], [0], [0], [1], [0, 0, 1, 1], [], []>} : vector<128x4xbf16>, vector<4x4xbf16>, vector<128x4xf32> -> vector<128x4xf32>
    %c0_113 = arith.constant 0 : index
    %c0_114 = arith.constant 0 : index
    %148 = vector.load %arg11[%c0_113, %c0_114] : memref<128x4xf32, #tpu.memory_space<vmem>>, vector<128x4xf32>
    %149 = arith.addf %148, %147 : vector<128x4xf32>
    %c0_115 = arith.constant 0 : index
    %c0_116 = arith.constant 0 : index
    %150 = vector.load %arg11[%c0_115, %c0_116] : memref<128x4xf32, #tpu.memory_space<vmem>>, vector<128x4xf32>
    tpu.vector_store %arg11[%c0_115, %c0_116], %149 {strides = array<i32>} : memref<128x4xf32, #tpu.memory_space<vmem>>, vector<128x4xf32>,
    %c49 = arith.constant 49 : index
    %c0_117 = arith.constant 0 : index
    %151 = vector.load %arg10[%c49, %c0_117] : memref<192x4xbf16, #tpu.memory_space<vmem>>, vector<128x4xbf16>
    %c0_i32_118 = arith.constant 0 : i32
    %152 = arith.sitofp %c0_i32_118 : i32 to bf16
    %153 = vector.shape_cast %71 : vector<128x1xi1> to vector<128x1xi1>
    %154 = vector.broadcast %153 : vector<128x1xi1> to vector<128x4xi1>
    %155 = vector.broadcast %152 : bf16 to vector<128x4xbf16>
    %156 = arith.select %154, %151, %155 : vector<128x4xi1>, vector<128x4xbf16>
    %c2_119 = arith.constant 2 : index
    %c2_120 = arith.constant 2 : index
    %c0_121 = arith.constant 0 : index
    %c0_122 = arith.constant 0 : index
    %157 = vector.load %arg5[%c2_119, %c2_120, %c0_121, %c0_122] : memref<3x3x4x4xbf16, #tpu.memory_space<vmem>>, vector<1x1x4x4xbf16>
    %158 = vector.shape_cast %157 : vector<1x1x4x4xbf16> to vector<4x4xbf16>
    %cst_123 = arith.constant dense<0.000000e+00> : vector<128x4xf32>
    %159 = tpu.matmul %156, %158, %cst_123 {dimension_numbers = #tpu.dot_dimension_numbers<[1], [0], [0], [1], [0, 0, 1, 1], [], []>} : vector<128x4xbf16>, vector<4x4xbf16>, vector<128x4xf32> -> vector<128x4xf32>
    %c0_124 = arith.constant 0 : index
    %c0_125 = arith.constant 0 : index
    %160 = vector.load %arg11[%c0_124, %c0_125] : memref<128x4xf32, #tpu.memory_space<vmem>>, vector<128x4xf32>
    %161 = arith.addf %160, %159 : vector<128x4xf32>
    %c0_126 = arith.constant 0 : index
    %c0_127 = arith.constant 0 : index
    %162 = vector.load %arg11[%c0_126, %c0_127] : memref<128x4xf32, #tpu.memory_space<vmem>>, vector<128x4xf32>
    tpu.vector_store %arg11[%c0_126, %c0_127], %161 {strides = array<i32>} : memref<128x4xf32, #tpu.memory_space<vmem>>, vector<128x4xf32>,
    %c0_128 = arith.constant 0 : index
    %c0_129 = arith.constant 0 : index
    %163 = vector.load %arg11[%c0_128, %c0_129] : memref<128x4xf32, #tpu.memory_space<vmem>>, vector<128x4xf32>
    %c0_130 = arith.constant 0 : index
    %c0_131 = arith.constant 0 : index
    %164 = vector.load %arg6[%c0_130, %c0_131] : memref<1x4xf32, #tpu.memory_space<vmem>>, vector<1x4xf32>
    %165 = vector.broadcast %164 : vector<1x4xf32> to vector<128x4xf32>
    %166 = arith.addf %163, %165 : vector<128x4xf32>
    %cst_132 = arith.constant 0.000000e+00 : f32
    %167 = vector.broadcast %cst_132 : f32 to vector<128x4xf32>
    %168 = arith.maximumf %166, %167 : vector<128x4xf32>
    %169 = arith.truncf %168 : vector<128x4xf32> to vector<128x4xbf16>
    %c0_133 = arith.constant 0 : index
    %c0_134 = arith.constant 0 : index
    %170 = vector.load %arg7[%c0_133, %c0_134] : memref<4x16xbf16, #tpu.memory_space<vmem>>, vector<4x16xbf16>
    %cst_135 = arith.constant dense<0.000000e+00> : vector<128x16xf32>
    %171 = tpu.matmul %169, %170, %cst_135 {dimension_numbers = #tpu.dot_dimension_numbers<[1], [0], [0], [1], [0, 0, 1, 1], [], []>} : vector<128x4xbf16>, vector<4x16xbf16>, vector<128x16xf32> -> vector<128x16xf32>
    %c16_i32_136 = arith.constant 16 : i32
    %172 = arith.muli %0, %c16_i32_136 : i32
    %173 = tpu.assume_multiple %172, 16 : i32
    %c0_137 = arith.constant 0 : index
    %174 = arith.index_cast %173 : i32 to index
    %c0_138 = arith.constant 0 : index
    %175 = vector.load %arg2[%c0_137, %174, %c0_138] : memref<1x256x16xbf16, #tpu.memory_space<vmem>>, vector<1x128x16xbf16>
    %176 = vector.shape_cast %175 : vector<1x128x16xbf16> to vector<128x16xbf16>
    %177 = arith.extf %176 : vector<128x16xbf16> to vector<128x16xf32>
    %c0_139 = arith.constant 0 : index
    %c0_140 = arith.constant 0 : index
    %178 = vector.load %arg8[%c0_139, %c0_140] : memref<1x16xf32, #tpu.memory_space<vmem>>, vector<1x16xf32>
    %179 = vector.broadcast %178 : vector<1x16xf32> to vector<128x16xf32>
    %180 = arith.addf %171, %179 : vector<128x16xf32>
    %181 = arith.addf %180, %177 : vector<128x16xf32>
    %cst_141 = arith.constant 0.000000e+00 : f32
    %182 = vector.broadcast %cst_141 : f32 to vector<128x16xf32>
    %183 = arith.maximumf %181, %182 : vector<128x16xf32>
    %184 = arith.truncf %183 : vector<128x16xf32> to vector<128x16xbf16>
    %c0_142 = arith.constant 0 : index
    %c0_143 = arith.constant 0 : index
    %c0_144 = arith.constant 0 : index
    %185 = vector.load %arg9[%c0_142, %c0_143, %c0_144] : memref<1x128x16xbf16, #tpu.memory_space<vmem>>, vector<1x128x16xbf16>
    %186 = vector.shape_cast %185 : vector<1x128x16xbf16> to vector<128x16xbf16>
    %187 = vector.shape_cast %184 : vector<128x16xbf16> to vector<1x128x16xbf16>
    tpu.vector_store %arg9[%c0_142, %c0_143, %c0_144], %187 {strides = array<i32>} : memref<1x128x16xbf16, #tpu.memory_space<vmem>>, vector<1x128x16xbf16>,
    return
  }
  func.func @transform_0(%arg0: i32, %arg1: i32) -> (i32, i32, i32) {
    %c0_i32 = arith.constant 0 : i32
    %c0_i32_0 = arith.constant 0 : i32
    %c0_i32_1 = arith.constant 0 : i32
    return %arg0, %c0_i32, %c0_i32_0 : i32, i32, i32
  }
  func.func @transform_1(%arg0: i32, %arg1: i32) -> (i32, i32) {
    %c0_i32 = arith.constant 0 : i32
    %c0_i32_0 = arith.constant 0 : i32
    %c0_i32_1 = arith.constant 0 : i32
    return %c0_i32, %c0_i32_0 : i32, i32
  }
  func.func @transform_2(%arg0: i32, %arg1: i32) -> (i32, i32) {
    %c0_i32 = arith.constant 0 : i32
    %c0_i32_0 = arith.constant 0 : i32
    %c0_i32_1 = arith.constant 0 : i32
    return %c0_i32, %c0_i32_0 : i32, i32
  }
  func.func @transform_3(%arg0: i32, %arg1: i32) -> (i32, i32, i32, i32) {
    %c0_i32 = arith.constant 0 : i32
    %c0_i32_0 = arith.constant 0 : i32
    %c0_i32_1 = arith.constant 0 : i32
    %c0_i32_2 = arith.constant 0 : i32
    %c0_i32_3 = arith.constant 0 : i32
    return %c0_i32, %c0_i32_0, %c0_i32_1, %c0_i32_2 : i32, i32, i32, i32
  }
  func.func @transform_4(%arg0: i32, %arg1: i32) -> (i32, i32) {
    %c0_i32 = arith.constant 0 : i32
    %c0_i32_0 = arith.constant 0 : i32
    %c0_i32_1 = arith.constant 0 : i32
    return %c0_i32, %c0_i32_0 : i32, i32
  }
  func.func @transform_5(%arg0: i32, %arg1: i32) -> (i32, i32) {
    %c0_i32 = arith.constant 0 : i32
    %c0_i32_0 = arith.constant 0 : i32
    %c0_i32_1 = arith.constant 0 : i32
    return %c0_i32, %c0_i32_0 : i32, i32
  }
  func.func @transform_6(%arg0: i32, %arg1: i32) -> (i32, i32) {
    %c0_i32 = arith.constant 0 : i32
    %c0_i32_0 = arith.constant 0 : i32
    %c0_i32_1 = arith.constant 0 : i32
    return %c0_i32, %c0_i32_0 : i32, i32
  }
  func.func @transform_7(%arg0: i32, %arg1: i32) -> (i32, i32, i32) {
    %c0_i32 = arith.constant 0 : i32
    %c0_i32_0 = arith.constant 0 : i32
    return %arg0, %arg1, %c0_i32 : i32, i32, i32
  }
}

</mosaic_0001>

<llo_original>
// kernel: bottleneck_forward.1
$region0: #{bottleneck_forward.1}
  #allocation0 [shape = 'u32[]', space=smem, size = 0x4, offset = 0x4, fixed_abs, tag = 'smem constant byte address 0x4 - core index']
  #allocation1 [shape = 'u32[144,128]{1,0:T(1,128)}', space=vmem, size = 0x12000, scoped, tag = 'internal scratch']
  #allocation2 [shape = 'bf16[192,4]{1,0:T(16,128)(2,1)}', space=vmem, size = 0xc000, scoped, tag = 'scratch operand']
  #allocation3 [shape = 'f32[128,4]{1,0:T(8,128)}', space=vmem, size = 0x10000, scoped, tag = 'scratch operand']
  %s0 = inlined_call_operand.vmem [shape: bf16[2,256,16], index: 0, kind: input, shape index: {}]
  %s1 = inlined_call_operand.vmem [shape: bf16[16,4], index: 1, kind: input, shape index: {}]
  %s2 = inlined_call_operand.vmem [shape: f32[1,4], index: 2, kind: input, shape index: {}]
  %s3 = inlined_call_operand.vmem [shape: bf16[3,3,4,4], index: 3, kind: input, shape index: {}]
  %s4 = inlined_call_operand.vmem [shape: f32[1,4], index: 4, kind: input, shape index: {}]
  %s5 = inlined_call_operand.vmem [shape: bf16[4,16], index: 5, kind: input, shape index: {}]
  %s6 = inlined_call_operand.vmem [shape: f32[1,16], index: 6, kind: input, shape index: {}]
  %s7 = inlined_call_operand.vmem [shape: bf16[2,256,16], index: 7, kind: output, shape index: {}]
  %s8 = sld [smem:[#allocation0]]
  $region61: #{bottleneck_forward.1} parent=0
    _
  %s10 = ssub.s32 1, %s8
  %s11 = scalar_select 0, %s10, %s8
  loop: start=0, step=1, limit=6
  $region2: #{bottleneck_forward.1} parent=0 // loop_pre_header
    _
  $region3: #{bottleneck_forward.1} parent=0 // loop_header
    %s13 = sphi 0, %s17
    %p14 = scmp.ge.s32.totalorder %s13, 6
    %s20 = sphi 0, %s32
    %s21 = sphi 0, %s28
    %s22 = sphi 0, %s20
    %s23 = sphi 0, %s21
    %s24 = sphi 0, %s22
    %s25 = sphi 0, %s23
    %s35 = sphi 0, %s37
    %s38 = sphi 0, %s35
    %s39 = sphi 0, %s38
    %s55 = sphi 0, %s39
    %s59 = sphi 0, %s59
    %s61 = sphi 0, %s59
    %s62 = sphi 0, %s61
    %s76 = sphi 0, %s62
    %s80 = sphi 0, %s80
    %s82 = sphi 0, %s80
    %s83 = sphi 0, %s82
    %s97 = sphi 0, %s83
    %s101 = sphi 0, %s101
    %s103 = sphi 0, %s101
    %s104 = sphi 0, %s103
    %s118 = sphi 0, %s104
    %s122 = sphi 0, %s122
    %s124 = sphi 0, %s122
    %s125 = sphi 0, %s124
    %s139 = sphi 0, %s125
    %s143 = sphi 0, %s143
    %s145 = sphi 0, %s143
    %s146 = sphi 0, %s145
    %s160 = sphi 0, %s146
    %s164 = sphi 0, %s164
    %s166 = sphi 0, %s164
    %s167 = sphi 0, %s166
    %s181 = sphi 0, %s167
    %s189 = sphi 0, %s191
    %s192 = sphi 0, %s189
    %s193 = sphi 0, %s192
    %s209 = sphi 0, %s193
  $region4: #{bottleneck_forward.1} parent=0 // loop_header_branch
    %16 = sbr.rel (%p14) target = $region8
  $region5: #{bottleneck_forward.1} parent=0 // loop_body
    %s18 = ssub.s32 %s13, 1
    %s19 = ssub.s32 %s13, 2
    %s26 = sadd.s32 1, %s21
    %p27 = scmp.ge.s32.totalorder %s26, 2
    %s28 = scalar_select %p27, 0, %s26
    %s29 = sadd.s32 1, %s20
    %s30 = scalar_select %p27, %s29, %s20
    %p31 = scmp.ge.s32.totalorder %s30, 2
    %s32 = scalar_select %p31, 0, %s30
    %s33 = ssub.s32 %s20, %s32
    %p34 = scmp.eq.s32.totalorder %s33, 0
    %s36 = sadd.s32 %s35, 1
    %s37 = scalar_select %p34, %s35, %s36
    %p40 = pneg %p34
    %p41 = scmp.eq.s32.totalorder %s13, 3
    %p42 = por %p40, %p41
    %p43 = scmp.ne.s32.totalorder %s35, %s38
    %p44 = scmp.eq.s32.totalorder %s13, 0
    %p45 = por %p43, %p44
    %p46 = scmp.ne.s32.totalorder %s35, %s38
    %p47 = scmp.eq.s32.totalorder %s18, 3
    %p48 = por %p46, %p47
    %p49 = scmp.ne.s32.totalorder %s38, %s39
    %p50 = scmp.eq.s32.totalorder %s18, 0
    %p51 = por %p49, %p50
    %p52 = scmp.ne.s32.totalorder %s38, %s39
    %p53 = scmp.eq.s32.totalorder %s19, 3
    %p54 = por %p52, %p53
    %p56 = scmp.ne.s32.totalorder %s39, %s55
    %p57 = scmp.eq.s32.totalorder %s19, 0
    %p58 = por %p56, %p57
    %s60 = sadd.s32 %s59, 1
    %p63 = scmp.eq.s32.totalorder %s13, 3
    %p64 = scmp.ne.s32.totalorder %s59, %s61
    %p65 = scmp.eq.s32.totalorder %s13, 0
    %p66 = por %p64, %p65
    %p67 = scmp.ne.s32.totalorder %s59, %s61
    %p68 = scmp.eq.s32.totalorder %s18, 3
    %p69 = por %p67, %p68
    %p70 = scmp.ne.s32.totalorder %s61, %s62
    %p71 = scmp.eq.s32.totalorder %s18, 0
    %p72 = por %p70, %p71
    %p73 = scmp.ne.s32.totalorder %s61, %s62
    %p74 = scmp.eq.s32.totalorder %s19, 3
    %p75 = por %p73, %p74
    %p77 = scmp.ne.s32.totalorder %s62, %s76
    %p78 = scmp.eq.s32.totalorder %s19, 0
    %p79 = por %p77, %p78
    %s81 = sadd.s32 %s80, 1
    %p84 = scmp.eq.s32.totalorder %s13, 3
    %p85 = scmp.ne.s32.totalorder %s80, %s82
    %p86 = scmp.eq.s32.totalorder %s13, 0
    %p87 = por %p85, %p86
    %p88 = scmp.ne.s32.totalorder %s80, %s82
    %p89 = scmp.eq.s32.totalorder %s18, 3
    %p90 = por %p88, %p89
    %p91 = scmp.ne.s32.totalorder %s82, %s83
    %p92 = scmp.eq.s32.totalorder %s18, 0
    %p93 = por %p91, %p92
    %p94 = scmp.ne.s32.totalorder %s82, %s83
    %p95 = scmp.eq.s32.totalorder %s19, 3
    %p96 = por %p94, %p95
    %p98 = scmp.ne.s32.totalorder %s83, %s97
    %p99 = scmp.eq.s32.totalorder %s19, 0
    %p100 = por %p98, %p99
    %s102 = sadd.s32 %s101, 1
    %p105 = scmp.eq.s32.totalorder %s13, 3
    %p106 = scmp.ne.s32.totalorder %s101, %s103
    %p107 = scmp.eq.s32.totalorder %s13, 0
    %p108 = por %p106, %p107
    %p109 = scmp.ne.s32.totalorder %s101, %s103
    %p110 = scmp.eq.s32.totalorder %s18, 3
    %p111 = por %p109, %p110
    %p112 = scmp.ne.s32.totalorder %s103, %s104
    %p113 = scmp.eq.s32.totalorder %s18, 0
    %p114 = por %p112, %p113
    %p115 = scmp.ne.s32.totalorder %s103, %s104
    %p116 = scmp.eq.s32.totalorder %s19, 3
    %p117 = por %p115, %p116
    %p119 = scmp.ne.s32.totalorder %s104, %s118
    %p120 = scmp.eq.s32.totalorder %s19, 0
    %p121 = por %p119, %p120
    %s123 = sadd.s32 %s122, 1
    %p126 = scmp.eq.s32.totalorder %s13, 3
    %p127 = scmp.ne.s32.totalorder %s122, %s124
    %p128 = scmp.eq.s32.totalorder %s13, 0
    %p129 = por %p127, %p128
    %p130 = scmp.ne.s32.totalorder %s122, %s124
    %p131 = scmp.eq.s32.totalorder %s18, 3
    %p132 = por %p130, %p131
    %p133 = scmp.ne.s32.totalorder %s124, %s125
    %p134 = scmp.eq.s32.totalorder %s18, 0
    %p135 = por %p133, %p134
    %p136 = scmp.ne.s32.totalorder %s124, %s125
    %p137 = scmp.eq.s32.totalorder %s19, 3
    %p138 = por %p136, %p137
    %p140 = scmp.ne.s32.totalorder %s125, %s139
    %p141 = scmp.eq.s32.totalorder %s19, 0
    %p142 = por %p140, %p141
    %s144 = sadd.s32 %s143, 1
    %p147 = scmp.eq.s32.totalorder %s13, 3
    %p148 = scmp.ne.s32.totalorder %s143, %s145
    %p149 = scmp.eq.s32.totalorder %s13, 0
    %p150 = por %p148, %p149
    %p151 = scmp.ne.s32.totalorder %s143, %s145
    %p152 = scmp.eq.s32.totalorder %s18, 3
    %p153 = por %p151, %p152
    %p154 = scmp.ne.s32.totalorder %s145, %s146
    %p155 = scmp.eq.s32.totalorder %s18, 0
    %p156 = por %p154, %p155
    %p157 = scmp.ne.s32.totalorder %s145, %s146
    %p158 = scmp.eq.s32.totalorder %s19, 3
    %p159 = por %p157, %p158
    %p161 = scmp.ne.s32.totalorder %s146, %s160
    %p162 = scmp.eq.s32.totalorder %s19, 0
    %p163 = por %p161, %p162
    %s165 = sadd.s32 %s164, 1
    %p168 = scmp.eq.s32.totalorder %s13, 3
    %p169 = scmp.ne.s32.totalorder %s164, %s166
    %p170 = scmp.eq.s32.totalorder %s13, 0
    %p171 = por %p169, %p170
    %p172 = scmp.ne.s32.totalorder %s164, %s166
    %p173 = scmp.eq.s32.totalorder %s18, 3
    %p174 = por %p172, %p173
    %p175 = scmp.ne.s32.totalorder %s166, %s167
    %p176 = scmp.eq.s32.totalorder %s18, 0
    %p177 = por %p175, %p176
    %p178 = scmp.ne.s32.totalorder %s166, %s167
    %p179 = scmp.eq.s32.totalorder %s19, 3
    %p180 = por %p178, %p179
    %p182 = scmp.ne.s32.totalorder %s167, %s181
    %p183 = scmp.eq.s32.totalorder %s19, 0
    %p184 = por %p182, %p183
    %s185 = ssub.s32 %s20, %s32
    %s186 = ssub.s32 %s21, %s28
    %s187 = sor.u32 %s185, %s186
    %p188 = scmp.eq.s32.totalorder %s187, 0
    %s190 = sadd.s32 %s189, 1
    %s191 = scalar_select %p188, %s189, %s190
    %p194 = pneg %p188
    %p195 = scmp.eq.s32.totalorder %s13, 3
    %p196 = por %p194, %p195
    %p197 = scmp.ne.s32.totalorder %s189, %s192
    %p198 = scmp.eq.s32.totalorder %s13, 0
    %p199 = por %p197, %p198
    %p200 = scmp.ne.s32.totalorder %s189, %s192
    %p201 = scmp.eq.s32.totalorder %s18, 3
    %p202 = por %p200, %p201
    %p203 = scmp.ne.s32.totalorder %s192, %s193
    %p204 = scmp.eq.s32.totalorder %s18, 0
    %p205 = por %p203, %p204
    %p206 = scmp.ne.s32.totalorder %s192, %s193
    %p207 = scmp.eq.s32.totalorder %s19, 3
    %p208 = por %p206, %p207
    %p210 = scmp.ne.s32.totalorder %s193, %s209
    %p211 = scmp.eq.s32.totalorder %s19, 0
    %p212 = por %p210, %p211
    %p213 = scmp.le.s32.totalorder 1, %s13
    %p214 = scmp.lt.s32.totalorder %s13, 5
    %p215 = pnand %p213, %p214
    %p216 = pneg %p215
    // Predicated region
    $region9: #{bottleneck_forward.1} parent=5 // pred_check
      _
    $region10: #{bottleneck_forward.1} parent=5 // pred_check_branch
      %218 = sbr.rel (%p215) target = $region12
    $region11: #{bottleneck_forward.1} parent=5 // pred_region
      %s219 = ssub.s32 %s13, 1
      // Predicated region
      $region13: #{bottleneck_forward.1} parent=11 // pred_check
        %p220 = pneg %p72
      $region14: #{bottleneck_forward.1} parent=11 // pred_check_branch
        %222 = sbr.rel (%p220) target = $region16
      $region15: #{bottleneck_forward.1} parent=11 // pred_region
        _
      $region16: #{bottleneck_forward.1} parent=11 // pred_fallthru
        _
      // Predicated region
      $region17: #{bottleneck_forward.1} parent=11 // pred_check
        %p223 = pneg %p93
      $region18: #{bottleneck_forward.1} parent=11 // pred_check_branch
        %225 = sbr.rel (%p223) target = $region20
      $region19: #{bottleneck_forward.1} parent=11 // pred_region
        _
      $region20: #{bottleneck_forward.1} parent=11 // pred_fallthru
        _
      // Predicated region
      $region21: #{bottleneck_forward.1} parent=11 // pred_check
        %p226 = pneg %p114
      $region22: #{bottleneck_forward.1} parent=11 // pred_check_branch
        %228 = sbr.rel (%p226) target = $region24
      $region23: #{bottleneck_forward.1} parent=11 // pred_region
        _
      $region24: #{bottleneck_forward.1} parent=11 // pred_fallthru
        _
      // Predicated region
      $region25: #{bottleneck_forward.1} parent=11 // pred_check
        %p229 = pneg %p135
      $region26: #{bottleneck_forward.1} parent=11 // pred_check_branch
        %231 = sbr.rel (%p229) target = $region28
      $region27: #{bottleneck_forward.1} parent=11 // pred_region
        _
      $region28: #{bottleneck_forward.1} parent=11 // pred_fallthru
        _
      // Predicated region
      $region29: #{bottleneck_forward.1} parent=11 // pred_check
        %p232 = pneg %p156
      $region30: #{bottleneck_forward.1} parent=11 // pred_check_branch
        %234 = sbr.rel (%p232) target = $region32
      $region31: #{bottleneck_forward.1} parent=11 // pred_region
        _
      $region32: #{bottleneck_forward.1} parent=11 // pred_fallthru
        _
      // Predicated region
      $region33: #{bottleneck_forward.1} parent=11 // pred_check
        %p235 = pneg %p177
      $region34: #{bottleneck_forward.1} parent=11 // pred_check_branch
        %237 = sbr.rel (%p235) target = $region36
      $region35: #{bottleneck_forward.1} parent=11 // pred_region
        _
      $region36: #{bottleneck_forward.1} parent=11 // pred_fallthru
        _
    $region12: #{bottleneck_forward.1} parent=5 // pred_fallthru
      _
    %p238 = scmp.lt.s32.totalorder %s13, 4
    // Predicated region
    $region37: #{bottleneck_forward.1} parent=5 // pred_check
      %p239 = pneg %p238
    $region38: #{bottleneck_forward.1} parent=5 // pred_check_branch
      %241 = sbr.rel (%p239) target = $region40
    $region39: #{bottleneck_forward.1} parent=5 // pred_region
      // Predicated region
      $region41: #{bottleneck_forward.1} parent=39 // pred_check
        %p242 = pneg %p45
      $region42: #{bottleneck_forward.1} parent=39 // pred_check_branch
        %244 = sbr.rel (%p242) target = $region44
      $region43: #{bottleneck_forward.1} parent=39 // pred_region
        %p245 = scmp.lt.s32.totalorder %s20, 1
        %s246 = scalar_select %p245, %s20, 1
        %s247 = smul.addr %s246, 32
        %s248 = smul.addr %s247, 4
        %s249 = scalar_lea.vmem %s0, %s248
      $region44: #{bottleneck_forward.1} parent=39 // pred_fallthru
        _
    $region40: #{bottleneck_forward.1} parent=5 // pred_fallthru
      _
    %p250 = scmp.le.s32.totalorder 1, %s13
    %p251 = scmp.lt.s32.totalorder %s13, 5
    %p252 = pnand %p250, %p251
    %p253 = pneg %p252
    // Predicated region
    $region45: #{bottleneck_forward.1} parent=5 // pred_check
      _
    $region46: #{bottleneck_forward.1} parent=5 // pred_check_branch
      %255 = sbr.rel (%p252) target = $region48
    $region47: #{bottleneck_forward.1} parent=5 // pred_region
      %s256 = ssub.s32 %s13, 1
      %p257 = scmp.lt.s32.totalorder %s22, 1
      %s258 = scalar_select %p257, %s22, 1
      %s259 = smul.addr %s258, 32
      %s260 = smul.addr %s259, 4
      %s261 = scalar_lea.vmem %s0, %s260
      %p262 = pneg %p51
      %p263 = pneg %p48
      %p264 = pneg %p72
      %p265 = pneg %p69
      %p266 = pneg %p93
      %p267 = pneg %p90
      %p268 = pneg %p114
      %p269 = pneg %p111
      %p270 = pneg %p135
      %p271 = pneg %p132
      %p272 = pneg %p156
      %p273 = pneg %p153
      %p274 = pneg %p177
      %p275 = pneg %p174
      %p276 = pneg %p205
      %p277 = pneg %p202
      %s278 = smul.u32 16, %s23
      %p279 = scmp.lt.s32.totalorder %s22, 1
      %s280 = scalar_select %p279, %s22, 1
      %p281 = scmp.lt.s32.totalorder %s278, 31
      %s282 = scalar_select %p281, %s278, 31
      %s283 = smul.addr %s280, 32
      %s284 = sadd.s32 %s282, %s283
      %s285 = smul.addr %s284, 4
      %s286 = scalar_lea.vmem %s7, %s285
      %p287 = scmp.lt.s32.totalorder %s22, 1
      %s288 = scalar_select %p287, %s22, 1
      %s289 = smul.addr %s288, 32
      %s290 = smul.addr %s289, 4
      %s291 = scalar_lea.vmem %s0, %s290
      %s292 = smul.u32 16, %s23
      %p293 = scmp.lt.s32.totalorder %s22, 1
      %s294 = scalar_select %p293, %s22, 1
      %p295 = scmp.lt.s32.totalorder %s292, 31
      %s296 = scalar_select %p295, %s292, 31
      %s297 = smul.addr %s294, 32
      %s298 = sadd.s32 %s296, %s297
      %s299 = smul.addr %s298, 4
      %s300 = scalar_lea.vmem %s7, %s299
      %s301 = smul.u32 16, %s23
      %s305 = smul.u32 %s23, 8
      %v306 = vld [vmem:[%s1] sm:$0xf]
      %v307 = vld [vmem:[%s1 + $0x4] sm:$0xf]
      %v308 = vld [vmem:[%s2] sm:$0x1]
      %s309 = smul.u32 %s23, 128
      %s310 = sshra.s32 %s309, 3
      %s311 = sand.u32 %s309, 7
      %s312 = smul.addr %s310, 4
      %s313 = scalar_lea.vmem %s291, %s312
      %v314 = vld [vmem:[%s313] sm:$0xf]
      %v315 = vld [vmem:[%s313 + $0x4] sm:$0xf]
      %v316 = vld [vmem:[%s313 + $0x8] sm:$0xf]
      %v317 = vld [vmem:[%s313 + $0xc] sm:$0xf]
      %v318 = vld [vmem:[%s313 + $0x10] sm:$0xf]
      %v319 = vld [vmem:[%s313 + $0x14] sm:$0xf]
      %v320 = vld [vmem:[%s313 + $0x18] sm:$0xf]
      %v321 = vld [vmem:[%s313 + $0x1c] sm:$0xf]
      %v322 = vld [vmem:[%s313 + $0x20] sm:$0xf]
      %v323 = vld [vmem:[%s313 + $0x24] sm:$0xf]
      %v324 = vld [vmem:[%s313 + $0x28] sm:$0xf]
      %v325 = vld [vmem:[%s313 + $0x2c] sm:$0xf]
      %v326 = vld [vmem:[%s313 + $0x30] sm:$0xf]
      %v327 = vld [vmem:[%s313 + $0x34] sm:$0xf]
      %v328 = vld [vmem:[%s313 + $0x38] sm:$0xf]
      %v329 = vld [vmem:[%s313 + $0x3c] sm:$0xf]
      %v331 = vlaneseq
      %v332 = vshrl.u32 %v331, 7
      %v333 = vsub.s32 0, %v332
      %v334 = vrot.slane %v308, %v333
      %v352 = vunpack.c.l.b16 %v314
      %v353 = vunpack.c.l.b16 %v315
      %v354 = vunpack.c.l.b16 %v316
      %v355 = vunpack.c.l.b16 %v317
      %v356 = vunpack.c.l.b16 %v318
      %v357 = vunpack.c.l.b16 %v319
      %v358 = vunpack.c.l.b16 %v320
      %v359 = vunpack.c.l.b16 %v321
      %v360 = vunpack.c.l.b16 %v322
      %v361 = vunpack.c.l.b16 %v323
      %v362 = vunpack.c.l.b16 %v324
      %v363 = vunpack.c.l.b16 %v325
      %v364 = vunpack.c.l.b16 %v326
      %v365 = vunpack.c.l.b16 %v327
      %v366 = vunpack.c.l.b16 %v328
      %v367 = vunpack.c.l.b16 %v329
      %v368 = vpack.c.b16 %v353, %v352
      %v369 = vpack.c.b16 %v355, %v354
      %v370 = vpack.c.b16 %v357, %v356
      %v371 = vpack.c.b16 %v359, %v358
      %v372 = vpack.c.b16 %v361, %v360
      %v373 = vpack.c.b16 %v363, %v362
      %v374 = vpack.c.b16 %v365, %v364
      %v375 = vpack.c.b16 %v367, %v366
      %v378 = vunpack.c.l.b16 %v306
      %v379 = vunpack.c.l.b16 %v307
      %v380 = vpack.c.b16 %v379, %v378
      %vm382 = vcmask 130048
      %v384 = vsel %vm382, %v368, 0
      %v387 = vsel %vm382, %v369, 0
      %v390 = vsel %vm382, %v370, 0
      %v393 = vsel %vm382, %v371, 0
      %v396 = vsel %vm382, %v372, 0
      %v399 = vsel %vm382, %v373, 0
      %v402 = vsel %vm382, %v374, 0
      %v405 = vsel %vm382, %v375, 0
      %407 = vmatprep.subr.bf16.mxu0 0
      %408 = vmatpush1.bf16.msra.mxu0 %v380
      %409 = vmatprep.subr.bf16.mxu0 0
      %410 = vmatpush1.bf16.msra.mxu0 0
      %411 = vmatprep.subr.bf16.mxu0 0
      %412 = vmatpush1.bf16.msra.mxu0 0
      %413 = vmatprep.subr.bf16.mxu0 0
      %414 = vmatpush1.bf16.msra.mxu0 0
      %415 = vmatprep.subr.bf16.mxu0 0
      %416 = vmatpush1.bf16.msra.mxu0 0
      %417 = vmatprep.subr.bf16.mxu0 0
      %418 = vmatpush1.bf16.msra.mxu0 0
      %419 = vmatprep.subr.bf16.mxu0 0
      %420 = vmatpush1.bf16.msra.mxu0 0
      %421 = vmatprep.subr.bf16.mxu0 0
      %422 = vmatpush1.bf16.msra.mxu0 0
      %423 = vmatprep.subr.bf16.mxu0 0
      %424 = vmatpush1.bf16.msra.mxu0 0
      %425 = vmatprep.subr.bf16.mxu0 0
      %426 = vmatpush1.bf16.msra.mxu0 0
      %427 = vmatprep.subr.bf16.mxu0 0
      %428 = vmatpush1.bf16.msra.mxu0 0
      %429 = vmatprep.subr.bf16.mxu0 0
      %430 = vmatpush1.bf16.msra.mxu0 0
      %431 = vmatprep.subr.bf16.mxu0 0
      %432 = vmatpush1.bf16.msra.mxu0 0
      %433 = vmatprep.subr.bf16.mxu0 0
      %434 = vmatpush1.bf16.msra.mxu0 0
      %435 = vmatprep.subr.bf16.mxu0 0
      %436 = vmatpush1.bf16.msra.mxu0 0
      %437 = vmatprep.subr.bf16.mxu0 0
      %438 = vmatpush1.bf16.msra.mxu0 0
      %439 = vmatprep.mubr.bf16.mxu0 0
      %440 = vmatmul.mubr.bf16.gmra.mrb[0].mxu0 %v384
      %v441 = vpop.f32.mrb[0].mxu0
      %v442 = vadd.f32 %v334, %v441
      %v443 = vpop.f32.mrb[0].mxu0
      %v444 = vpop.f32.mrb[0].mxu0
      %v445 = vadd.f32 %v334, %v444
      %v446 = vpop.f32.mrb[0].mxu0
      %447 = vmatprep.mubr.bf16.mxu0 0
      %448 = vmatmul.mubr.bf16.gmra.mrb[0].mxu0 %v387
      %v449 = vpop.f32.mrb[0].mxu0
      %v450 = vadd.f32 %v334, %v449
      %v451 = vpop.f32.mrb[0].mxu0
      %v452 = vpop.f32.mrb[0].mxu0
      %v453 = vadd.f32 %v334, %v452
      %v454 = vpop.f32.mrb[0].mxu0
      %455 = vmatprep.mubr.bf16.mxu0 0
      %456 = vmatmul.mubr.bf16.gmra.mrb[0].mxu0 %v390
      %v457 = vpop.f32.mrb[0].mxu0
      %v458 = vadd.f32 %v334, %v457
      %v459 = vpop.f32.mrb[0].mxu0
      %v460 = vpop.f32.mrb[0].mxu0
      %v461 = vadd.f32 %v334, %v460
      %v462 = vpop.f32.mrb[0].mxu0
      %463 = vmatprep.mubr.bf16.mxu0 0
      %464 = vmatmul.mubr.bf16.gmra.mrb[0].mxu0 %v393
      %v465 = vpop.f32.mrb[0].mxu0
      %v466 = vadd.f32 %v334, %v465
      %v467 = vpop.f32.mrb[0].mxu0
      %v468 = vpop.f32.mrb[0].mxu0
      %v469 = vadd.f32 %v334, %v468
      %v470 = vpop.f32.mrb[0].mxu0
      %471 = vmatprep.mubr.bf16.mxu0 0
      %472 = vmatmul.mubr.bf16.gmra.mrb[0].mxu0 %v396
      %v473 = vpop.f32.mrb[0].mxu0
      %v474 = vadd.f32 %v334, %v473
      %v475 = vpop.f32.mrb[0].mxu0
      %v476 = vpop.f32.mrb[0].mxu0
      %v477 = vadd.f32 %v334, %v476
      %v478 = vpop.f32.mrb[0].mxu0
      %479 = vmatprep.mubr.bf16.mxu0 0
      %480 = vmatmul.mubr.bf16.gmra.mrb[0].mxu0 %v399
      %v481 = vpop.f32.mrb[0].mxu0
      %v482 = vadd.f32 %v334, %v481
      %v483 = vpop.f32.mrb[0].mxu0
      %v484 = vpop.f32.mrb[0].mxu0
      %v485 = vadd.f32 %v334, %v484
      %v486 = vpop.f32.mrb[0].mxu0
      %487 = vmatprep.mubr.bf16.mxu0 0
      %488 = vmatmul.mubr.bf16.gmra.mrb[0].mxu0 %v402
      %v489 = vpop.f32.mrb[0].mxu0
      %v490 = vadd.f32 %v334, %v489
      %v491 = vpop.f32.mrb[0].mxu0
      %v492 = vpop.f32.mrb[0].mxu0
      %v493 = vadd.f32 %v334, %v492
      %v494 = vpop.f32.mrb[0].mxu0
      %495 = vmatprep.mubr.bf16.mxu0 0
      %496 = vmatmul.mubr.bf16.gmra.mrb[0].mxu0 %v405
      %v497 = vpop.f32.mrb[0].mxu0
      %v498 = vadd.f32 %v334, %v497
      %v499 = vpop.f32.mrb[0].mxu0
      %v500 = vpop.f32.mrb[0].mxu0
      %v501 = vadd.f32 %v334, %v500
      %v502 = vpop.f32.mrb[0].mxu0
      %503 = vdwg.mxu0
      %v504 = vmax.f32 %v442, 0.0
      %v505 = vmax.f32 %v445, 0.0
      %v506 = vmax.f32 %v450, 0.0
      %v507 = vmax.f32 %v453, 0.0
      %v508 = vmax.f32 %v458, 0.0
      %v509 = vmax.f32 %v461, 0.0
      %v510 = vmax.f32 %v466, 0.0
      %v511 = vmax.f32 %v469, 0.0
      %v512 = vmax.f32 %v474, 0.0
      %v513 = vmax.f32 %v477, 0.0
      %v514 = vmax.f32 %v482, 0.0
      %v515 = vmax.f32 %v485, 0.0
      %v516 = vmax.f32 %v490, 0.0
      %v517 = vmax.f32 %v493, 0.0
      %v518 = vmax.f32 %v498, 0.0
      %v519 = vmax.f32 %v501, 0.0
      %v520 = vpack.c.bf16 %v505, %v504
      %v521 = vpack.c.bf16 %v507, %v506
      %v522 = vpack.c.bf16 %v509, %v508
      %v523 = vpack.c.bf16 %v511, %v510
      %v524 = vpack.c.bf16 %v513, %v512
      %v525 = vpack.c.bf16 %v515, %v514
      %v526 = vpack.c.bf16 %v517, %v516
      %v527 = vpack.c.bf16 %v519, %v518
      %vm528 = vcmask 31744
      %529 = vst.msk [vmem:[#allocation2 + $0x10] sm:$0xff] %vm528, %v520
      %530 = vst.msk [vmem:[#allocation2 + $0x18] sm:$0xff] %vm528, %v521
      %531 = vst.msk [vmem:[#allocation2 + $0x20] sm:$0xff] %vm528, %v522
      %532 = vst.msk [vmem:[#allocation2 + $0x28] sm:$0xff] %vm528, %v523
      %533 = vst.msk [vmem:[#allocation2 + $0x30] sm:$0xff] %vm528, %v524
      %534 = vst.msk [vmem:[#allocation2 + $0x38] sm:$0xff] %vm528, %v525
      %535 = vst.msk [vmem:[#allocation2 + $0x40] sm:$0xff] %vm528, %v526
      %536 = vst.msk [vmem:[#allocation2 + $0x48] sm:$0xff] %vm528, %v527
      %s537 = ssub.s32 %s305, 1
      %p538 = scmp.gt.s32.totalorder %s537, 0
      %s539 = scalar_select %p538, %s537, 0
      %s540 = smul.u32 %s539, 16
      %s541 = sshra.s32 %s540, 3
      %s542 = sand.u32 %s540, 7
      %s543 = smul.addr %s541, 4
      %s544 = scalar_lea.vmem %s291, %s543
      %v545 = vld [vmem:[%s544] sm:$0xf]
      %v546 = vld [vmem:[%s544 + $0x4] sm:$0xf]
      %v549 = vunpack.c.l.b16 %v545
      %v550 = vunpack.c.l.b16 %v546
      %v551 = vpack.c.b16 %v550, %v549
      %v553 = vsel %vm382, %v551, 0
      %555 = vmatprep.subr.bf16.mxu0 0
      %556 = vmatpush1.bf16.msra.mxu0 %v380
      %557 = vmatprep.subr.bf16.mxu0 0
      %558 = vmatpush1.bf16.msra.mxu0 0
      %559 = vmatprep.subr.bf16.mxu0 0
      %560 = vmatpush1.bf16.msra.mxu0 0
      %561 = vmatprep.subr.bf16.mxu0 0
      %562 = vmatpush1.bf16.msra.mxu0 0
      %563 = vmatprep.subr.bf16.mxu0 0
      %564 = vmatpush1.bf16.msra.mxu0 0
      %565 = vmatprep.subr.bf16.mxu0 0
      %566 = vmatpush1.bf16.msra.mxu0 0
      %567 = vmatprep.subr.bf16.mxu0 0
      %568 = vmatpush1.bf16.msra.mxu0 0
      %569 = vmatprep.subr.bf16.mxu0 0
      %570 = vmatpush1.bf16.msra.mxu0 0
      %571 = vmatprep.subr.bf16.mxu0 0
      %572 = vmatpush1.bf16.msra.mxu0 0
      %573 = vmatprep.subr.bf16.mxu0 0
      %574 = vmatpush1.bf16.msra.mxu0 0
      %575 = vmatprep.subr.bf16.mxu0 0
      %576 = vmatpush1.bf16.msra.mxu0 0
      %577 = vmatprep.subr.bf16.mxu0 0
      %578 = vmatpush1.bf16.msra.mxu0 0
      %579 = vmatprep.subr.bf16.mxu0 0
      %580 = vmatpush1.bf16.msra.mxu0 0
      %581 = vmatprep.subr.bf16.mxu0 0
      %582 = vmatpush1.bf16.msra.mxu0 0
      %583 = vmatprep.subr.bf16.mxu0 0
      %584 = vmatpush1.bf16.msra.mxu0 0
      %585 = vmatprep.subr.bf16.mxu0 0
      %586 = vmatpush1.bf16.msra.mxu0 0
      %587 = vmatprep.mubr.bf16.mxu0 0
      %588 = vmatmul.mubr.bf16.gmra.mrb[0].mxu0 %v553
      %v589 = vpop.f32.mrb[0].mxu0
      %v590 = vadd.f32 %v334, %v589
      %v591 = vpop.f32.mrb[0].mxu0
      %v592 = vpop.f32.mrb[0].mxu0
      %v593 = vadd.f32 %v334, %v592
      %v594 = vpop.f32.mrb[0].mxu0
      %595 = vdwg.mxu0
      %v596 = vmax.f32 %v590, 0.0
      %v597 = vmax.f32 %v593, 0.0
      %p598 = scmp.gt.s32.totalorder %s23, 0
      %s599 = scalar_select %p598, 1.0, 0.0
      %v600 = vstv %s599
      %v601 = vmul.f32 %v596, %v600
      %v602 = vmul.f32 %v597, %v600
      %v603 = vpack.c.bf16 %v602, %v601
      %604 = vst.msk [vmem:[#allocation2 + $0x8] sm:$0xff] %vm528, %v603
      %s605 = sadd.s32 %s305, 8
      %p606 = scmp.lt.s32.totalorder %s605, 15
      %s607 = scalar_select %p606, %s605, 15
      %s608 = smul.u32 %s607, 16
      %s609 = sshra.s32 %s608, 3
      %s610 = sand.u32 %s608, 7
      %s611 = smul.addr %s609, 4
      %s612 = scalar_lea.vmem %s291, %s611
      %v613 = vld [vmem:[%s612] sm:$0xf]
      %v614 = vld [vmem:[%s612 + $0x4] sm:$0xf]
      %v617 = vunpack.c.l.b16 %v613
      %v618 = vunpack.c.l.b16 %v614
      %v619 = vpack.c.b16 %v618, %v617
      %v621 = vsel %vm382, %v619, 0
      %623 = vmatprep.subr.bf16.mxu0 0
      %624 = vmatpush1.bf16.msra.mxu0 %v380
      %625 = vmatprep.subr.bf16.mxu0 0
      %626 = vmatpush1.bf16.msra.mxu0 0
      %627 = vmatprep.subr.bf16.mxu0 0
      %628 = vmatpush1.bf16.msra.mxu0 0
      %629 = vmatprep.subr.bf16.mxu0 0
      %630 = vmatpush1.bf16.msra.mxu0 0
      %631 = vmatprep.subr.bf16.mxu0 0
      %632 = vmatpush1.bf16.msra.mxu0 0
      %633 = vmatprep.subr.bf16.mxu0 0
      %634 = vmatpush1.bf16.msra.mxu0 0
      %635 = vmatprep.subr.bf16.mxu0 0
      %636 = vmatpush1.bf16.msra.mxu0 0
      %637 = vmatprep.subr.bf16.mxu0 0
      %638 = vmatpush1.bf16.msra.mxu0 0
      %639 = vmatprep.subr.bf16.mxu0 0
      %640 = vmatpush1.bf16.msra.mxu0 0
      %641 = vmatprep.subr.bf16.mxu0 0
      %642 = vmatpush1.bf16.msra.mxu0 0
      %643 = vmatprep.subr.bf16.mxu0 0
      %644 = vmatpush1.bf16.msra.mxu0 0
      %645 = vmatprep.subr.bf16.mxu0 0
      %646 = vmatpush1.bf16.msra.mxu0 0
      %647 = vmatprep.subr.bf16.mxu0 0
      %648 = vmatpush1.bf16.msra.mxu0 0
      %649 = vmatprep.subr.bf16.mxu0 0
      %650 = vmatpush1.bf16.msra.mxu0 0
      %651 = vmatprep.subr.bf16.mxu0 0
      %652 = vmatpush1.bf16.msra.mxu0 0
      %653 = vmatprep.subr.bf16.mxu0 0
      %654 = vmatpush1.bf16.msra.mxu0 0
      %655 = vmatprep.mubr.bf16.mxu0 0
      %656 = vmatmul.mubr.bf16.gmra.mrb[0].mxu0 %v621
      %v657 = vpop.f32.mrb[0].mxu0
      %v658 = vadd.f32 %v334, %v657
      %v659 = vpop.f32.mrb[0].mxu0
      %v660 = vpop.f32.mrb[0].mxu0
      %v661 = vadd.f32 %v334, %v660
      %v662 = vpop.f32.mrb[0].mxu0
      %663 = vdwg.mxu0
      %v664 = vmax.f32 %v658, 0.0
      %v665 = vmax.f32 %v661, 0.0
      %p666 = scmp.lt.s32.totalorder %s23, 1
      %s667 = scalar_select %p666, 1.0, 0.0
      %v668 = vstv %s667
      %v669 = vmul.f32 %v664, %v668
      %v670 = vmul.f32 %v665, %v668
      %v671 = vpack.c.bf16 %v670, %v669
      %672 = vst.msk [vmem:[#allocation2 + $0x50] sm:$0xff] %vm528, %v671
      %v673 = vlaneseq
      %v674 = vshrl.u32 %v673, 7
      %v675 = vadd.s32 %v674, 8
      %v676 = vadd.s32 %v674, 16
      %v677 = vadd.s32 %v674, 24
      %v678 = vadd.s32 %v674, 32
      %v679 = vadd.s32 %v674, 40
      %v680 = vadd.s32 %v674, 48
      %v681 = vadd.s32 %v674, 56
      %v682 = vadd.s32 %v674, 64
      %v683 = vadd.s32 %v674, 72
      %v684 = vadd.s32 %v674, 80
      %v685 = vadd.s32 %v674, 88
      %v686 = vadd.s32 %v674, 96
      %v687 = vadd.s32 %v674, 104
      %v688 = vadd.s32 %v674, 112
      %v689 = vadd.s32 %v674, 120
      %vm690 = vcmp.lt.s32.totalorder %v674, 0
      %v691 = vsub.s32 0, %v674
      %v692 = vsel %vm690, %v691, %v674
      %v693 = vshrl.u32 %v692, 4
      %v694 = vand.u32 %v692, 15
      %v695 = vsub.s32 0, %v694
      %v696 = vsel %vm690, %v695, %v694
      %vm697 = vcmp.lt.s32.totalorder %v675, 0
      %v698 = vsub.s32 0, %v675
      %v699 = vsel %vm697, %v698, %v675
      %v700 = vshrl.u32 %v699, 4
      %v701 = vand.u32 %v699, 15
      %v702 = vsub.s32 0, %v701
      %v703 = vsel %vm697, %v702, %v701
      %vm704 = vcmp.lt.s32.totalorder %v676, 0
      %v705 = vsub.s32 0, %v676
      %v706 = vsel %vm704, %v705, %v676
      %v707 = vshrl.u32 %v706, 4
      %v708 = vand.u32 %v706, 15
      %v709 = vsub.s32 0, %v708
      %v710 = vsel %vm704, %v709, %v708
      %vm711 = vcmp.lt.s32.totalorder %v677, 0
      %v712 = vsub.s32 0, %v677
      %v713 = vsel %vm711, %v712, %v677
      %v714 = vshrl.u32 %v713, 4
      %v715 = vand.u32 %v713, 15
      %v716 = vsub.s32 0, %v715
      %v717 = vsel %vm711, %v716, %v715
      %vm718 = vcmp.lt.s32.totalorder %v678, 0
      %v719 = vsub.s32 0, %v678
      %v720 = vsel %vm718, %v719, %v678
      %v721 = vshrl.u32 %v720, 4
      %v722 = vand.u32 %v720, 15
      %v723 = vsub.s32 0, %v722
      %v724 = vsel %vm718, %v723, %v722
      %vm725 = vcmp.lt.s32.totalorder %v679, 0
      %v726 = vsub.s32 0, %v679
      %v727 = vsel %vm725, %v726, %v679
      %v728 = vshrl.u32 %v727, 4
      %v729 = vand.u32 %v727, 15
      %v730 = vsub.s32 0, %v729
      %v731 = vsel %vm725, %v730, %v729
      %vm732 = vcmp.lt.s32.totalorder %v680, 0
      %v733 = vsub.s32 0, %v680
      %v734 = vsel %vm732, %v733, %v680
      %v735 = vshrl.u32 %v734, 4
      %v736 = vand.u32 %v734, 15
      %v737 = vsub.s32 0, %v736
      %v738 = vsel %vm732, %v737, %v736
      %vm739 = vcmp.lt.s32.totalorder %v681, 0
      %v740 = vsub.s32 0, %v681
      %v741 = vsel %vm739, %v740, %v681
      %v742 = vshrl.u32 %v741, 4
      %v743 = vand.u32 %v741, 15
      %v744 = vsub.s32 0, %v743
      %v745 = vsel %vm739, %v744, %v743
      %vm746 = vcmp.lt.s32.totalorder %v682, 0
      %v747 = vsub.s32 0, %v682
      %v748 = vsel %vm746, %v747, %v682
      %v749 = vshrl.u32 %v748, 4
      %v750 = vand.u32 %v748, 15
      %v751 = vsub.s32 0, %v750
      %v752 = vsel %vm746, %v751, %v750
      %vm753 = vcmp.lt.s32.totalorder %v683, 0
      %v754 = vsub.s32 0, %v683
      %v755 = vsel %vm753, %v754, %v683
      %v756 = vshrl.u32 %v755, 4
      %v757 = vand.u32 %v755, 15
      %v758 = vsub.s32 0, %v757
      %v759 = vsel %vm753, %v758, %v757
      %vm760 = vcmp.lt.s32.totalorder %v684, 0
      %v761 = vsub.s32 0, %v684
      %v762 = vsel %vm760, %v761, %v684
      %v763 = vshrl.u32 %v762, 4
      %v764 = vand.u32 %v762, 15
      %v765 = vsub.s32 0, %v764
      %v766 = vsel %vm760, %v765, %v764
      %vm767 = vcmp.lt.s32.totalorder %v685, 0
      %v768 = vsub.s32 0, %v685
      %v769 = vsel %vm767, %v768, %v685
      %v770 = vshrl.u32 %v769, 4
      %v771 = vand.u32 %v769, 15
      %v772 = vsub.s32 0, %v771
      %v773 = vsel %vm767, %v772, %v771
      %vm774 = vcmp.lt.s32.totalorder %v686, 0
      %v775 = vsub.s32 0, %v686
      %v776 = vsel %vm774, %v775, %v686
      %v777 = vshrl.u32 %v776, 4
      %v778 = vand.u32 %v776, 15
      %v779 = vsub.s32 0, %v778
      %v780 = vsel %vm774, %v779, %v778
      %vm781 = vcmp.lt.s32.totalorder %v687, 0
      %v782 = vsub.s32 0, %v687
      %v783 = vsel %vm781, %v782, %v687
      %v784 = vshrl.u32 %v783, 4
      %v785 = vand.u32 %v783, 15
      %v786 = vsub.s32 0, %v785
      %v787 = vsel %vm781, %v786, %v785
      %vm788 = vcmp.lt.s32.totalorder %v688, 0
      %v789 = vsub.s32 0, %v688
      %v790 = vsel %vm788, %v789, %v688
      %v791 = vshrl.u32 %v790, 4
      %v792 = vand.u32 %v790, 15
      %v793 = vsub.s32 0, %v792
      %v794 = vsel %vm788, %v793, %v792
      %vm795 = vcmp.lt.s32.totalorder %v689, 0
      %v796 = vsub.s32 0, %v689
      %v797 = vsel %vm795, %v796, %v689
      %v798 = vshrl.u32 %v797, 4
      %v799 = vand.u32 %v797, 15
      %v800 = vsub.s32 0, %v799
      %v801 = vsel %vm795, %v800, %v799
      %vm802 = vcmp.ne.s32.totalorder %v696, 0
      %vm803 = vcmp.ne.s32.totalorder %v703, 0
      %vm804 = vcmp.ne.s32.totalorder %v710, 0
      %vm805 = vcmp.ne.s32.totalorder %v717, 0
      %vm806 = vcmp.ne.s32.totalorder %v724, 0
      %vm807 = vcmp.ne.s32.totalorder %v731, 0
      %vm808 = vcmp.ne.s32.totalorder %v738, 0
      %vm809 = vcmp.ne.s32.totalorder %v745, 0
      %vm810 = vcmp.ne.s32.totalorder %v752, 0
      %vm811 = vcmp.ne.s32.totalorder %v759, 0
      %vm812 = vcmp.ne.s32.totalorder %v766, 0
      %vm813 = vcmp.ne.s32.totalorder %v773, 0
      %vm814 = vcmp.ne.s32.totalorder %v780, 0
      %vm815 = vcmp.ne.s32.totalorder %v787, 0
      %vm816 = vcmp.ne.s32.totalorder %v794, 0
      %vm817 = vcmp.ne.s32.totalorder %v801, 0
      %vm818 = vcmp.lt.s32.totalorder %v696, 0
      %vm819 = vcmp.lt.s32.totalorder %v703, 0
      %vm820 = vcmp.lt.s32.totalorder %v710, 0
      %vm821 = vcmp.lt.s32.totalorder %v717, 0
      %vm822 = vcmp.lt.s32.totalorder %v724, 0
      %vm823 = vcmp.lt.s32.totalorder %v731, 0
      %vm824 = vcmp.lt.s32.totalorder %v738, 0
      %vm825 = vcmp.lt.s32.totalorder %v745, 0
      %vm826 = vcmp.lt.s32.totalorder %v752, 0
      %vm827 = vcmp.lt.s32.totalorder %v759, 0
      %vm828 = vcmp.lt.s32.totalorder %v766, 0
      %vm829 = vcmp.lt.s32.totalorder %v773, 0
      %vm830 = vcmp.lt.s32.totalorder %v780, 0
      %vm831 = vcmp.lt.s32.totalorder %v787, 0
      %vm832 = vcmp.lt.s32.totalorder %v794, 0
      %vm833 = vcmp.lt.s32.totalorder %v801, 0
      %vm834 = vmand %vm818, %vm802
      %vm835 = vmand %vm819, %vm803
      %vm836 = vmand %vm820, %vm804
      %vm837 = vmand %vm821, %vm805
      %vm838 = vmand %vm822, %vm806
      %vm839 = vmand %vm823, %vm807
      %vm840 = vmand %vm824, %vm808
      %vm841 = vmand %vm825, %vm809
      %vm842 = vmand %vm826, %vm810
      %vm843 = vmand %vm827, %vm811
      %vm844 = vmand %vm828, %vm812
      %vm845 = vmand %vm829, %vm813
      %vm846 = vmand %vm830, %vm814
      %vm847 = vmand %vm831, %vm815
      %vm848 = vmand %vm832, %vm816
      %vm849 = vmand %vm833, %vm817
      %v850 = vadd.s32 %v696, 16
      %v851 = vadd.s32 %v703, 16
      %v852 = vadd.s32 %v710, 16
      %v853 = vadd.s32 %v717, 16
      %v854 = vadd.s32 %v724, 16
      %v855 = vadd.s32 %v731, 16
      %v856 = vadd.s32 %v738, 16
      %v857 = vadd.s32 %v745, 16
      %v858 = vadd.s32 %v752, 16
      %v859 = vadd.s32 %v759, 16
      %v860 = vadd.s32 %v766, 16
      %v861 = vadd.s32 %v773, 16
      %v862 = vadd.s32 %v780, 16
      %v863 = vadd.s32 %v787, 16
      %v864 = vadd.s32 %v794, 16
      %v865 = vadd.s32 %v801, 16
      %v866 = vsel %vm834, %v850, %v696
      %v867 = vsel %vm835, %v851, %v703
      %v868 = vsel %vm836, %v852, %v710
      %v869 = vsel %vm837, %v853, %v717
      %v870 = vsel %vm838, %v854, %v724
      %v871 = vsel %vm839, %v855, %v731
      %v872 = vsel %vm840, %v856, %v738
      %v873 = vsel %vm841, %v857, %v745
      %v874 = vsel %vm842, %v858, %v752
      %v875 = vsel %vm843, %v859, %v759
      %v876 = vsel %vm844, %v860, %v766
      %v877 = vsel %vm845, %v861, %v773
      %v878 = vsel %vm846, %v862, %v780
      %v879 = vsel %vm847, %v863, %v787
      %v880 = vsel %vm848, %v864, %v794
      %v881 = vsel %vm849, %v865, %v801
      %vm882 = vcmp.ne.s32.totalorder %v866, 0
      %vm883 = vcmp.ne.s32.totalorder %v867, 0
      %vm884 = vcmp.ne.s32.totalorder %v868, 0
      %vm885 = vcmp.ne.s32.totalorder %v869, 0
      %vm886 = vcmp.ne.s32.totalorder %v870, 0
      %vm887 = vcmp.ne.s32.totalorder %v871, 0
      %vm888 = vcmp.ne.s32.totalorder %v872, 0
      %vm889 = vcmp.ne.s32.totalorder %v873, 0
      %vm890 = vcmp.ne.s32.totalorder %v874, 0
      %vm891 = vcmp.ne.s32.totalorder %v875, 0
      %vm892 = vcmp.ne.s32.totalorder %v876, 0
      %vm893 = vcmp.ne.s32.totalorder %v877, 0
      %vm894 = vcmp.ne.s32.totalorder %v878, 0
      %vm895 = vcmp.ne.s32.totalorder %v879, 0
      %vm896 = vcmp.ne.s32.totalorder %v880, 0
      %vm897 = vcmp.ne.s32.totalorder %v881, 0
      %vm898 = vcmp.ne.s32.totalorder %v866, 15
      %vm899 = vcmp.ne.s32.totalorder %v867, 15
      %vm900 = vcmp.ne.s32.totalorder %v868, 15
      %vm901 = vcmp.ne.s32.totalorder %v869, 15
      %vm902 = vcmp.ne.s32.totalorder %v870, 15
      %vm903 = vcmp.ne.s32.totalorder %v871, 15
      %vm904 = vcmp.ne.s32.totalorder %v872, 15
      %vm905 = vcmp.ne.s32.totalorder %v873, 15
      %vm906 = vcmp.ne.s32.totalorder %v874, 15
      %vm907 = vcmp.ne.s32.totalorder %v875, 15
      %vm908 = vcmp.ne.s32.totalorder %v876, 15
      %vm909 = vcmp.ne.s32.totalorder %v877, 15
      %vm910 = vcmp.ne.s32.totalorder %v878, 15
      %vm911 = vcmp.ne.s32.totalorder %v879, 15
      %vm912 = vcmp.ne.s32.totalorder %v880, 15
      %vm913 = vcmp.ne.s32.totalorder %v881, 15
      %v914 = vld [vmem:[#allocation2] sm:$0x80]
      %v915 = vld [vmem:[#allocation2 + $0x8] sm:$0xff]
      %v916 = vld [vmem:[#allocation2 + $0x10] sm:$0xff]
      %v917 = vld [vmem:[#allocation2 + $0x18] sm:$0xff]
      %v918 = vld [vmem:[#allocation2 + $0x20] sm:$0xff]
      %v919 = vld [vmem:[#allocation2 + $0x28] sm:$0xff]
      %v920 = vld [vmem:[#allocation2 + $0x30] sm:$0xff]
      %v921 = vld [vmem:[#allocation2 + $0x38] sm:$0xff]
      %v922 = vld [vmem:[#allocation2 + $0x40] sm:$0xff]
      %v923 = vsel %vm882, 1, 0
      %v924 = vsel %vm883, 1, 0
      %v925 = vsel %vm884, 1, 0
      %v926 = vsel %vm885, 1, 0
      %v927 = vsel %vm886, 1, 0
      %v928 = vsel %vm887, 1, 0
      %v929 = vsel %vm888, 1, 0
      %v930 = vsel %vm889, 1, 0
      %v931 = vsel %vm890, 1, 0
      %v932 = vsel %vm891, 1, 0
      %v933 = vsel %vm892, 1, 0
      %v934 = vsel %vm893, 1, 0
      %v935 = vsel %vm894, 1, 0
      %v936 = vsel %vm895, 1, 0
      %v937 = vsel %vm896, 1, 0
      %v938 = vsel %vm897, 1, 0
      %vm939 = vcmp.eq.s32.totalorder %v923, 1
      %vm940 = vcmp.eq.s32.totalorder %v924, 1
      %vm941 = vcmp.eq.s32.totalorder %v925, 1
      %vm942 = vcmp.eq.s32.totalorder %v926, 1
      %vm943 = vcmp.eq.s32.totalorder %v927, 1
      %vm944 = vcmp.eq.s32.totalorder %v928, 1
      %vm945 = vcmp.eq.s32.totalorder %v929, 1
      %vm946 = vcmp.eq.s32.totalorder %v930, 1
      %vm947 = vcmp.eq.s32.totalorder %v931, 1
      %vm948 = vcmp.eq.s32.totalorder %v932, 1
      %vm949 = vcmp.eq.s32.totalorder %v933, 1
      %vm950 = vcmp.eq.s32.totalorder %v934, 1
      %vm951 = vcmp.eq.s32.totalorder %v935, 1
      %vm952 = vcmp.eq.s32.totalorder %v936, 1
      %vm953 = vcmp.eq.s32.totalorder %v937, 1
      %vm954 = vcmp.eq.s32.totalorder %v938, 1
      %vm955 = vmpackc.low %vm939, %vm939
      %vm956 = vmpackc.low %vm940, %vm940
      %vm957 = vmpackc.low %vm941, %vm941
      %vm958 = vmpackc.low %vm942, %vm942
      %vm959 = vmpackc.low %vm943, %vm943
      %vm960 = vmpackc.low %vm944, %vm944
      %vm961 = vmpackc.low %vm945, %vm945
      %vm962 = vmpackc.low %vm946, %vm946
      %vm963 = vmpackc.low %vm947, %vm947
      %vm964 = vmpackc.low %vm948, %vm948
      %vm965 = vmpackc.low %vm949, %vm949
      %vm966 = vmpackc.low %vm950, %vm950
      %vm967 = vmpackc.low %vm951, %vm951
      %vm968 = vmpackc.low %vm952, %vm952
      %vm969 = vmpackc.low %vm953, %vm953
      %vm970 = vmpackc.low %vm954, %vm954
      %v971 = vsel %vm955, 65537, 0
      %v972 = vsel %vm956, 65537, 0
      %v973 = vsel %vm957, 65537, 0
      %v974 = vsel %vm958, 65537, 0
      %v975 = vsel %vm959, 65537, 0
      %v976 = vsel %vm960, 65537, 0
      %v977 = vsel %vm961, 65537, 0
      %v978 = vsel %vm962, 65537, 0
      %v979 = vsel %vm963, 65537, 0
      %v980 = vsel %vm964, 65537, 0
      %v981 = vsel %vm965, 65537, 0
      %v982 = vsel %vm966, 65537, 0
      %v983 = vsel %vm967, 65537, 0
      %v984 = vsel %vm968, 65537, 0
      %v985 = vsel %vm969, 65537, 0
      %v986 = vsel %vm970, 65537, 0
      %v987 = vunpack.c.l.b16 %v971
      %v988 = vunpack.c.l.b16 %v972
      %v989 = vunpack.c.l.b16 %v973
      %v990 = vunpack.c.l.b16 %v974
      %v991 = vunpack.c.l.b16 %v975
      %v992 = vunpack.c.l.b16 %v976
      %v993 = vunpack.c.l.b16 %v977
      %v994 = vunpack.c.l.b16 %v978
      %v995 = vunpack.c.l.b16 %v979
      %v996 = vunpack.c.l.b16 %v980
      %v997 = vunpack.c.l.b16 %v981
      %v998 = vunpack.c.l.b16 %v982
      %v999 = vunpack.c.l.b16 %v983
      %v1000 = vunpack.c.l.b16 %v984
      %v1001 = vunpack.c.l.b16 %v985
      %v1002 = vunpack.c.l.b16 %v986
      %v1003 = vpack.c.b16 %v988, %v987
      %v1004 = vpack.c.b16 %v990, %v989
      %v1005 = vpack.c.b16 %v992, %v991
      %v1006 = vpack.c.b16 %v994, %v993
      %v1007 = vpack.c.b16 %v996, %v995
      %v1008 = vpack.c.b16 %v998, %v997
      %v1009 = vpack.c.b16 %v1000, %v999
      %v1010 = vpack.c.b16 %v1002, %v1001
      %vm1011 = vsmask.f32 7424
      %v1013 = vshll.u32 %v1003, 16
      %v1015 = vrot.slane %v1013, 1
      %v1016 = vshrl.u32 %v1003, 16
      %v1018 = vor.u32 %v1016, %v1015
      %v1020 = vshll.u32 %v1004, 16
      %v1022 = vrot.slane %v1020, 1
      %v1023 = vsel %vm1011, %v1018, %v1022
      %v1024 = vshrl.u32 %v1004, 16
      %v1026 = vor.u32 %v1024, %v1022
      %v1028 = vshll.u32 %v1005, 16
      %v1030 = vrot.slane %v1028, 1
      %v1031 = vsel %vm1011, %v1026, %v1030
      %v1032 = vshrl.u32 %v1005, 16
      %v1034 = vor.u32 %v1032, %v1030
      %v1036 = vshll.u32 %v1006, 16
      %v1038 = vrot.slane %v1036, 1
      %v1039 = vsel %vm1011, %v1034, %v1038
      %v1040 = vshrl.u32 %v1006, 16
      %v1042 = vor.u32 %v1040, %v1038
      %v1044 = vshll.u32 %v1007, 16
      %v1046 = vrot.slane %v1044, 1
      %v1047 = vsel %vm1011, %v1042, %v1046
      %v1048 = vshrl.u32 %v1007, 16
      %v1050 = vor.u32 %v1048, %v1046
      %v1052 = vshll.u32 %v1008, 16
      %v1054 = vrot.slane %v1052, 1
      %v1055 = vsel %vm1011, %v1050, %v1054
      %v1056 = vshrl.u32 %v1008, 16
      %v1058 = vor.u32 %v1056, %v1054
      %v1060 = vshll.u32 %v1009, 16
      %v1062 = vrot.slane %v1060, 1
      %v1063 = vsel %vm1011, %v1058, %v1062
      %v1064 = vshrl.u32 %v1009, 16
      %v1066 = vor.u32 %v1064, %v1062
      %v1068 = vshll.u32 %v1010, 16
      %v1070 = vrot.slane %v1068, 1
      %v1071 = vsel %vm1011, %v1066, %v1070
      %v1072 = vshrl.u32 %v1010, 16
      %v1074 = vor.u32 %v1072, %v1070
      %vm1075 = vcmp.ne.s16.totalorder %v1015, 0
      %vm1076 = vcmp.ne.s16.totalorder %v1023, 0
      %vm1077 = vcmp.ne.s16.totalorder %v1031, 0
      %vm1078 = vcmp.ne.s16.totalorder %v1039, 0
      %vm1079 = vcmp.ne.s16.totalorder %v1047, 0
      %vm1080 = vcmp.ne.s16.totalorder %v1055, 0
      %vm1081 = vcmp.ne.s16.totalorder %v1063, 0
      %vm1082 = vcmp.ne.s16.totalorder %v1071, 0
      %vm1083 = vcmp.ne.s16.totalorder %v1074, 0
      %v1084 = vsel %vm1075, %v914, 0
      %v1085 = vsel %vm1076, %v915, 0
      %v1086 = vsel %vm1077, %v916, 0
      %v1087 = vsel %vm1078, %v917, 0
      %v1088 = vsel %vm1079, %v918, 0
      %v1089 = vsel %vm1080, %v919, 0
      %v1090 = vsel %vm1081, %v920, 0
      %v1091 = vsel %vm1082, %v921, 0
      %v1092 = vsel %vm1083, %v922, 0
      %v1093 = vld [vmem:[%s3] sm:$0x3]
      %vm1094 = vsmask.f32 256
      %v1096 = vshrl.u32 %v1084, 16
      %v1098 = vrot.slane %v1096, 7
      %v1100 = vshrl.u32 %v1085, 16
      %v1102 = vrot.slane %v1100, 7
      %v1103 = vshll.u32 %v1085, 16
      %v1105 = vor.u32 %v1102, %v1103
      %v1106 = vsel %vm1094, %v1098, %v1105
      %v1108 = vshrl.u32 %v1086, 16
      %v1110 = vrot.slane %v1108, 7
      %v1111 = vshll.u32 %v1086, 16
      %v1113 = vor.u32 %v1110, %v1111
      %v1114 = vsel %vm1094, %v1102, %v1113
      %v1116 = vshrl.u32 %v1087, 16
      %v1118 = vrot.slane %v1116, 7
      %v1119 = vshll.u32 %v1087, 16
      %v1121 = vor.u32 %v1118, %v1119
      %v1122 = vsel %vm1094, %v1110, %v1121
      %v1124 = vshrl.u32 %v1088, 16
      %v1126 = vrot.slane %v1124, 7
      %v1127 = vshll.u32 %v1088, 16
      %v1129 = vor.u32 %v1126, %v1127
      %v1130 = vsel %vm1094, %v1118, %v1129
      %v1132 = vshrl.u32 %v1089, 16
      %v1134 = vrot.slane %v1132, 7
      %v1135 = vshll.u32 %v1089, 16
      %v1137 = vor.u32 %v1134, %v1135
      %v1138 = vsel %vm1094, %v1126, %v1137
      %v1140 = vshrl.u32 %v1090, 16
      %v1142 = vrot.slane %v1140, 7
      %v1143 = vshll.u32 %v1090, 16
      %v1145 = vor.u32 %v1142, %v1143
      %v1146 = vsel %vm1094, %v1134, %v1145
      %v1148 = vshrl.u32 %v1091, 16
      %v1150 = vrot.slane %v1148, 7
      %v1151 = vshll.u32 %v1091, 16
      %v1153 = vor.u32 %v1150, %v1151
      %v1154 = vsel %vm1094, %v1142, %v1153
      %v1156 = vshrl.u32 %v1092, 16
      %v1158 = vrot.slane %v1156, 7
      %v1159 = vshll.u32 %v1092, 16
      %v1161 = vor.u32 %v1158, %v1159
      %v1162 = vsel %vm1094, %v1150, %v1161
      %v1164 = vsel %vm528, %v1106, 0
      %v1167 = vsel %vm528, %v1114, 0
      %v1170 = vsel %vm528, %v1122, 0
      %v1173 = vsel %vm528, %v1130, 0
      %v1176 = vsel %vm528, %v1138, 0
      %v1179 = vsel %vm528, %v1146, 0
      %v1182 = vsel %vm528, %v1154, 0
      %v1185 = vsel %vm528, %v1162, 0
      %vm1187 = vcmask 1041408
      %v1189 = vsel %vm1187, %v1093, 0
      %1191 = vmatprep.subr.bf16.mxu0 0
      %1192 = vmatpush1.bf16.msra.mxu0 %v1189
      %1193 = vmatprep.subr.bf16.mxu0 0
      %1194 = vmatpush1.bf16.msra.mxu0 0
      %1195 = vmatprep.subr.bf16.mxu0 0
      %1196 = vmatpush1.bf16.msra.mxu0 0
      %1197 = vmatprep.subr.bf16.mxu0 0
      %1198 = vmatpush1.bf16.msra.mxu0 0
      %1199 = vmatprep.subr.bf16.mxu0 0
      %1200 = vmatpush1.bf16.msra.mxu0 0
      %1201 = vmatprep.subr.bf16.mxu0 0
      %1202 = vmatpush1.bf16.msra.mxu0 0
      %1203 = vmatprep.subr.bf16.mxu0 0
      %1204 = vmatpush1.bf16.msra.mxu0 0
      %1205 = vmatprep.subr.bf16.mxu0 0
      %1206 = vmatpush1.bf16.msra.mxu0 0
      %1207 = vmatprep.subr.bf16.mxu0 0
      %1208 = vmatpush1.bf16.msra.mxu0 0
      %1209 = vmatprep.subr.bf16.mxu0 0
      %1210 = vmatpush1.bf16.msra.mxu0 0
      %1211 = vmatprep.subr.bf16.mxu0 0
      %1212 = vmatpush1.bf16.msra.mxu0 0
      %1213 = vmatprep.subr.bf16.mxu0 0
      %1214 = vmatpush1.bf16.msra.mxu0 0
      %1215 = vmatprep.subr.bf16.mxu0 0
      %1216 = vmatpush1.bf16.msra.mxu0 0
      %1217 = vmatprep.subr.bf16.mxu0 0
      %1218 = vmatpush1.bf16.msra.mxu0 0
      %1219 = vmatprep.subr.bf16.mxu0 0
      %1220 = vmatpush1.bf16.msra.mxu0 0
      %1221 = vmatprep.subr.bf16.mxu0 0
      %1222 = vmatpush1.bf16.msra.mxu0 0
      %1223 = vmatprep.mubr.bf16.mxu0 0
      %1224 = vmatmul.mubr.bf16.gmra.mrb[0].mxu0 %v1164
      %v1225 = vpop.f32.mrb[0].mxu0
      %v1226 = vadd.f32 0.0, %v1225
      %v1227 = vpop.f32.mrb[0].mxu0
      %v1228 = vpop.f32.mrb[0].mxu0
      %v1229 = vadd.f32 0.0, %v1228
      %v1230 = vpop.f32.mrb[0].mxu0
      %1231 = vmatprep.mubr.bf16.mxu0 0
      %1232 = vmatmul.mubr.bf16.gmra.mrb[0].mxu0 %v1167
      %v1233 = vpop.f32.mrb[0].mxu0
      %v1234 = vadd.f32 0.0, %v1233
      %v1235 = vpop.f32.mrb[0].mxu0
      %v1236 = vpop.f32.mrb[0].mxu0
      %v1237 = vadd.f32 0.0, %v1236
      %v1238 = vpop.f32.mrb[0].mxu0
      %1239 = vmatprep.mubr.bf16.mxu0 0
      %1240 = vmatmul.mubr.bf16.gmra.mrb[0].mxu0 %v1170
      %v1241 = vpop.f32.mrb[0].mxu0
      %v1242 = vadd.f32 0.0, %v1241
      %v1243 = vpop.f32.mrb[0].mxu0
      %v1244 = vpop.f32.mrb[0].mxu0
      %v1245 = vadd.f32 0.0, %v1244
      %v1246 = vpop.f32.mrb[0].mxu0
      %1247 = vmatprep.mubr.bf16.mxu0 0
      %1248 = vmatmul.mubr.bf16.gmra.mrb[0].mxu0 %v1173
      %v1249 = vpop.f32.mrb[0].mxu0
      %v1250 = vadd.f32 0.0, %v1249
      %v1251 = vpop.f32.mrb[0].mxu0
      %v1252 = vpop.f32.mrb[0].mxu0
      %v1253 = vadd.f32 0.0, %v1252
      %v1254 = vpop.f32.mrb[0].mxu0
      %1255 = vmatprep.mubr.bf16.mxu0 0
      %1256 = vmatmul.mubr.bf16.gmra.mrb[0].mxu0 %v1176
      %v1257 = vpop.f32.mrb[0].mxu0
      %v1258 = vadd.f32 0.0, %v1257
      %v1259 = vpop.f32.mrb[0].mxu0
      %v1260 = vpop.f32.mrb[0].mxu0
      %v1261 = vadd.f32 0.0, %v1260
      %v1262 = vpop.f32.mrb[0].mxu0
      %1263 = vmatprep.mubr.bf16.mxu0 0
      %1264 = vmatmul.mubr.bf16.gmra.mrb[0].mxu0 %v1179
      %v1265 = vpop.f32.mrb[0].mxu0
      %v1266 = vadd.f32 0.0, %v1265
      %v1267 = vpop.f32.mrb[0].mxu0
      %v1268 = vpop.f32.mrb[0].mxu0
      %v1269 = vadd.f32 0.0, %v1268
      %v1270 = vpop.f32.mrb[0].mxu0
      %1271 = vmatprep.mubr.bf16.mxu0 0
      %1272 = vmatmul.mubr.bf16.gmra.mrb[0].mxu0 %v1182
      %v1273 = vpop.f32.mrb[0].mxu0
      %v1274 = vadd.f32 0.0, %v1273
      %v1275 = vpop.f32.mrb[0].mxu0
      %v1276 = vpop.f32.mrb[0].mxu0
      %v1277 = vadd.f32 0.0, %v1276
      %v1278 = vpop.f32.mrb[0].mxu0
      %1279 = vmatprep.mubr.bf16.mxu0 0
      %1280 = vmatmul.mubr.bf16.gmra.mrb[0].mxu0 %v1185
      %v1281 = vpop.f32.mrb[0].mxu0
      %v1282 = vadd.f32 0.0, %v1281
      %v1283 = vpop.f32.mrb[0].mxu0
      %v1284 = vpop.f32.mrb[0].mxu0
      %v1285 = vadd.f32 0.0, %v1284
      %v1286 = vpop.f32.mrb[0].mxu0
      %1287 = vdwg.mxu0
      %1288 = vst.msk [vmem:[#allocation3] sm:$0xff] %vm528, %v1226
      %1289 = vst.msk [vmem:[#allocation3 + $0x8] sm:$0xff] %vm528, %v1229
      %1290 = vst.msk [vmem:[#allocation3 + $0x10] sm:$0xff] %vm528, %v1234
      %1291 = vst.msk [vmem:[#allocation3 + $0x18] sm:$0xff] %vm528, %v1237
      %1292 = vst.msk [vmem:[#allocation3 + $0x20] sm:$0xff] %vm528, %v1242
      %1293 = vst.msk [vmem:[#allocation3 + $0x28] sm:$0xff] %vm528, %v1245
      %1294 = vst.msk [vmem:[#allocation3 + $0x30] sm:$0xff] %vm528, %v1250
      %1295 = vst.msk [vmem:[#allocation3 + $0x38] sm:$0xff] %vm528, %v1253
      %1296 = vst.msk [vmem:[#allocation3 + $0x40] sm:$0xff] %vm528, %v1258
      %1297 = vst.msk [vmem:[#allocation3 + $0x48] sm:$0xff] %vm528, %v1261
      %1298 = vst.msk [vmem:[#allocation3 + $0x50] sm:$0xff] %vm528, %v1266
      %1299 = vst.msk [vmem:[#allocation3 + $0x58] sm:$0xff] %vm528, %v1269
      %1300 = vst.msk [vmem:[#allocation3 + $0x60] sm:$0xff] %vm528, %v1274
      %1301 = vst.msk [vmem:[#allocation3 + $0x68] sm:$0xff] %vm528, %v1277
      %1302 = vst.msk [vmem:[#allocation3 + $0x70] sm:$0xff] %vm528, %v1282
      %1303 = vst.msk [vmem:[#allocation3 + $0x78] sm:$0xff] %vm528, %v1285
      %v1304 = vld [vmem:[#allocation2 + $0x8] sm:$0xff]
      %v1305 = vld [vmem:[#allocation2 + $0x10] sm:$0xff]
      %v1306 = vld [vmem:[#allocation2 + $0x18] sm:$0xff]
      %v1307 = vld [vmem:[#allocation2 + $0x20] sm:$0xff]
      %v1308 = vld [vmem:[#allocation2 + $0x28] sm:$0xff]
      %v1309 = vld [vmem:[#allocation2 + $0x30] sm:$0xff]
      %v1310 = vld [vmem:[#allocation2 + $0x38] sm:$0xff]
      %v1311 = vld [vmem:[#allocation2 + $0x40] sm:$0xff]
      %s1312 = scalar_lea.vmem %s3, 2
      %v1313 = vld [vmem:[%s1312] sm:$0x3]
      %v1315 = vsel %vm528, %v1304, 0
      %v1318 = vsel %vm528, %v1305, 0
      %v1321 = vsel %vm528, %v1306, 0
      %v1324 = vsel %vm528, %v1307, 0
      %v1327 = vsel %vm528, %v1308, 0
      %v1330 = vsel %vm528, %v1309, 0
      %v1333 = vsel %vm528, %v1310, 0
      %v1336 = vsel %vm528, %v1311, 0
      %v1339 = vsel %vm1187, %v1313, 0
      %1341 = vmatprep.subr.bf16.mxu0 0
      %1342 = vmatpush1.bf16.msra.mxu0 %v1339
      %1343 = vmatprep.subr.bf16.mxu0 0
      %1344 = vmatpush1.bf16.msra.mxu0 0
      %1345 = vmatprep.subr.bf16.mxu0 0
      %1346 = vmatpush1.bf16.msra.mxu0 0
      %1347 = vmatprep.subr.bf16.mxu0 0
      %1348 = vmatpush1.bf16.msra.mxu0 0
      %1349 = vmatprep.subr.bf16.mxu0 0
      %1350 = vmatpush1.bf16.msra.mxu0 0
      %1351 = vmatprep.subr.bf16.mxu0 0
      %1352 = vmatpush1.bf16.msra.mxu0 0
      %1353 = vmatprep.subr.bf16.mxu0 0
      %1354 = vmatpush1.bf16.msra.mxu0 0
      %1355 = vmatprep.subr.bf16.mxu0 0
      %1356 = vmatpush1.bf16.msra.mxu0 0
      %1357 = vmatprep.subr.bf16.mxu0 0
      %1358 = vmatpush1.bf16.msra.mxu0 0
      %1359 = vmatprep.subr.bf16.mxu0 0
      %1360 = vmatpush1.bf16.msra.mxu0 0
      %1361 = vmatprep.subr.bf16.mxu0 0
      %1362 = vmatpush1.bf16.msra.mxu0 0
      %1363 = vmatprep.subr.bf16.mxu0 0
      %1364 = vmatpush1.bf16.msra.mxu0 0
      %1365 = vmatprep.subr.bf16.mxu0 0
      %1366 = vmatpush1.bf16.msra.mxu0 0
      %1367 = vmatprep.subr.bf16.mxu0 0
      %1368 = vmatpush1.bf16.msra.mxu0 0
      %1369 = vmatprep.subr.bf16.mxu0 0
      %1370 = vmatpush1.bf16.msra.mxu0 0
      %1371 = vmatprep.subr.bf16.mxu0 0
      %1372 = vmatpush1.bf16.msra.mxu0 0
      %1373 = vmatprep.mubr.bf16.mxu0 0
      %1374 = vmatmul.mubr.bf16.gmra.mrb[0].mxu0 %v1315
      %v1375 = vpop.f32.mrb[0].mxu0
      %v1376 = vadd.f32 0.0, %v1375
      %v1377 = vpop.f32.mrb[0].mxu0
      %v1378 = vpop.f32.mrb[0].mxu0
      %v1379 = vadd.f32 0.0, %v1378
      %v1380 = vpop.f32.mrb[0].mxu0
      %1381 = vmatprep.mubr.bf16.mxu0 0
      %1382 = vmatmul.mubr.bf16.gmra.mrb[0].mxu0 %v1318
      %v1383 = vpop.f32.mrb[0].mxu0
      %v1384 = vadd.f32 0.0, %v1383
      %v1385 = vpop.f32.mrb[0].mxu0
      %v1386 = vpop.f32.mrb[0].mxu0
      %v1387 = vadd.f32 0.0, %v1386
      %v1388 = vpop.f32.mrb[0].mxu0
      %1389 = vmatprep.mubr.bf16.mxu0 0
      %1390 = vmatmul.mubr.bf16.gmra.mrb[0].mxu0 %v1321
      %v1391 = vpop.f32.mrb[0].mxu0
      %v1392 = vadd.f32 0.0, %v1391
      %v1393 = vpop.f32.mrb[0].mxu0
      %v1394 = vpop.f32.mrb[0].mxu0
      %v1395 = vadd.f32 0.0, %v1394
      %v1396 = vpop.f32.mrb[0].mxu0
      %1397 = vmatprep.mubr.bf16.mxu0 0
      %1398 = vmatmul.mubr.bf16.gmra.mrb[0].mxu0 %v1324
      %v1399 = vpop.f32.mrb[0].mxu0
      %v1400 = vadd.f32 0.0, %v1399
      %v1401 = vpop.f32.mrb[0].mxu0
      %v1402 = vpop.f32.mrb[0].mxu0
      %v1403 = vadd.f32 0.0, %v1402
      %v1404 = vpop.f32.mrb[0].mxu0
      %1405 = vmatprep.mubr.bf16.mxu0 0
      %1406 = vmatmul.mubr.bf16.gmra.mrb[0].mxu0 %v1327
      %v1407 = vpop.f32.mrb[0].mxu0
      %v1408 = vadd.f32 0.0, %v1407
      %v1409 = vpop.f32.mrb[0].mxu0
      %v1410 = vpop.f32.mrb[0].mxu0
      %v1411 = vadd.f32 0.0, %v1410
      %v1412 = vpop.f32.mrb[0].mxu0
      %1413 = vmatprep.mubr.bf16.mxu0 0
      %1414 = vmatmul.mubr.bf16.gmra.mrb[0].mxu0 %v1330
      %v1415 = vpop.f32.mrb[0].mxu0
      %v1416 = vadd.f32 0.0, %v1415
      %v1417 = vpop.f32.mrb[0].mxu0
      %v1418 = vpop.f32.mrb[0].mxu0
      %v1419 = vadd.f32 0.0, %v1418
      %v1420 = vpop.f32.mrb[0].mxu0
      %1421 = vmatprep.mubr.bf16.mxu0 0
      %1422 = vmatmul.mubr.bf16.gmra.mrb[0].mxu0 %v1333
      %v1423 = vpop.f32.mrb[0].mxu0
      %v1424 = vadd.f32 0.0, %v1423
      %v1425 = vpop.f32.mrb[0].mxu0
      %v1426 = vpop.f32.mrb[0].mxu0
      %v1427 = vadd.f32 0.0, %v1426
      %v1428 = vpop.f32.mrb[0].mxu0
      %1429 = vmatprep.mubr.bf16.mxu0 0
      %1430 = vmatmul.mubr.bf16.gmra.mrb[0].mxu0 %v1336
      %v1431 = vpop.f32.mrb[0].mxu0
      %v1432 = vadd.f32 0.0, %v1431
      %v1433 = vpop.f32.mrb[0].mxu0
      %v1434 = vpop.f32.mrb[0].mxu0
      %v1435 = vadd.f32 0.0, %v1434
      %v1436 = vpop.f32.mrb[0].mxu0
      %1437 = vdwg.mxu0
      %v1438 = vld [vmem:[#allocation3] sm:$0xff]
      %v1439 = vld [vmem:[#allocation3 + $0x8] sm:$0xff]
      %v1440 = vld [vmem:[#allocation3 + $0x10] sm:$0xff]
      %v1441 = vld [vmem:[#allocation3 + $0x18] sm:$0xff]
      %v1442 = vld [vmem:[#allocation3 + $0x20] sm:$0xff]
      %v1443 = vld [vmem:[#allocation3 + $0x28] sm:$0xff]
      %v1444 = vld [vmem:[#allocation3 + $0x30] sm:$0xff]
      %v1445 = vld [vmem:[#allocation3 + $0x38] sm:$0xff]
      %v1446 = vld [vmem:[#allocation3 + $0x40] sm:$0xff]
      %v1447 = vld [vmem:[#allocation3 + $0x48] sm:$0xff]
      %v1448 = vld [vmem:[#allocation3 + $0x50] sm:$0xff]
      %v1449 = vld [vmem:[#allocation3 + $0x58] sm:$0xff]
      %v1450 = vld [vmem:[#allocation3 + $0x60] sm:$0xff]
      %v1451 = vld [vmem:[#allocation3 + $0x68] sm:$0xff]
      %v1452 = vld [vmem:[#allocation3 + $0x70] sm:$0xff]
      %v1453 = vld [vmem:[#allocation3 + $0x78] sm:$0xff]
      %v1454 = vadd.f32 %v1438, %v1376
      %v1455 = vadd.f32 %v1439, %v1379
      %v1456 = vadd.f32 %v1440, %v1384
      %v1457 = vadd.f32 %v1441, %v1387
      %v1458 = vadd.f32 %v1442, %v1392
      %v1459 = vadd.f32 %v1443, %v1395
      %v1460 = vadd.f32 %v1444, %v1400
      %v1461 = vadd.f32 %v1445, %v1403
      %v1462 = vadd.f32 %v1446, %v1408
      %v1463 = vadd.f32 %v1447, %v1411
      %v1464 = vadd.f32 %v1448, %v1416
      %v1465 = vadd.f32 %v1449, %v1419
      %v1466 = vadd.f32 %v1450, %v1424
      %v1467 = vadd.f32 %v1451, %v1427
      %v1468 = vadd.f32 %v1452, %v1432
      %v1469 = vadd.f32 %v1453, %v1435
      %1470 = vst.msk [vmem:[#allocation3] sm:$0xff] %vm528, %v1454
      %1471 = vst.msk [vmem:[#allocation3 + $0x8] sm:$0xff] %vm528, %v1455
      %1472 = vst.msk [vmem:[#allocation3 + $0x10] sm:$0xff] %vm528, %v1456
      %1473 = vst.msk [vmem:[#allocation3 + $0x18] sm:$0xff] %vm528, %v1457
      %1474 = vst.msk [vmem:[#allocation3 + $0x20] sm:$0xff] %vm528, %v1458
      %1475 = vst.msk [vmem:[#allocation3 + $0x28] sm:$0xff] %vm528, %v1459
      %1476 = vst.msk [vmem:[#allocation3 + $0x30] sm:$0xff] %vm528, %v1460
      %1477 = vst.msk [vmem:[#allocation3 + $0x38] sm:$0xff] %vm528, %v1461
      %1478 = vst.msk [vmem:[#allocation3 + $0x40] sm:$0xff] %vm528, %v1462
      %1479 = vst.msk [vmem:[#allocation3 + $0x48] sm:$0xff] %vm528, %v1463
      %1480 = vst.msk [vmem:[#allocation3 + $0x50] sm:$0xff] %vm528, %v1464
      %1481 = vst.msk [vmem:[#allocation3 + $0x58] sm:$0xff] %vm528, %v1465
      %1482 = vst.msk [vmem:[#allocation3 + $0x60] sm:$0xff] %vm528, %v1466
      %1483 = vst.msk [vmem:[#allocation3 + $0x68] sm:$0xff] %vm528, %v1467
      %1484 = vst.msk [vmem:[#allocation3 + $0x70] sm:$0xff] %vm528, %v1468
      %1485 = vst.msk [vmem:[#allocation3 + $0x78] sm:$0xff] %vm528, %v1469
      %v1486 = vld [vmem:[#allocation2 + $0x8] sm:$0xff]
      %v1487 = vld [vmem:[#allocation2 + $0x10] sm:$0xff]
      %v1488 = vld [vmem:[#allocation2 + $0x18] sm:$0xff]
      %v1489 = vld [vmem:[#allocation2 + $0x20] sm:$0xff]
      %v1490 = vld [vmem:[#allocation2 + $0x28] sm:$0xff]
      %v1491 = vld [vmem:[#allocation2 + $0x30] sm:$0xff]
      %v1492 = vld [vmem:[#allocation2 + $0x38] sm:$0xff]
      %v1493 = vld [vmem:[#allocation2 + $0x40] sm:$0xff]
      %v1494 = vld [vmem:[#allocation2 + $0x48] sm:$0x1]
      %v1495 = vsel %vm898, 1, 0
      %v1496 = vsel %vm899, 1, 0
      %v1497 = vsel %vm900, 1, 0
      %v1498 = vsel %vm901, 1, 0
      %v1499 = vsel %vm902, 1, 0
      %v1500 = vsel %vm903, 1, 0
      %v1501 = vsel %vm904, 1, 0
      %v1502 = vsel %vm905, 1, 0
      %v1503 = vsel %vm906, 1, 0
      %v1504 = vsel %vm907, 1, 0
      %v1505 = vsel %vm908, 1, 0
      %v1506 = vsel %vm909, 1, 0
      %v1507 = vsel %vm910, 1, 0
      %v1508 = vsel %vm911, 1, 0
      %v1509 = vsel %vm912, 1, 0
      %v1510 = vsel %vm913, 1, 0
      %vm1511 = vcmp.eq.s32.totalorder %v1495, 1
      %vm1512 = vcmp.eq.s32.totalorder %v1496, 1
      %vm1513 = vcmp.eq.s32.totalorder %v1497, 1
      %vm1514 = vcmp.eq.s32.totalorder %v1498, 1
      %vm1515 = vcmp.eq.s32.totalorder %v1499, 1
      %vm1516 = vcmp.eq.s32.totalorder %v1500, 1
      %vm1517 = vcmp.eq.s32.totalorder %v1501, 1
      %vm1518 = vcmp.eq.s32.totalorder %v1502, 1
      %vm1519 = vcmp.eq.s32.totalorder %v1503, 1
      %vm1520 = vcmp.eq.s32.totalorder %v1504, 1
      %vm1521 = vcmp.eq.s32.totalorder %v1505, 1
      %vm1522 = vcmp.eq.s32.totalorder %v1506, 1
      %vm1523 = vcmp.eq.s32.totalorder %v1507, 1
      %vm1524 = vcmp.eq.s32.totalorder %v1508, 1
      %vm1525 = vcmp.eq.s32.totalorder %v1509, 1
      %vm1526 = vcmp.eq.s32.totalorder %v1510, 1
      %vm1527 = vmpackc.low %vm1511, %vm1511
      %vm1528 = vmpackc.low %vm1512, %vm1512
      %vm1529 = vmpackc.low %vm1513, %vm1513
      %vm1530 = vmpackc.low %vm1514, %vm1514
      %vm1531 = vmpackc.low %vm1515, %vm1515
      %vm1532 = vmpackc.low %vm1516, %vm1516
      %vm1533 = vmpackc.low %vm1517, %vm1517
      %vm1534 = vmpackc.low %vm1518, %vm1518
      %vm1535 = vmpackc.low %vm1519, %vm1519
      %vm1536 = vmpackc.low %vm1520, %vm1520
      %vm1537 = vmpackc.low %vm1521, %vm1521
      %vm1538 = vmpackc.low %vm1522, %vm1522
      %vm1539 = vmpackc.low %vm1523, %vm1523
      %vm1540 = vmpackc.low %vm1524, %vm1524
      %vm1541 = vmpackc.low %vm1525, %vm1525
      %vm1542 = vmpackc.low %vm1526, %vm1526
      %v1543 = vsel %vm1527, 65537, 0
      %v1544 = vsel %vm1528, 65537, 0
      %v1545 = vsel %vm1529, 65537, 0
      %v1546 = vsel %vm1530, 65537, 0
      %v1547 = vsel %vm1531, 65537, 0
      %v1548 = vsel %vm1532, 65537, 0
      %v1549 = vsel %vm1533, 65537, 0
      %v1550 = vsel %vm1534, 65537, 0
      %v1551 = vsel %vm1535, 65537, 0
      %v1552 = vsel %vm1536, 65537, 0
      %v1553 = vsel %vm1537, 65537, 0
      %v1554 = vsel %vm1538, 65537, 0
      %v1555 = vsel %vm1539, 65537, 0
      %v1556 = vsel %vm1540, 65537, 0
      %v1557 = vsel %vm1541, 65537, 0
      %v1558 = vsel %vm1542, 65537, 0
      %v1559 = vunpack.c.l.b16 %v1543
      %v1560 = vunpack.c.l.b16 %v1544
      %v1561 = vunpack.c.l.b16 %v1545
      %v1562 = vunpack.c.l.b16 %v1546
      %v1563 = vunpack.c.l.b16 %v1547
      %v1564 = vunpack.c.l.b16 %v1548
      %v1565 = vunpack.c.l.b16 %v1549
      %v1566 = vunpack.c.l.b16 %v1550
      %v1567 = vunpack.c.l.b16 %v1551
      %v1568 = vunpack.c.l.b16 %v1552
      %v1569 = vunpack.c.l.b16 %v1553
      %v1570 = vunpack.c.l.b16 %v1554
      %v1571 = vunpack.c.l.b16 %v1555
      %v1572 = vunpack.c.l.b16 %v1556
      %v1573 = vunpack.c.l.b16 %v1557
      %v1574 = vunpack.c.l.b16 %v1558
      %v1575 = vpack.c.b16 %v1560, %v1559
      %v1576 = vpack.c.b16 %v1562, %v1561
      %v1577 = vpack.c.b16 %v1564, %v1563
      %v1578 = vpack.c.b16 %v1566, %v1565
      %v1579 = vpack.c.b16 %v1568, %v1567
      %v1580 = vpack.c.b16 %v1570, %v1569
      %v1581 = vpack.c.b16 %v1572, %v1571
      %v1582 = vpack.c.b16 %v1574, %v1573
      %v1584 = vshrl.u32 %v1575, 16
      %v1586 = vrot.slane %v1584, 7
      %v1587 = vshll.u32 %v1575, 16
      %v1589 = vor.u32 %v1586, %v1587
      %v1591 = vshrl.u32 %v1576, 16
      %v1593 = vrot.slane %v1591, 7
      %v1594 = vshll.u32 %v1576, 16
      %v1596 = vor.u32 %v1593, %v1594
      %v1597 = vsel %vm1094, %v1586, %v1596
      %v1599 = vshrl.u32 %v1577, 16
      %v1601 = vrot.slane %v1599, 7
      %v1602 = vshll.u32 %v1577, 16
      %v1604 = vor.u32 %v1601, %v1602
      %v1605 = vsel %vm1094, %v1593, %v1604
      %v1607 = vshrl.u32 %v1578, 16
      %v1609 = vrot.slane %v1607, 7
      %v1610 = vshll.u32 %v1578, 16
      %v1612 = vor.u32 %v1609, %v1610
      %v1613 = vsel %vm1094, %v1601, %v1612
      %v1615 = vshrl.u32 %v1579, 16
      %v1617 = vrot.slane %v1615, 7
      %v1618 = vshll.u32 %v1579, 16
      %v1620 = vor.u32 %v1617, %v1618
      %v1621 = vsel %vm1094, %v1609, %v1620
      %v1623 = vshrl.u32 %v1580, 16
      %v1625 = vrot.slane %v1623, 7
      %v1626 = vshll.u32 %v1580, 16
      %v1628 = vor.u32 %v1625, %v1626
      %v1629 = vsel %vm1094, %v1617, %v1628
      %v1631 = vshrl.u32 %v1581, 16
      %v1633 = vrot.slane %v1631, 7
      %v1634 = vshll.u32 %v1581, 16
      %v1636 = vor.u32 %v1633, %v1634
      %v1637 = vsel %vm1094, %v1625, %v1636
      %v1639 = vshrl.u32 %v1582, 16
      %v1641 = vrot.slane %v1639, 7
      %v1642 = vshll.u32 %v1582, 16
      %v1644 = vor.u32 %v1641, %v1642
      %v1645 = vsel %vm1094, %v1633, %v1644
      %vm1646 = vcmp.ne.s16.totalorder %v1589, 0
      %vm1647 = vcmp.ne.s16.totalorder %v1597, 0
      %vm1648 = vcmp.ne.s16.totalorder %v1605, 0
      %vm1649 = vcmp.ne.s16.totalorder %v1613, 0
      %vm1650 = vcmp.ne.s16.totalorder %v1621, 0
      %vm1651 = vcmp.ne.s16.totalorder %v1629, 0
      %vm1652 = vcmp.ne.s16.totalorder %v1637, 0
      %vm1653 = vcmp.ne.s16.totalorder %v1645, 0
      %vm1654 = vcmp.ne.s16.totalorder %v1641, 0
      %v1655 = vsel %vm1646, %v1486, 0
      %v1656 = vsel %vm1647, %v1487, 0
      %v1657 = vsel %vm1648, %v1488, 0
      %v1658 = vsel %vm1649, %v1489, 0
      %v1659 = vsel %vm1650, %v1490, 0
      %v1660 = vsel %vm1651, %v1491, 0
      %v1661 = vsel %vm1652, %v1492, 0
      %v1662 = vsel %vm1653, %v1493, 0
      %v1663 = vsel %vm1654, %v1494, 0
      %s1664 = scalar_lea.vmem %s3, 4
      %v1665 = vld [vmem:[%s1664] sm:$0x3]
      %v1667 = vshrl.u32 %v1655, 16
      %v1669 = vshll.u32 %v1655, 16
      %v1671 = vrot.slane %v1669, 1
      %v1672 = vor.u32 %v1667, %v1671
      %v1674 = vshll.u32 %v1656, 16
      %v1676 = vrot.slane %v1674, 1
      %v1677 = vsel %vm1011, %v1672, %v1676
      %v1678 = vshrl.u32 %v1656, 16
      %v1680 = vor.u32 %v1678, %v1676
      %v1682 = vshll.u32 %v1657, 16
      %v1684 = vrot.slane %v1682, 1
      %v1685 = vsel %vm1011, %v1680, %v1684
      %v1686 = vshrl.u32 %v1657, 16
      %v1688 = vor.u32 %v1686, %v1684
      %v1690 = vshll.u32 %v1658, 16
      %v1692 = vrot.slane %v1690, 1
      %v1693 = vsel %vm1011, %v1688, %v1692
      %v1694 = vshrl.u32 %v1658, 16
      %v1696 = vor.u32 %v1694, %v1692
      %v1698 = vshll.u32 %v1659, 16
      %v1700 = vrot.slane %v1698, 1
      %v1701 = vsel %vm1011, %v1696, %v1700
      %v1702 = vshrl.u32 %v1659, 16
      %v1704 = vor.u32 %v1702, %v1700
      %v1706 = vshll.u32 %v1660, 16
      %v1708 = vrot.slane %v1706, 1
      %v1709 = vsel %vm1011, %v1704, %v1708
      %v1710 = vshrl.u32 %v1660, 16
      %v1712 = vor.u32 %v1710, %v1708
      %v1714 = vshll.u32 %v1661, 16
      %v1716 = vrot.slane %v1714, 1
      %v1717 = vsel %vm1011, %v1712, %v1716
      %v1718 = vshrl.u32 %v1661, 16
      %v1720 = vor.u32 %v1718, %v1716
      %v1722 = vshll.u32 %v1662, 16
      %v1724 = vrot.slane %v1722, 1
      %v1725 = vsel %vm1011, %v1720, %v1724
      %v1726 = vshrl.u32 %v1662, 16
      %v1728 = vor.u32 %v1726, %v1724
      %v1730 = vshll.u32 %v1663, 16
      %v1732 = vrot.slane %v1730, 1
      %v1733 = vsel %vm1011, %v1728, %v1732
      %v1735 = vsel %vm528, %v1677, 0
      %v1738 = vsel %vm528, %v1685, 0
      %v1741 = vsel %vm528, %v1693, 0
      %v1744 = vsel %vm528, %v1701, 0
      %v1747 = vsel %vm528, %v1709, 0
      %v1750 = vsel %vm528, %v1717, 0
      %v1753 = vsel %vm528, %v1725, 0
      %v1756 = vsel %vm528, %v1733, 0
      %v1759 = vsel %vm1187, %v1665, 0
      %1761 = vmatprep.subr.bf16.mxu0 0
      %1762 = vmatpush1.bf16.msra.mxu0 %v1759
      %1763 = vmatprep.subr.bf16.mxu0 0
      %1764 = vmatpush1.bf16.msra.mxu0 0
      %1765 = vmatprep.subr.bf16.mxu0 0
      %1766 = vmatpush1.bf16.msra.mxu0 0
      %1767 = vmatprep.subr.bf16.mxu0 0
      %1768 = vmatpush1.bf16.msra.mxu0 0
      %1769 = vmatprep.subr.bf16.mxu0 0
      %1770 = vmatpush1.bf16.msra.mxu0 0
      %1771 = vmatprep.subr.bf16.mxu0 0
      %1772 = vmatpush1.bf16.msra.mxu0 0
      %1773 = vmatprep.subr.bf16.mxu0 0
      %1774 = vmatpush1.bf16.msra.mxu0 0
      %1775 = vmatprep.subr.bf16.mxu0 0
      %1776 = vmatpush1.bf16.msra.mxu0 0
      %1777 = vmatprep.subr.bf16.mxu0 0
      %1778 = vmatpush1.bf16.msra.mxu0 0
      %1779 = vmatprep.subr.bf16.mxu0 0
      %1780 = vmatpush1.bf16.msra.mxu0 0
      %1781 = vmatprep.subr.bf16.mxu0 0
      %1782 = vmatpush1.bf16.msra.mxu0 0
      %1783 = vmatprep.subr.bf16.mxu0 0
      %1784 = vmatpush1.bf16.msra.mxu0 0
      %1785 = vmatprep.subr.bf16.mxu0 0
      %1786 = vmatpush1.bf16.msra.mxu0 0
      %1787 = vmatprep.subr.bf16.mxu0 0
      %1788 = vmatpush1.bf16.msra.mxu0 0
      %1789 = vmatprep.subr.bf16.mxu0 0
      %1790 = vmatpush1.bf16.msra.mxu0 0
      %1791 = vmatprep.subr.bf16.mxu0 0
      %1792 = vmatpush1.bf16.msra.mxu0 0
      %1793 = vmatprep.mubr.bf16.mxu0 0
      %1794 = vmatmul.mubr.bf16.gmra.mrb[0].mxu0 %v1735
      %v1795 = vpop.f32.mrb[0].mxu0
      %v1796 = vadd.f32 0.0, %v1795
      %v1797 = vpop.f32.mrb[0].mxu0
      %v1798 = vpop.f32.mrb[0].mxu0
      %v1799 = vadd.f32 0.0, %v1798
      %v1800 = vpop.f32.mrb[0].mxu0
      %1801 = vmatprep.mubr.bf16.mxu0 0
      %1802 = vmatmul.mubr.bf16.gmra.mrb[0].mxu0 %v1738
      %v1803 = vpop.f32.mrb[0].mxu0
      %v1804 = vadd.f32 0.0, %v1803
      %v1805 = vpop.f32.mrb[0].mxu0
      %v1806 = vpop.f32.mrb[0].mxu0
      %v1807 = vadd.f32 0.0, %v1806
      %v1808 = vpop.f32.mrb[0].mxu0
      %1809 = vmatprep.mubr.bf16.mxu0 0
      %1810 = vmatmul.mubr.bf16.gmra.mrb[0].mxu0 %v1741
      %v1811 = vpop.f32.mrb[0].mxu0
      %v1812 = vadd.f32 0.0, %v1811
      %v1813 = vpop.f32.mrb[0].mxu0
      %v1814 = vpop.f32.mrb[0].mxu0
      %v1815 = vadd.f32 0.0, %v1814
      %v1816 = vpop.f32.mrb[0].mxu0
      %1817 = vmatprep.mubr.bf16.mxu0 0
      %1818 = vmatmul.mubr.bf16.gmra.mrb[0].mxu0 %v1744
      %v1819 = vpop.f32.mrb[0].mxu0
      %v1820 = vadd.f32 0.0, %v1819
      %v1821 = vpop.f32.mrb[0].mxu0
      %v1822 = vpop.f32.mrb[0].mxu0
      %v1823 = vadd.f32 0.0, %v1822
      %v1824 = vpop.f32.mrb[0].mxu0
      %1825 = vmatprep.mubr.bf16.mxu0 0
      %1826 = vmatmul.mubr.bf16.gmra.mrb[0].mxu0 %v1747
      %v1827 = vpop.f32.mrb[0].mxu0
      %v1828 = vadd.f32 0.0, %v1827
      %v1829 = vpop.f32.mrb[0].mxu0
      %v1830 = vpop.f32.mrb[0].mxu0
      %v1831 = vadd.f32 0.0, %v1830
      %v1832 = vpop.f32.mrb[0].mxu0
      %1833 = vmatprep.mubr.bf16.mxu0 0
      %1834 = vmatmul.mubr.bf16.gmra.mrb[0].mxu0 %v1750
      %v1835 = vpop.f32.mrb[0].mxu0
      %v1836 = vadd.f32 0.0, %v1835
      %v1837 = vpop.f32.mrb[0].mxu0
      %v1838 = vpop.f32.mrb[0].mxu0
      %v1839 = vadd.f32 0.0, %v1838
      %v1840 = vpop.f32.mrb[0].mxu0
      %1841 = vmatprep.mubr.bf16.mxu0 0
      %1842 = vmatmul.mubr.bf16.gmra.mrb[0].mxu0 %v1753
      %v1843 = vpop.f32.mrb[0].mxu0
      %v1844 = vadd.f32 0.0, %v1843
      %v1845 = vpop.f32.mrb[0].mxu0
      %v1846 = vpop.f32.mrb[0].mxu0
      %v1847 = vadd.f32 0.0, %v1846
      %v1848 = vpop.f32.mrb[0].mxu0
      %1849 = vmatprep.mubr.bf16.mxu0 0
      %1850 = vmatmul.mubr.bf16.gmra.mrb[0].mxu0 %v1756
      %v1851 = vpop.f32.mrb[0].mxu0
      %v1852 = vadd.f32 0.0, %v1851
      %v1853 = vpop.f32.mrb[0].mxu0
      %v1854 = vpop.f32.mrb[0].mxu0
      %v1855 = vadd.f32 0.0, %v1854
      %v1856 = vpop.f32.mrb[0].mxu0
      %1857 = vdwg.mxu0
      %v1858 = vld [vmem:[#allocation3] sm:$0xff]
      %v1859 = vld [vmem:[#allocation3 + $0x8] sm:$0xff]
      %v1860 = vld [vmem:[#allocation3 + $0x10] sm:$0xff]
      %v1861 = vld [vmem:[#allocation3 + $0x18] sm:$0xff]
      %v1862 = vld [vmem:[#allocation3 + $0x20] sm:$0xff]
      %v1863 = vld [vmem:[#allocation3 + $0x28] sm:$0xff]
      %v1864 = vld [vmem:[#allocation3 + $0x30] sm:$0xff]
      %v1865 = vld [vmem:[#allocation3 + $0x38] sm:$0xff]
      %v1866 = vld [vmem:[#allocation3 + $0x40] sm:$0xff]
      %v1867 = vld [vmem:[#allocation3 + $0x48] sm:$0xff]
      %v1868 = vld [vmem:[#allocation3 + $0x50] sm:$0xff]
      %v1869 = vld [vmem:[#allocation3 + $0x58] sm:$0xff]
      %v1870 = vld [vmem:[#allocation3 + $0x60] sm:$0xff]
      %v1871 = vld [vmem:[#allocation3 + $0x68] sm:$0xff]
      %v1872 = vld [vmem:[#allocation3 + $0x70] sm:$0xff]
      %v1873 = vld [vmem:[#allocation3 + $0x78] sm:$0xff]
      %v1874 = vadd.f32 %v1858, %v1796
      %v1875 = vadd.f32 %v1859, %v1799
      %v1876 = vadd.f32 %v1860, %v1804
      %v1877 = vadd.f32 %v1861, %v1807
      %v1878 = vadd.f32 %v1862, %v1812
      %v1879 = vadd.f32 %v1863, %v1815
      %v1880 = vadd.f32 %v1864, %v1820
      %v1881 = vadd.f32 %v1865, %v1823
      %v1882 = vadd.f32 %v1866, %v1828
      %v1883 = vadd.f32 %v1867, %v1831
      %v1884 = vadd.f32 %v1868, %v1836
      %v1885 = vadd.f32 %v1869, %v1839
      %v1886 = vadd.f32 %v1870, %v1844
      %v1887 = vadd.f32 %v1871, %v1847
      %v1888 = vadd.f32 %v1872, %v1852
      %v1889 = vadd.f32 %v1873, %v1855
      %1890 = vst.msk [vmem:[#allocation3] sm:$0xff] %vm528, %v1874
      %1891 = vst.msk [vmem:[#allocation3 + $0x8] sm:$0xff] %vm528, %v1875
      %1892 = vst.msk [vmem:[#allocation3 + $0x10] sm:$0xff] %vm528, %v1876
      %1893 = vst.msk [vmem:[#allocation3 + $0x18] sm:$0xff] %vm528, %v1877
      %1894 = vst.msk [vmem:[#allocation3 + $0x20] sm:$0xff] %vm528, %v1878
      %1895 = vst.msk [vmem:[#allocation3 + $0x28] sm:$0xff] %vm528, %v1879
      %1896 = vst.msk [vmem:[#allocation3 + $0x30] sm:$0xff] %vm528, %v1880
      %1897 = vst.msk [vmem:[#allocation3 + $0x38] sm:$0xff] %vm528, %v1881
      %1898 = vst.msk [vmem:[#allocation3 + $0x40] sm:$0xff] %vm528, %v1882
      %1899 = vst.msk [vmem:[#allocation3 + $0x48] sm:$0xff] %vm528, %v1883
      %1900 = vst.msk [vmem:[#allocation3 + $0x50] sm:$0xff] %vm528, %v1884
      %1901 = vst.msk [vmem:[#allocation3 + $0x58] sm:$0xff] %vm528, %v1885
      %1902 = vst.msk [vmem:[#allocation3 + $0x60] sm:$0xff] %vm528, %v1886
      %1903 = vst.msk [vmem:[#allocation3 + $0x68] sm:$0xff] %vm528, %v1887
      %1904 = vst.msk [vmem:[#allocation3 + $0x70] sm:$0xff] %vm528, %v1888
      %1905 = vst.msk [vmem:[#allocation3 + $0x78] sm:$0xff] %vm528, %v1889
      %v1906 = vld [vmem:[#allocation2 + $0x8] sm:$0x80]
      %v1907 = vld [vmem:[#allocation2 + $0x10] sm:$0xff]
      %v1908 = vld [vmem:[#allocation2 + $0x18] sm:$0xff]
      %v1909 = vld [vmem:[#allocation2 + $0x20] sm:$0xff]
      %v1910 = vld [vmem:[#allocation2 + $0x28] sm:$0xff]
      %v1911 = vld [vmem:[#allocation2 + $0x30] sm:$0xff]
      %v1912 = vld [vmem:[#allocation2 + $0x38] sm:$0xff]
      %v1913 = vld [vmem:[#allocation2 + $0x40] sm:$0xff]
      %v1914 = vld [vmem:[#allocation2 + $0x48] sm:$0xff]
      %v1915 = vsel %vm1075, %v1906, 0
      %v1916 = vsel %vm1076, %v1907, 0
      %v1917 = vsel %vm1077, %v1908, 0
      %v1918 = vsel %vm1078, %v1909, 0
      %v1919 = vsel %vm1079, %v1910, 0
      %v1920 = vsel %vm1080, %v1911, 0
      %v1921 = vsel %vm1081, %v1912, 0
      %v1922 = vsel %vm1082, %v1913, 0
      %v1923 = vsel %vm1083, %v1914, 0
      %s1924 = scalar_lea.vmem %s3, 6
      %v1925 = vld [vmem:[%s1924] sm:$0x3]
      %v1927 = vshrl.u32 %v1915, 16
      %v1929 = vrot.slane %v1927, 7
      %v1931 = vshrl.u32 %v1916, 16
      %v1933 = vrot.slane %v1931, 7
      %v1934 = vshll.u32 %v1916, 16
      %v1936 = vor.u32 %v1933, %v1934
      %v1937 = vsel %vm1094, %v1929, %v1936
      %v1939 = vshrl.u32 %v1917, 16
      %v1941 = vrot.slane %v1939, 7
      %v1942 = vshll.u32 %v1917, 16
      %v1944 = vor.u32 %v1941, %v1942
      %v1945 = vsel %vm1094, %v1933, %v1944
      %v1947 = vshrl.u32 %v1918, 16
      %v1949 = vrot.slane %v1947, 7
      %v1950 = vshll.u32 %v1918, 16
      %v1952 = vor.u32 %v1949, %v1950
      %v1953 = vsel %vm1094, %v1941, %v1952
      %v1955 = vshrl.u32 %v1919, 16
      %v1957 = vrot.slane %v1955, 7
      %v1958 = vshll.u32 %v1919, 16
      %v1960 = vor.u32 %v1957, %v1958
      %v1961 = vsel %vm1094, %v1949, %v1960
      %v1963 = vshrl.u32 %v1920, 16
      %v1965 = vrot.slane %v1963, 7
      %v1966 = vshll.u32 %v1920, 16
      %v1968 = vor.u32 %v1965, %v1966
      %v1969 = vsel %vm1094, %v1957, %v1968
      %v1971 = vshrl.u32 %v1921, 16
      %v1973 = vrot.slane %v1971, 7
      %v1974 = vshll.u32 %v1921, 16
      %v1976 = vor.u32 %v1973, %v1974
      %v1977 = vsel %vm1094, %v1965, %v1976
      %v1979 = vshrl.u32 %v1922, 16
      %v1981 = vrot.slane %v1979, 7
      %v1982 = vshll.u32 %v1922, 16
      %v1984 = vor.u32 %v1981, %v1982
      %v1985 = vsel %vm1094, %v1973, %v1984
      %v1987 = vshrl.u32 %v1923, 16
      %v1989 = vrot.slane %v1987, 7
      %v1990 = vshll.u32 %v1923, 16
      %v1992 = vor.u32 %v1989, %v1990
      %v1993 = vsel %vm1094, %v1981, %v1992
      %v1995 = vsel %vm528, %v1937, 0
      %v1998 = vsel %vm528, %v1945, 0
      %v2001 = vsel %vm528, %v1953, 0
      %v2004 = vsel %vm528, %v1961, 0
      %v2007 = vsel %vm528, %v1969, 0
      %v2010 = vsel %vm528, %v1977, 0
      %v2013 = vsel %vm528, %v1985, 0
      %v2016 = vsel %vm528, %v1993, 0
      %v2019 = vsel %vm1187, %v1925, 0
      %2021 = vmatprep.subr.bf16.mxu0 0
      %2022 = vmatpush1.bf16.msra.mxu0 %v2019
      %2023 = vmatprep.subr.bf16.mxu0 0
      %2024 = vmatpush1.bf16.msra.mxu0 0
      %2025 = vmatprep.subr.bf16.mxu0 0
      %2026 = vmatpush1.bf16.msra.mxu0 0
      %2027 = vmatprep.subr.bf16.mxu0 0
      %2028 = vmatpush1.bf16.msra.mxu0 0
      %2029 = vmatprep.subr.bf16.mxu0 0
      %2030 = vmatpush1.bf16.msra.mxu0 0
      %2031 = vmatprep.subr.bf16.mxu0 0
      %2032 = vmatpush1.bf16.msra.mxu0 0
      %2033 = vmatprep.subr.bf16.mxu0 0
      %2034 = vmatpush1.bf16.msra.mxu0 0
      %2035 = vmatprep.subr.bf16.mxu0 0
      %2036 = vmatpush1.bf16.msra.mxu0 0
      %2037 = vmatprep.subr.bf16.mxu0 0
      %2038 = vmatpush1.bf16.msra.mxu0 0
      %2039 = vmatprep.subr.bf16.mxu0 0
      %2040 = vmatpush1.bf16.msra.mxu0 0
      %2041 = vmatprep.subr.bf16.mxu0 0
      %2042 = vmatpush1.bf16.msra.mxu0 0
      %2043 = vmatprep.subr.bf16.mxu0 0
      %2044 = vmatpush1.bf16.msra.mxu0 0
      %2045 = vmatprep.subr.bf16.mxu0 0
      %2046 = vmatpush1.bf16.msra.mxu0 0
      %2047 = vmatprep.subr.bf16.mxu0 0
      %2048 = vmatpush1.bf16.msra.mxu0 0
      %2049 = vmatprep.subr.bf16.mxu0 0
      %2050 = vmatpush1.bf16.msra.mxu0 0
      %2051 = vmatprep.subr.bf16.mxu0 0
      %2052 = vmatpush1.bf16.msra.mxu0 0
      %2053 = vmatprep.mubr.bf16.mxu0 0
      %2054 = vmatmul.mubr.bf16.gmra.mrb[0].mxu0 %v1995
      %v2055 = vpop.f32.mrb[0].mxu0
      %v2056 = vadd.f32 0.0, %v2055
      %v2057 = vpop.f32.mrb[0].mxu0
      %v2058 = vpop.f32.mrb[0].mxu0
      %v2059 = vadd.f32 0.0, %v2058
      %v2060 = vpop.f32.mrb[0].mxu0
      %2061 = vmatprep.mubr.bf16.mxu0 0
      %2062 = vmatmul.mubr.bf16.gmra.mrb[0].mxu0 %v1998
      %v2063 = vpop.f32.mrb[0].mxu0
      %v2064 = vadd.f32 0.0, %v2063
      %v2065 = vpop.f32.mrb[0].mxu0
      %v2066 = vpop.f32.mrb[0].mxu0
      %v2067 = vadd.f32 0.0, %v2066
      %v2068 = vpop.f32.mrb[0].mxu0
      %2069 = vmatprep.mubr.bf16.mxu0 0
      %2070 = vmatmul.mubr.bf16.gmra.mrb[0].mxu0 %v2001
      %v2071 = vpop.f32.mrb[0].mxu0
      %v2072 = vadd.f32 0.0, %v2071
      %v2073 = vpop.f32.mrb[0].mxu0
      %v2074 = vpop.f32.mrb[0].mxu0
      %v2075 = vadd.f32 0.0, %v2074
      %v2076 = vpop.f32.mrb[0].mxu0
      %2077 = vmatprep.mubr.bf16.mxu0 0
      %2078 = vmatmul.mubr.bf16.gmra.mrb[0].mxu0 %v2004
      %v2079 = vpop.f32.mrb[0].mxu0
      %v2080 = vadd.f32 0.0, %v2079
      %v2081 = vpop.f32.mrb[0].mxu0
      %v2082 = vpop.f32.mrb[0].mxu0
      %v2083 = vadd.f32 0.0, %v2082
      %v2084 = vpop.f32.mrb[0].mxu0
      %2085 = vmatprep.mubr.bf16.mxu0 0
      %2086 = vmatmul.mubr.bf16.gmra.mrb[0].mxu0 %v2007
      %v2087 = vpop.f32.mrb[0].mxu0
      %v2088 = vadd.f32 0.0, %v2087
      %v2089 = vpop.f32.mrb[0].mxu0
      %v2090 = vpop.f32.mrb[0].mxu0
      %v2091 = vadd.f32 0.0, %v2090
      %v2092 = vpop.f32.mrb[0].mxu0
      %2093 = vmatprep.mubr.bf16.mxu0 0
      %2094 = vmatmul.mubr.bf16.gmra.mrb[0].mxu0 %v2010
      %v2095 = vpop.f32.mrb[0].mxu0
      %v2096 = vadd.f32 0.0, %v2095
      %v2097 = vpop.f32.mrb[0].mxu0
      %v2098 = vpop.f32.mrb[0].mxu0
      %v2099 = vadd.f32 0.0, %v2098
      %v2100 = vpop.f32.mrb[0].mxu0
      %2101 = vmatprep.mubr.bf16.mxu0 0
      %2102 = vmatmul.mubr.bf16.gmra.mrb[0].mxu0 %v2013
      %v2103 = vpop.f32.mrb[0].mxu0
      %v2104 = vadd.f32 0.0, %v2103
      %v2105 = vpop.f32.mrb[0].mxu0
      %v2106 = vpop.f32.mrb[0].mxu0
      %v2107 = vadd.f32 0.0, %v2106
      %v2108 = vpop.f32.mrb[0].mxu0
      %2109 = vmatprep.mubr.bf16.mxu0 0
      %2110 = vmatmul.mubr.bf16.gmra.mrb[0].mxu0 %v2016
      %v2111 = vpop.f32.mrb[0].mxu0
      %v2112 = vadd.f32 0.0, %v2111
      %v2113 = vpop.f32.mrb[0].mxu0
      %v2114 = vpop.f32.mrb[0].mxu0
      %v2115 = vadd.f32 0.0, %v2114
      %v2116 = vpop.f32.mrb[0].mxu0
      %2117 = vdwg.mxu0
      %v2118 = vld [vmem:[#allocation3] sm:$0xff]
      %v2119 = vld [vmem:[#allocation3 + $0x8] sm:$0xff]
      %v2120 = vld [vmem:[#allocation3 + $0x10] sm:$0xff]
      %v2121 = vld [vmem:[#allocation3 + $0x18] sm:$0xff]
      %v2122 = vld [vmem:[#allocation3 + $0x20] sm:$0xff]
      %v2123 = vld [vmem:[#allocation3 + $0x28] sm:$0xff]
      %v2124 = vld [vmem:[#allocation3 + $0x30] sm:$0xff]
      %v2125 = vld [vmem:[#allocation3 + $0x38] sm:$0xff]
      %v2126 = vld [vmem:[#allocation3 + $0x40] sm:$0xff]
      %v2127 = vld [vmem:[#allocation3 + $0x48] sm:$0xff]
      %v2128 = vld [vmem:[#allocation3 + $0x50] sm:$0xff]
      %v2129 = vld [vmem:[#allocation3 + $0x58] sm:$0xff]
      %v2130 = vld [vmem:[#allocation3 + $0x60] sm:$0xff]
      %v2131 = vld [vmem:[#allocation3 + $0x68] sm:$0xff]
      %v2132 = vld [vmem:[#allocation3 + $0x70] sm:$0xff]
      %v2133 = vld [vmem:[#allocation3 + $0x78] sm:$0xff]
      %v2134 = vadd.f32 %v2118, %v2056
      %v2135 = vadd.f32 %v2119, %v2059
      %v2136 = vadd.f32 %v2120, %v2064
      %v2137 = vadd.f32 %v2121, %v2067
      %v2138 = vadd.f32 %v2122, %v2072
      %v2139 = vadd.f32 %v2123, %v2075
      %v2140 = vadd.f32 %v2124, %v2080
      %v2141 = vadd.f32 %v2125, %v2083
      %v2142 = vadd.f32 %v2126, %v2088
      %v2143 = vadd.f32 %v2127, %v2091
      %v2144 = vadd.f32 %v2128, %v2096
      %v2145 = vadd.f32 %v2129, %v2099
      %v2146 = vadd.f32 %v2130, %v2104
      %v2147 = vadd.f32 %v2131, %v2107
      %v2148 = vadd.f32 %v2132, %v2112
      %v2149 = vadd.f32 %v2133, %v2115
      %2150 = vst.msk [vmem:[#allocation3] sm:$0xff] %vm528, %v2134
      %2151 = vst.msk [vmem:[#allocation3 + $0x8] sm:$0xff] %vm528, %v2135
      %2152 = vst.msk [vmem:[#allocation3 + $0x10] sm:$0xff] %vm528, %v2136
      %2153 = vst.msk [vmem:[#allocation3 + $0x18] sm:$0xff] %vm528, %v2137
      %2154 = vst.msk [vmem:[#allocation3 + $0x20] sm:$0xff] %vm528, %v2138
      %2155 = vst.msk [vmem:[#allocation3 + $0x28] sm:$0xff] %vm528, %v2139
      %2156 = vst.msk [vmem:[#allocation3 + $0x30] sm:$0xff] %vm528, %v2140
      %2157 = vst.msk [vmem:[#allocation3 + $0x38] sm:$0xff] %vm528, %v2141
      %2158 = vst.msk [vmem:[#allocation3 + $0x40] sm:$0xff] %vm528, %v2142
      %2159 = vst.msk [vmem:[#allocation3 + $0x48] sm:$0xff] %vm528, %v2143
      %2160 = vst.msk [vmem:[#allocation3 + $0x50] sm:$0xff] %vm528, %v2144
      %2161 = vst.msk [vmem:[#allocation3 + $0x58] sm:$0xff] %vm528, %v2145
      %2162 = vst.msk [vmem:[#allocation3 + $0x60] sm:$0xff] %vm528, %v2146
      %2163 = vst.msk [vmem:[#allocation3 + $0x68] sm:$0xff] %vm528, %v2147
      %2164 = vst.msk [vmem:[#allocation3 + $0x70] sm:$0xff] %vm528, %v2148
      %2165 = vst.msk [vmem:[#allocation3 + $0x78] sm:$0xff] %vm528, %v2149
      %v2166 = vld [vmem:[#allocation2 + $0x10] sm:$0xff]
      %v2167 = vld [vmem:[#allocation2 + $0x18] sm:$0xff]
      %v2168 = vld [vmem:[#allocation2 + $0x20] sm:$0xff]
      %v2169 = vld [vmem:[#allocation2 + $0x28] sm:$0xff]
      %v2170 = vld [vmem:[#allocation2 + $0x30] sm:$0xff]
      %v2171 = vld [vmem:[#allocation2 + $0x38] sm:$0xff]
      %v2172 = vld [vmem:[#allocation2 + $0x40] sm:$0xff]
      %v2173 = vld [vmem:[#allocation2 + $0x48] sm:$0xff]
      %s2174 = scalar_lea.vmem %s3, 8
      %v2175 = vld [vmem:[%s2174] sm:$0x3]
      %v2177 = vsel %vm528, %v2166, 0
      %v2180 = vsel %vm528, %v2167, 0
      %v2183 = vsel %vm528, %v2168, 0
      %v2186 = vsel %vm528, %v2169, 0
      %v2189 = vsel %vm528, %v2170, 0
      %v2192 = vsel %vm528, %v2171, 0
      %v2195 = vsel %vm528, %v2172, 0
      %v2198 = vsel %vm528, %v2173, 0
      %v2201 = vsel %vm1187, %v2175, 0
      %2203 = vmatprep.subr.bf16.mxu0 0
      %2204 = vmatpush1.bf16.msra.mxu0 %v2201
      %2205 = vmatprep.subr.bf16.mxu0 0
      %2206 = vmatpush1.bf16.msra.mxu0 0
      %2207 = vmatprep.subr.bf16.mxu0 0
      %2208 = vmatpush1.bf16.msra.mxu0 0
      %2209 = vmatprep.subr.bf16.mxu0 0
      %2210 = vmatpush1.bf16.msra.mxu0 0
      %2211 = vmatprep.subr.bf16.mxu0 0
      %2212 = vmatpush1.bf16.msra.mxu0 0
      %2213 = vmatprep.subr.bf16.mxu0 0
      %2214 = vmatpush1.bf16.msra.mxu0 0
      %2215 = vmatprep.subr.bf16.mxu0 0
      %2216 = vmatpush1.bf16.msra.mxu0 0
      %2217 = vmatprep.subr.bf16.mxu0 0
      %2218 = vmatpush1.bf16.msra.mxu0 0
      %2219 = vmatprep.subr.bf16.mxu0 0
      %2220 = vmatpush1.bf16.msra.mxu0 0
      %2221 = vmatprep.subr.bf16.mxu0 0
      %2222 = vmatpush1.bf16.msra.mxu0 0
      %2223 = vmatprep.subr.bf16.mxu0 0
      %2224 = vmatpush1.bf16.msra.mxu0 0
      %2225 = vmatprep.subr.bf16.mxu0 0
      %2226 = vmatpush1.bf16.msra.mxu0 0
      %2227 = vmatprep.subr.bf16.mxu0 0
      %2228 = vmatpush1.bf16.msra.mxu0 0
      %2229 = vmatprep.subr.bf16.mxu0 0
      %2230 = vmatpush1.bf16.msra.mxu0 0
      %2231 = vmatprep.subr.bf16.mxu0 0
      %2232 = vmatpush1.bf16.msra.mxu0 0
      %2233 = vmatprep.subr.bf16.mxu0 0
      %2234 = vmatpush1.bf16.msra.mxu0 0
      %2235 = vmatprep.mubr.bf16.mxu0 0
      %2236 = vmatmul.mubr.bf16.gmra.mrb[0].mxu0 %v2177
      %v2237 = vpop.f32.mrb[0].mxu0
      %v2238 = vadd.f32 0.0, %v2237
      %v2239 = vpop.f32.mrb[0].mxu0
      %v2240 = vpop.f32.mrb[0].mxu0
      %v2241 = vadd.f32 0.0, %v2240
      %v2242 = vpop.f32.mrb[0].mxu0
      %2243 = vmatprep.mubr.bf16.mxu0 0
      %2244 = vmatmul.mubr.bf16.gmra.mrb[0].mxu0 %v2180
      %v2245 = vpop.f32.mrb[0].mxu0
      %v2246 = vadd.f32 0.0, %v2245
      %v2247 = vpop.f32.mrb[0].mxu0
      %v2248 = vpop.f32.mrb[0].mxu0
      %v2249 = vadd.f32 0.0, %v2248
      %v2250 = vpop.f32.mrb[0].mxu0
      %2251 = vmatprep.mubr.bf16.mxu0 0
      %2252 = vmatmul.mubr.bf16.gmra.mrb[0].mxu0 %v2183
      %v2253 = vpop.f32.mrb[0].mxu0
      %v2254 = vadd.f32 0.0, %v2253
      %v2255 = vpop.f32.mrb[0].mxu0
      %v2256 = vpop.f32.mrb[0].mxu0
      %v2257 = vadd.f32 0.0, %v2256
      %v2258 = vpop.f32.mrb[0].mxu0
      %2259 = vmatprep.mubr.bf16.mxu0 0
      %2260 = vmatmul.mubr.bf16.gmra.mrb[0].mxu0 %v2186
      %v2261 = vpop.f32.mrb[0].mxu0
      %v2262 = vadd.f32 0.0, %v2261
      %v2263 = vpop.f32.mrb[0].mxu0
      %v2264 = vpop.f32.mrb[0].mxu0
      %v2265 = vadd.f32 0.0, %v2264
      %v2266 = vpop.f32.mrb[0].mxu0
      %2267 = vmatprep.mubr.bf16.mxu0 0
      %2268 = vmatmul.mubr.bf16.gmra.mrb[0].mxu0 %v2189
      %v2269 = vpop.f32.mrb[0].mxu0
      %v2270 = vadd.f32 0.0, %v2269
      %v2271 = vpop.f32.mrb[0].mxu0
      %v2272 = vpop.f32.mrb[0].mxu0
      %v2273 = vadd.f32 0.0, %v2272
      %v2274 = vpop.f32.mrb[0].mxu0
      %2275 = vmatprep.mubr.bf16.mxu0 0
      %2276 = vmatmul.mubr.bf16.gmra.mrb[0].mxu0 %v2192
      %v2277 = vpop.f32.mrb[0].mxu0
      %v2278 = vadd.f32 0.0, %v2277
      %v2279 = vpop.f32.mrb[0].mxu0
      %v2280 = vpop.f32.mrb[0].mxu0
      %v2281 = vadd.f32 0.0, %v2280
      %v2282 = vpop.f32.mrb[0].mxu0
      %2283 = vmatprep.mubr.bf16.mxu0 0
      %2284 = vmatmul.mubr.bf16.gmra.mrb[0].mxu0 %v2195
      %v2285 = vpop.f32.mrb[0].mxu0
      %v2286 = vadd.f32 0.0, %v2285
      %v2287 = vpop.f32.mrb[0].mxu0
      %v2288 = vpop.f32.mrb[0].mxu0
      %v2289 = vadd.f32 0.0, %v2288
      %v2290 = vpop.f32.mrb[0].mxu0
      %2291 = vmatprep.mubr.bf16.mxu0 0
      %2292 = vmatmul.mubr.bf16.gmra.mrb[0].mxu0 %v2198
      %v2293 = vpop.f32.mrb[0].mxu0
      %v2294 = vadd.f32 0.0, %v2293
      %v2295 = vpop.f32.mrb[0].mxu0
      %v2296 = vpop.f32.mrb[0].mxu0
      %v2297 = vadd.f32 0.0, %v2296
      %v2298 = vpop.f32.mrb[0].mxu0
      %2299 = vdwg.mxu0
      %v2300 = vld [vmem:[#allocation3] sm:$0xff]
      %v2301 = vld [vmem:[#allocation3 + $0x8] sm:$0xff]
      %v2302 = vld [vmem:[#allocation3 + $0x10] sm:$0xff]
      %v2303 = vld [vmem:[#allocation3 + $0x18] sm:$0xff]
      %v2304 = vld [vmem:[#allocation3 + $0x20] sm:$0xff]
      %v2305 = vld [vmem:[#allocation3 + $0x28] sm:$0xff]
      %v2306 = vld [vmem:[#allocation3 + $0x30] sm:$0xff]
      %v2307 = vld [vmem:[#allocation3 + $0x38] sm:$0xff]
      %v2308 = vld [vmem:[#allocation3 + $0x40] sm:$0xff]
      %v2309 = vld [vmem:[#allocation3 + $0x48] sm:$0xff]
      %v2310 = vld [vmem:[#allocation3 + $0x50] sm:$0xff]
      %v2311 = vld [vmem:[#allocation3 + $0x58] sm:$0xff]
      %v2312 = vld [vmem:[#allocation3 + $0x60] sm:$0xff]
      %v2313 = vld [vmem:[#allocation3 + $0x68] sm:$0xff]
      %v2314 = vld [vmem:[#allocation3 + $0x70] sm:$0xff]
      %v2315 = vld [vmem:[#allocation3 + $0x78] sm:$0xff]
      %v2316 = vadd.f32 %v2300, %v2238
      %v2317 = vadd.f32 %v2301, %v2241
      %v2318 = vadd.f32 %v2302, %v2246
      %v2319 = vadd.f32 %v2303, %v2249
      %v2320 = vadd.f32 %v2304, %v2254
      %v2321 = vadd.f32 %v2305, %v2257
      %v2322 = vadd.f32 %v2306, %v2262
      %v2323 = vadd.f32 %v2307, %v2265
      %v2324 = vadd.f32 %v2308, %v2270
      %v2325 = vadd.f32 %v2309, %v2273
      %v2326 = vadd.f32 %v2310, %v2278
      %v2327 = vadd.f32 %v2311, %v2281
      %v2328 = vadd.f32 %v2312, %v2286
      %v2329 = vadd.f32 %v2313, %v2289
      %v2330 = vadd.f32 %v2314, %v2294
      %v2331 = vadd.f32 %v2315, %v2297
      %2332 = vst.msk [vmem:[#allocation3] sm:$0xff] %vm528, %v2316
      %2333 = vst.msk [vmem:[#allocation3 + $0x8] sm:$0xff] %vm528, %v2317
      %2334 = vst.msk [vmem:[#allocation3 + $0x10] sm:$0xff] %vm528, %v2318
      %2335 = vst.msk [vmem:[#allocation3 + $0x18] sm:$0xff] %vm528, %v2319
      %2336 = vst.msk [vmem:[#allocation3 + $0x20] sm:$0xff] %vm528, %v2320
      %2337 = vst.msk [vmem:[#allocation3 + $0x28] sm:$0xff] %vm528, %v2321
      %2338 = vst.msk [vmem:[#allocation3 + $0x30] sm:$0xff] %vm528, %v2322
      %2339 = vst.msk [vmem:[#allocation3 + $0x38] sm:$0xff] %vm528, %v2323
      %2340 = vst.msk [vmem:[#allocation3 + $0x40] sm:$0xff] %vm528, %v2324
      %2341 = vst.msk [vmem:[#allocation3 + $0x48] sm:$0xff] %vm528, %v2325
      %2342 = vst.msk [vmem:[#allocation3 + $0x50] sm:$0xff] %vm528, %v2326
      %2343 = vst.msk [vmem:[#allocation3 + $0x58] sm:$0xff] %vm528, %v2327
      %2344 = vst.msk [vmem:[#allocation3 + $0x60] sm:$0xff] %vm528, %v2328
      %2345 = vst.msk [vmem:[#allocation3 + $0x68] sm:$0xff] %vm528, %v2329
      %2346 = vst.msk [vmem:[#allocation3 + $0x70] sm:$0xff] %vm528, %v2330
      %2347 = vst.msk [vmem:[#allocation3 + $0x78] sm:$0xff] %vm528, %v2331
      %v2348 = vld [vmem:[#allocation2 + $0x10] sm:$0xff]
      %v2349 = vld [vmem:[#allocation2 + $0x18] sm:$0xff]
      %v2350 = vld [vmem:[#allocation2 + $0x20] sm:$0xff]
      %v2351 = vld [vmem:[#allocation2 + $0x28] sm:$0xff]
      %v2352 = vld [vmem:[#allocation2 + $0x30] sm:$0xff]
      %v2353 = vld [vmem:[#allocation2 + $0x38] sm:$0xff]
      %v2354 = vld [vmem:[#allocation2 + $0x40] sm:$0xff]
      %v2355 = vld [vmem:[#allocation2 + $0x48] sm:$0xff]
      %v2356 = vld [vmem:[#allocation2 + $0x50] sm:$0x1]
      %v2357 = vsel %vm1646, %v2348, 0
      %v2358 = vsel %vm1647, %v2349, 0
      %v2359 = vsel %vm1648, %v2350, 0
      %v2360 = vsel %vm1649, %v2351, 0
      %v2361 = vsel %vm1650, %v2352, 0
      %v2362 = vsel %vm1651, %v2353, 0
      %v2363 = vsel %vm1652, %v2354, 0
      %v2364 = vsel %vm1653, %v2355, 0
      %v2365 = vsel %vm1654, %v2356, 0
      %s2366 = scalar_lea.vmem %s3, 10
      %v2367 = vld [vmem:[%s2366] sm:$0x3]
      %v2369 = vshrl.u32 %v2357, 16
      %v2371 = vshll.u32 %v2357, 16
      %v2373 = vrot.slane %v2371, 1
      %v2374 = vor.u32 %v2369, %v2373
      %v2376 = vshll.u32 %v2358, 16
      %v2378 = vrot.slane %v2376, 1
      %v2379 = vsel %vm1011, %v2374, %v2378
      %v2380 = vshrl.u32 %v2358, 16
      %v2382 = vor.u32 %v2380, %v2378
      %v2384 = vshll.u32 %v2359, 16
      %v2386 = vrot.slane %v2384, 1
      %v2387 = vsel %vm1011, %v2382, %v2386
      %v2388 = vshrl.u32 %v2359, 16
      %v2390 = vor.u32 %v2388, %v2386
      %v2392 = vshll.u32 %v2360, 16
      %v2394 = vrot.slane %v2392, 1
      %v2395 = vsel %vm1011, %v2390, %v2394
      %v2396 = vshrl.u32 %v2360, 16
      %v2398 = vor.u32 %v2396, %v2394
      %v2400 = vshll.u32 %v2361, 16
      %v2402 = vrot.slane %v2400, 1
      %v2403 = vsel %vm1011, %v2398, %v2402
      %v2404 = vshrl.u32 %v2361, 16
      %v2406 = vor.u32 %v2404, %v2402
      %v2408 = vshll.u32 %v2362, 16
      %v2410 = vrot.slane %v2408, 1
      %v2411 = vsel %vm1011, %v2406, %v2410
      %v2412 = vshrl.u32 %v2362, 16
      %v2414 = vor.u32 %v2412, %v2410
      %v2416 = vshll.u32 %v2363, 16
      %v2418 = vrot.slane %v2416, 1
      %v2419 = vsel %vm1011, %v2414, %v2418
      %v2420 = vshrl.u32 %v2363, 16
      %v2422 = vor.u32 %v2420, %v2418
      %v2424 = vshll.u32 %v2364, 16
      %v2426 = vrot.slane %v2424, 1
      %v2427 = vsel %vm1011, %v2422, %v2426
      %v2428 = vshrl.u32 %v2364, 16
      %v2430 = vor.u32 %v2428, %v2426
      %v2432 = vshll.u32 %v2365, 16
      %v2434 = vrot.slane %v2432, 1
      %v2435 = vsel %vm1011, %v2430, %v2434
      %v2437 = vsel %vm528, %v2379, 0
      %v2440 = vsel %vm528, %v2387, 0
      %v2443 = vsel %vm528, %v2395, 0
      %v2446 = vsel %vm528, %v2403, 0
      %v2449 = vsel %vm528, %v2411, 0
      %v2452 = vsel %vm528, %v2419, 0
      %v2455 = vsel %vm528, %v2427, 0
      %v2458 = vsel %vm528, %v2435, 0
      %v2461 = vsel %vm1187, %v2367, 0
      %2463 = vmatprep.subr.bf16.mxu0 0
      %2464 = vmatpush1.bf16.msra.mxu0 %v2461
      %2465 = vmatprep.subr.bf16.mxu0 0
      %2466 = vmatpush1.bf16.msra.mxu0 0
      %2467 = vmatprep.subr.bf16.mxu0 0
      %2468 = vmatpush1.bf16.msra.mxu0 0
      %2469 = vmatprep.subr.bf16.mxu0 0
      %2470 = vmatpush1.bf16.msra.mxu0 0
      %2471 = vmatprep.subr.bf16.mxu0 0
      %2472 = vmatpush1.bf16.msra.mxu0 0
      %2473 = vmatprep.subr.bf16.mxu0 0
      %2474 = vmatpush1.bf16.msra.mxu0 0
      %2475 = vmatprep.subr.bf16.mxu0 0
      %2476 = vmatpush1.bf16.msra.mxu0 0
      %2477 = vmatprep.subr.bf16.mxu0 0
      %2478 = vmatpush1.bf16.msra.mxu0 0
      %2479 = vmatprep.subr.bf16.mxu0 0
      %2480 = vmatpush1.bf16.msra.mxu0 0
      %2481 = vmatprep.subr.bf16.mxu0 0
      %2482 = vmatpush1.bf16.msra.mxu0 0
      %2483 = vmatprep.subr.bf16.mxu0 0
      %2484 = vmatpush1.bf16.msra.mxu0 0
      %2485 = vmatprep.subr.bf16.mxu0 0
      %2486 = vmatpush1.bf16.msra.mxu0 0
      %2487 = vmatprep.subr.bf16.mxu0 0
      %2488 = vmatpush1.bf16.msra.mxu0 0
      %2489 = vmatprep.subr.bf16.mxu0 0
      %2490 = vmatpush1.bf16.msra.mxu0 0
      %2491 = vmatprep.subr.bf16.mxu0 0
      %2492 = vmatpush1.bf16.msra.mxu0 0
      %2493 = vmatprep.subr.bf16.mxu0 0
      %2494 = vmatpush1.bf16.msra.mxu0 0
      %2495 = vmatprep.mubr.bf16.mxu0 0
      %2496 = vmatmul.mubr.bf16.gmra.mrb[0].mxu0 %v2437
      %v2497 = vpop.f32.mrb[0].mxu0
      %v2498 = vadd.f32 0.0, %v2497
      %v2499 = vpop.f32.mrb[0].mxu0
      %v2500 = vpop.f32.mrb[0].mxu0
      %v2501 = vadd.f32 0.0, %v2500
      %v2502 = vpop.f32.mrb[0].mxu0
      %2503 = vmatprep.mubr.bf16.mxu0 0
      %2504 = vmatmul.mubr.bf16.gmra.mrb[0].mxu0 %v2440
      %v2505 = vpop.f32.mrb[0].mxu0
      %v2506 = vadd.f32 0.0, %v2505
      %v2507 = vpop.f32.mrb[0].mxu0
      %v2508 = vpop.f32.mrb[0].mxu0
      %v2509 = vadd.f32 0.0, %v2508
      %v2510 = vpop.f32.mrb[0].mxu0
      %2511 = vmatprep.mubr.bf16.mxu0 0
      %2512 = vmatmul.mubr.bf16.gmra.mrb[0].mxu0 %v2443
      %v2513 = vpop.f32.mrb[0].mxu0
      %v2514 = vadd.f32 0.0, %v2513
      %v2515 = vpop.f32.mrb[0].mxu0
      %v2516 = vpop.f32.mrb[0].mxu0
      %v2517 = vadd.f32 0.0, %v2516
      %v2518 = vpop.f32.mrb[0].mxu0
      %2519 = vmatprep.mubr.bf16.mxu0 0
      %2520 = vmatmul.mubr.bf16.gmra.mrb[0].mxu0 %v2446
      %v2521 = vpop.f32.mrb[0].mxu0
      %v2522 = vadd.f32 0.0, %v2521
      %v2523 = vpop.f32.mrb[0].mxu0
      %v2524 = vpop.f32.mrb[0].mxu0
      %v2525 = vadd.f32 0.0, %v2524
      %v2526 = vpop.f32.mrb[0].mxu0
      %2527 = vmatprep.mubr.bf16.mxu0 0
      %2528 = vmatmul.mubr.bf16.gmra.mrb[0].mxu0 %v2449
      %v2529 = vpop.f32.mrb[0].mxu0
      %v2530 = vadd.f32 0.0, %v2529
      %v2531 = vpop.f32.mrb[0].mxu0
      %v2532 = vpop.f32.mrb[0].mxu0
      %v2533 = vadd.f32 0.0, %v2532
      %v2534 = vpop.f32.mrb[0].mxu0
      %2535 = vmatprep.mubr.bf16.mxu0 0
      %2536 = vmatmul.mubr.bf16.gmra.mrb[0].mxu0 %v2452
      %v2537 = vpop.f32.mrb[0].mxu0
      %v2538 = vadd.f32 0.0, %v2537
      %v2539 = vpop.f32.mrb[0].mxu0
      %v2540 = vpop.f32.mrb[0].mxu0
      %v2541 = vadd.f32 0.0, %v2540
      %v2542 = vpop.f32.mrb[0].mxu0
      %2543 = vmatprep.mubr.bf16.mxu0 0
      %2544 = vmatmul.mubr.bf16.gmra.mrb[0].mxu0 %v2455
      %v2545 = vpop.f32.mrb[0].mxu0
      %v2546 = vadd.f32 0.0, %v2545
      %v2547 = vpop.f32.mrb[0].mxu0
      %v2548 = vpop.f32.mrb[0].mxu0
      %v2549 = vadd.f32 0.0, %v2548
      %v2550 = vpop.f32.mrb[0].mxu0
      %2551 = vmatprep.mubr.bf16.mxu0 0
      %2552 = vmatmul.mubr.bf16.gmra.mrb[0].mxu0 %v2458
      %v2553 = vpop.f32.mrb[0].mxu0
      %v2554 = vadd.f32 0.0, %v2553
      %v2555 = vpop.f32.mrb[0].mxu0
      %v2556 = vpop.f32.mrb[0].mxu0
      %v2557 = vadd.f32 0.0, %v2556
      %v2558 = vpop.f32.mrb[0].mxu0
      %2559 = vdwg.mxu0
      %v2560 = vld [vmem:[#allocation3] sm:$0xff]
      %v2561 = vld [vmem:[#allocation3 + $0x8] sm:$0xff]
      %v2562 = vld [vmem:[#allocation3 + $0x10] sm:$0xff]
      %v2563 = vld [vmem:[#allocation3 + $0x18] sm:$0xff]
      %v2564 = vld [vmem:[#allocation3 + $0x20] sm:$0xff]
      %v2565 = vld [vmem:[#allocation3 + $0x28] sm:$0xff]
      %v2566 = vld [vmem:[#allocation3 + $0x30] sm:$0xff]
      %v2567 = vld [vmem:[#allocation3 + $0x38] sm:$0xff]
      %v2568 = vld [vmem:[#allocation3 + $0x40] sm:$0xff]
      %v2569 = vld [vmem:[#allocation3 + $0x48] sm:$0xff]
      %v2570 = vld [vmem:[#allocation3 + $0x50] sm:$0xff]
      %v2571 = vld [vmem:[#allocation3 + $0x58] sm:$0xff]
      %v2572 = vld [vmem:[#allocation3 + $0x60] sm:$0xff]
      %v2573 = vld [vmem:[#allocation3 + $0x68] sm:$0xff]
      %v2574 = vld [vmem:[#allocation3 + $0x70] sm:$0xff]
      %v2575 = vld [vmem:[#allocation3 + $0x78] sm:$0xff]
      %v2576 = vadd.f32 %v2560, %v2498
      %v2577 = vadd.f32 %v2561, %v2501
      %v2578 = vadd.f32 %v2562, %v2506
      %v2579 = vadd.f32 %v2563, %v2509
      %v2580 = vadd.f32 %v2564, %v2514
      %v2581 = vadd.f32 %v2565, %v2517
      %v2582 = vadd.f32 %v2566, %v2522
      %v2583 = vadd.f32 %v2567, %v2525
      %v2584 = vadd.f32 %v2568, %v2530
      %v2585 = vadd.f32 %v2569, %v2533
      %v2586 = vadd.f32 %v2570, %v2538
      %v2587 = vadd.f32 %v2571, %v2541
      %v2588 = vadd.f32 %v2572, %v2546
      %v2589 = vadd.f32 %v2573, %v2549
      %v2590 = vadd.f32 %v2574, %v2554
      %v2591 = vadd.f32 %v2575, %v2557
      %2592 = vst.msk [vmem:[#allocation3] sm:$0xff] %vm528, %v2576
      %2593 = vst.msk [vmem:[#allocation3 + $0x8] sm:$0xff] %vm528, %v2577
      %2594 = vst.msk [vmem:[#allocation3 + $0x10] sm:$0xff] %vm528, %v2578
      %2595 = vst.msk [vmem:[#allocation3 + $0x18] sm:$0xff] %vm528, %v2579
      %2596 = vst.msk [vmem:[#allocation3 + $0x20] sm:$0xff] %vm528, %v2580
      %2597 = vst.msk [vmem:[#allocation3 + $0x28] sm:$0xff] %vm528, %v2581
      %2598 = vst.msk [vmem:[#allocation3 + $0x30] sm:$0xff] %vm528, %v2582
      %2599 = vst.msk [vmem:[#allocation3 + $0x38] sm:$0xff] %vm528, %v2583
      %2600 = vst.msk [vmem:[#allocation3 + $0x40] sm:$0xff] %vm528, %v2584
      %2601 = vst.msk [vmem:[#allocation3 + $0x48] sm:$0xff] %vm528, %v2585
      %2602 = vst.msk [vmem:[#allocation3 + $0x50] sm:$0xff] %vm528, %v2586
      %2603 = vst.msk [vmem:[#allocation3 + $0x58] sm:$0xff] %vm528, %v2587
      %2604 = vst.msk [vmem:[#allocation3 + $0x60] sm:$0xff] %vm528, %v2588
      %2605 = vst.msk [vmem:[#allocation3 + $0x68] sm:$0xff] %vm528, %v2589
      %2606 = vst.msk [vmem:[#allocation3 + $0x70] sm:$0xff] %vm528, %v2590
      %2607 = vst.msk [vmem:[#allocation3 + $0x78] sm:$0xff] %vm528, %v2591
      %v2608 = vld [vmem:[#allocation2 + $0x10] sm:$0x80]
      %v2609 = vld [vmem:[#allocation2 + $0x18] sm:$0xff]
      %v2610 = vld [vmem:[#allocation2 + $0x20] sm:$0xff]
      %v2611 = vld [vmem:[#allocation2 + $0x28] sm:$0xff]
      %v2612 = vld [vmem:[#allocation2 + $0x30] sm:$0xff]
      %v2613 = vld [vmem:[#allocation2 + $0x38] sm:$0xff]
      %v2614 = vld [vmem:[#allocation2 + $0x40] sm:$0xff]
      %v2615 = vld [vmem:[#allocation2 + $0x48] sm:$0xff]
      %v2616 = vld [vmem:[#allocation2 + $0x50] sm:$0xff]
      %v2617 = vsel %vm1075, %v2608, 0
      %v2618 = vsel %vm1076, %v2609, 0
      %v2619 = vsel %vm1077, %v2610, 0
      %v2620 = vsel %vm1078, %v2611, 0
      %v2621 = vsel %vm1079, %v2612, 0
      %v2622 = vsel %vm1080, %v2613, 0
      %v2623 = vsel %vm1081, %v2614, 0
      %v2624 = vsel %vm1082, %v2615, 0
      %v2625 = vsel %vm1083, %v2616, 0
      %s2626 = scalar_lea.vmem %s3, 12
      %v2627 = vld [vmem:[%s2626] sm:$0x3]
      %v2629 = vshrl.u32 %v2617, 16
      %v2631 = vrot.slane %v2629, 7
      %v2633 = vshrl.u32 %v2618, 16
      %v2635 = vrot.slane %v2633, 7
      %v2636 = vshll.u32 %v2618, 16
      %v2638 = vor.u32 %v2635, %v2636
      %v2639 = vsel %vm1094, %v2631, %v2638
      %v2641 = vshrl.u32 %v2619, 16
      %v2643 = vrot.slane %v2641, 7
      %v2644 = vshll.u32 %v2619, 16
      %v2646 = vor.u32 %v2643, %v2644
      %v2647 = vsel %vm1094, %v2635, %v2646
      %v2649 = vshrl.u32 %v2620, 16
      %v2651 = vrot.slane %v2649, 7
      %v2652 = vshll.u32 %v2620, 16
      %v2654 = vor.u32 %v2651, %v2652
      %v2655 = vsel %vm1094, %v2643, %v2654
      %v2657 = vshrl.u32 %v2621, 16
      %v2659 = vrot.slane %v2657, 7
      %v2660 = vshll.u32 %v2621, 16
      %v2662 = vor.u32 %v2659, %v2660
      %v2663 = vsel %vm1094, %v2651, %v2662
      %v2665 = vshrl.u32 %v2622, 16
      %v2667 = vrot.slane %v2665, 7
      %v2668 = vshll.u32 %v2622, 16
      %v2670 = vor.u32 %v2667, %v2668
      %v2671 = vsel %vm1094, %v2659, %v2670
      %v2673 = vshrl.u32 %v2623, 16
      %v2675 = vrot.slane %v2673, 7
      %v2676 = vshll.u32 %v2623, 16
      %v2678 = vor.u32 %v2675, %v2676
      %v2679 = vsel %vm1094, %v2667, %v2678
      %v2681 = vshrl.u32 %v2624, 16
      %v2683 = vrot.slane %v2681, 7
      %v2684 = vshll.u32 %v2624, 16
      %v2686 = vor.u32 %v2683, %v2684
      %v2687 = vsel %vm1094, %v2675, %v2686
      %v2689 = vshrl.u32 %v2625, 16
      %v2691 = vrot.slane %v2689, 7
      %v2692 = vshll.u32 %v2625, 16
      %v2694 = vor.u32 %v2691, %v2692
      %v2695 = vsel %vm1094, %v2683, %v2694
      %v2697 = vsel %vm528, %v2639, 0
      %v2700 = vsel %vm528, %v2647, 0
      %v2703 = vsel %vm528, %v2655, 0
      %v2706 = vsel %vm528, %v2663, 0
      %v2709 = vsel %vm528, %v2671, 0
      %v2712 = vsel %vm528, %v2679, 0
      %v2715 = vsel %vm528, %v2687, 0
      %v2718 = vsel %vm528, %v2695, 0
      %v2721 = vsel %vm1187, %v2627, 0
      %2723 = vmatprep.subr.bf16.mxu0 0
      %2724 = vmatpush1.bf16.msra.mxu0 %v2721
      %2725 = vmatprep.subr.bf16.mxu0 0
      %2726 = vmatpush1.bf16.msra.mxu0 0
      %2727 = vmatprep.subr.bf16.mxu0 0
      %2728 = vmatpush1.bf16.msra.mxu0 0
      %2729 = vmatprep.subr.bf16.mxu0 0
      %2730 = vmatpush1.bf16.msra.mxu0 0
      %2731 = vmatprep.subr.bf16.mxu0 0
      %2732 = vmatpush1.bf16.msra.mxu0 0
      %2733 = vmatprep.subr.bf16.mxu0 0
      %2734 = vmatpush1.bf16.msra.mxu0 0
      %2735 = vmatprep.subr.bf16.mxu0 0
      %2736 = vmatpush1.bf16.msra.mxu0 0
      %2737 = vmatprep.subr.bf16.mxu0 0
      %2738 = vmatpush1.bf16.msra.mxu0 0
      %2739 = vmatprep.subr.bf16.mxu0 0
      %2740 = vmatpush1.bf16.msra.mxu0 0
      %2741 = vmatprep.subr.bf16.mxu0 0
      %2742 = vmatpush1.bf16.msra.mxu0 0
      %2743 = vmatprep.subr.bf16.mxu0 0
      %2744 = vmatpush1.bf16.msra.mxu0 0
      %2745 = vmatprep.subr.bf16.mxu0 0
      %2746 = vmatpush1.bf16.msra.mxu0 0
      %2747 = vmatprep.subr.bf16.mxu0 0
      %2748 = vmatpush1.bf16.msra.mxu0 0
      %2749 = vmatprep.subr.bf16.mxu0 0
      %2750 = vmatpush1.bf16.msra.mxu0 0
      %2751 = vmatprep.subr.bf16.mxu0 0
      %2752 = vmatpush1.bf16.msra.mxu0 0
      %2753 = vmatprep.subr.bf16.mxu0 0
      %2754 = vmatpush1.bf16.msra.mxu0 0
      %2755 = vmatprep.mubr.bf16.mxu0 0
      %2756 = vmatmul.mubr.bf16.gmra.mrb[0].mxu0 %v2697
      %v2757 = vpop.f32.mrb[0].mxu0
      %v2758 = vadd.f32 0.0, %v2757
      %v2759 = vpop.f32.mrb[0].mxu0
      %v2760 = vpop.f32.mrb[0].mxu0
      %v2761 = vadd.f32 0.0, %v2760
      %v2762 = vpop.f32.mrb[0].mxu0
      %2763 = vmatprep.mubr.bf16.mxu0 0
      %2764 = vmatmul.mubr.bf16.gmra.mrb[0].mxu0 %v2700
      %v2765 = vpop.f32.mrb[0].mxu0
      %v2766 = vadd.f32 0.0, %v2765
      %v2767 = vpop.f32.mrb[0].mxu0
      %v2768 = vpop.f32.mrb[0].mxu0
      %v2769 = vadd.f32 0.0, %v2768
      %v2770 = vpop.f32.mrb[0].mxu0
      %2771 = vmatprep.mubr.bf16.mxu0 0
      %2772 = vmatmul.mubr.bf16.gmra.mrb[0].mxu0 %v2703
      %v2773 = vpop.f32.mrb[0].mxu0
      %v2774 = vadd.f32 0.0, %v2773
      %v2775 = vpop.f32.mrb[0].mxu0
      %v2776 = vpop.f32.mrb[0].mxu0
      %v2777 = vadd.f32 0.0, %v2776
      %v2778 = vpop.f32.mrb[0].mxu0
      %2779 = vmatprep.mubr.bf16.mxu0 0
      %2780 = vmatmul.mubr.bf16.gmra.mrb[0].mxu0 %v2706
      %v2781 = vpop.f32.mrb[0].mxu0
      %v2782 = vadd.f32 0.0, %v2781
      %v2783 = vpop.f32.mrb[0].mxu0
      %v2784 = vpop.f32.mrb[0].mxu0
      %v2785 = vadd.f32 0.0, %v2784
      %v2786 = vpop.f32.mrb[0].mxu0
      %2787 = vmatprep.mubr.bf16.mxu0 0
      %2788 = vmatmul.mubr.bf16.gmra.mrb[0].mxu0 %v2709
      %v2789 = vpop.f32.mrb[0].mxu0
      %v2790 = vadd.f32 0.0, %v2789
      %v2791 = vpop.f32.mrb[0].mxu0
      %v2792 = vpop.f32.mrb[0].mxu0
      %v2793 = vadd.f32 0.0, %v2792
      %v2794 = vpop.f32.mrb[0].mxu0
      %2795 = vmatprep.mubr.bf16.mxu0 0
      %2796 = vmatmul.mubr.bf16.gmra.mrb[0].mxu0 %v2712
      %v2797 = vpop.f32.mrb[0].mxu0
      %v2798 = vadd.f32 0.0, %v2797
      %v2799 = vpop.f32.mrb[0].mxu0
      %v2800 = vpop.f32.mrb[0].mxu0
      %v2801 = vadd.f32 0.0, %v2800
      %v2802 = vpop.f32.mrb[0].mxu0
      %2803 = vmatprep.mubr.bf16.mxu0 0
      %2804 = vmatmul.mubr.bf16.gmra.mrb[0].mxu0 %v2715
      %v2805 = vpop.f32.mrb[0].mxu0
      %v2806 = vadd.f32 0.0, %v2805
      %v2807 = vpop.f32.mrb[0].mxu0
      %v2808 = vpop.f32.mrb[0].mxu0
      %v2809 = vadd.f32 0.0, %v2808
      %v2810 = vpop.f32.mrb[0].mxu0
      %2811 = vmatprep.mubr.bf16.mxu0 0
      %2812 = vmatmul.mubr.bf16.gmra.mrb[0].mxu0 %v2718
      %v2813 = vpop.f32.mrb[0].mxu0
      %v2814 = vadd.f32 0.0, %v2813
      %v2815 = vpop.f32.mrb[0].mxu0
      %v2816 = vpop.f32.mrb[0].mxu0
      %v2817 = vadd.f32 0.0, %v2816
      %v2818 = vpop.f32.mrb[0].mxu0
      %2819 = vdwg.mxu0
      %v2820 = vld [vmem:[#allocation3] sm:$0xff]
      %v2821 = vld [vmem:[#allocation3 + $0x8] sm:$0xff]
      %v2822 = vld [vmem:[#allocation3 + $0x10] sm:$0xff]
      %v2823 = vld [vmem:[#allocation3 + $0x18] sm:$0xff]
      %v2824 = vld [vmem:[#allocation3 + $0x20] sm:$0xff]
      %v2825 = vld [vmem:[#allocation3 + $0x28] sm:$0xff]
      %v2826 = vld [vmem:[#allocation3 + $0x30] sm:$0xff]
      %v2827 = vld [vmem:[#allocation3 + $0x38] sm:$0xff]
      %v2828 = vld [vmem:[#allocation3 + $0x40] sm:$0xff]
      %v2829 = vld [vmem:[#allocation3 + $0x48] sm:$0xff]
      %v2830 = vld [vmem:[#allocation3 + $0x50] sm:$0xff]
      %v2831 = vld [vmem:[#allocation3 + $0x58] sm:$0xff]
      %v2832 = vld [vmem:[#allocation3 + $0x60] sm:$0xff]
      %v2833 = vld [vmem:[#allocation3 + $0x68] sm:$0xff]
      %v2834 = vld [vmem:[#allocation3 + $0x70] sm:$0xff]
      %v2835 = vld [vmem:[#allocation3 + $0x78] sm:$0xff]
      %v2836 = vadd.f32 %v2820, %v2758
      %v2837 = vadd.f32 %v2821, %v2761
      %v2838 = vadd.f32 %v2822, %v2766
      %v2839 = vadd.f32 %v2823, %v2769
      %v2840 = vadd.f32 %v2824, %v2774
      %v2841 = vadd.f32 %v2825, %v2777
      %v2842 = vadd.f32 %v2826, %v2782
      %v2843 = vadd.f32 %v2827, %v2785
      %v2844 = vadd.f32 %v2828, %v2790
      %v2845 = vadd.f32 %v2829, %v2793
      %v2846 = vadd.f32 %v2830, %v2798
      %v2847 = vadd.f32 %v2831, %v2801
      %v2848 = vadd.f32 %v2832, %v2806
      %v2849 = vadd.f32 %v2833, %v2809
      %v2850 = vadd.f32 %v2834, %v2814
      %v2851 = vadd.f32 %v2835, %v2817
      %2852 = vst.msk [vmem:[#allocation3] sm:$0xff] %vm528, %v2836
      %2853 = vst.msk [vmem:[#allocation3 + $0x8] sm:$0xff] %vm528, %v2837
      %2854 = vst.msk [vmem:[#allocation3 + $0x10] sm:$0xff] %vm528, %v2838
      %2855 = vst.msk [vmem:[#allocation3 + $0x18] sm:$0xff] %vm528, %v2839
      %2856 = vst.msk [vmem:[#allocation3 + $0x20] sm:$0xff] %vm528, %v2840
      %2857 = vst.msk [vmem:[#allocation3 + $0x28] sm:$0xff] %vm528, %v2841
      %2858 = vst.msk [vmem:[#allocation3 + $0x30] sm:$0xff] %vm528, %v2842
      %2859 = vst.msk [vmem:[#allocation3 + $0x38] sm:$0xff] %vm528, %v2843
      %2860 = vst.msk [vmem:[#allocation3 + $0x40] sm:$0xff] %vm528, %v2844
      %2861 = vst.msk [vmem:[#allocation3 + $0x48] sm:$0xff] %vm528, %v2845
      %2862 = vst.msk [vmem:[#allocation3 + $0x50] sm:$0xff] %vm528, %v2846
      %2863 = vst.msk [vmem:[#allocation3 + $0x58] sm:$0xff] %vm528, %v2847
      %2864 = vst.msk [vmem:[#allocation3 + $0x60] sm:$0xff] %vm528, %v2848
      %2865 = vst.msk [vmem:[#allocation3 + $0x68] sm:$0xff] %vm528, %v2849
      %2866 = vst.msk [vmem:[#allocation3 + $0x70] sm:$0xff] %vm528, %v2850
      %2867 = vst.msk [vmem:[#allocation3 + $0x78] sm:$0xff] %vm528, %v2851
      %v2868 = vld [vmem:[#allocation2 + $0x18] sm:$0xff]
      %v2869 = vld [vmem:[#allocation2 + $0x20] sm:$0xff]
      %v2870 = vld [vmem:[#allocation2 + $0x28] sm:$0xff]
      %v2871 = vld [vmem:[#allocation2 + $0x30] sm:$0xff]
      %v2872 = vld [vmem:[#allocation2 + $0x38] sm:$0xff]
      %v2873 = vld [vmem:[#allocation2 + $0x40] sm:$0xff]
      %v2874 = vld [vmem:[#allocation2 + $0x48] sm:$0xff]
      %v2875 = vld [vmem:[#allocation2 + $0x50] sm:$0xff]
      %s2876 = scalar_lea.vmem %s3, 14
      %v2877 = vld [vmem:[%s2876] sm:$0x3]
      %v2879 = vsel %vm528, %v2868, 0
      %v2882 = vsel %vm528, %v2869, 0
      %v2885 = vsel %vm528, %v2870, 0
      %v2888 = vsel %vm528, %v2871, 0
      %v2891 = vsel %vm528, %v2872, 0
      %v2894 = vsel %vm528, %v2873, 0
      %v2897 = vsel %vm528, %v2874, 0
      %v2900 = vsel %vm528, %v2875, 0
      %v2903 = vsel %vm1187, %v2877, 0
      %2905 = vmatprep.subr.bf16.mxu0 0
      %2906 = vmatpush1.bf16.msra.mxu0 %v2903
      %2907 = vmatprep.subr.bf16.mxu0 0
      %2908 = vmatpush1.bf16.msra.mxu0 0
      %2909 = vmatprep.subr.bf16.mxu0 0
      %2910 = vmatpush1.bf16.msra.mxu0 0
      %2911 = vmatprep.subr.bf16.mxu0 0
      %2912 = vmatpush1.bf16.msra.mxu0 0
      %2913 = vmatprep.subr.bf16.mxu0 0
      %2914 = vmatpush1.bf16.msra.mxu0 0
      %2915 = vmatprep.subr.bf16.mxu0 0
      %2916 = vmatpush1.bf16.msra.mxu0 0
      %2917 = vmatprep.subr.bf16.mxu0 0
      %2918 = vmatpush1.bf16.msra.mxu0 0
      %2919 = vmatprep.subr.bf16.mxu0 0
      %2920 = vmatpush1.bf16.msra.mxu0 0
      %2921 = vmatprep.subr.bf16.mxu0 0
      %2922 = vmatpush1.bf16.msra.mxu0 0
      %2923 = vmatprep.subr.bf16.mxu0 0
      %2924 = vmatpush1.bf16.msra.mxu0 0
      %2925 = vmatprep.subr.bf16.mxu0 0
      %2926 = vmatpush1.bf16.msra.mxu0 0
      %2927 = vmatprep.subr.bf16.mxu0 0
      %2928 = vmatpush1.bf16.msra.mxu0 0
      %2929 = vmatprep.subr.bf16.mxu0 0
      %2930 = vmatpush1.bf16.msra.mxu0 0
      %2931 = vmatprep.subr.bf16.mxu0 0
      %2932 = vmatpush1.bf16.msra.mxu0 0
      %2933 = vmatprep.subr.bf16.mxu0 0
      %2934 = vmatpush1.bf16.msra.mxu0 0
      %2935 = vmatprep.subr.bf16.mxu0 0
      %2936 = vmatpush1.bf16.msra.mxu0 0
      %2937 = vmatprep.mubr.bf16.mxu0 0
      %2938 = vmatmul.mubr.bf16.gmra.mrb[0].mxu0 %v2879
      %v2939 = vpop.f32.mrb[0].mxu0
      %v2940 = vadd.f32 0.0, %v2939
      %v2941 = vpop.f32.mrb[0].mxu0
      %v2942 = vpop.f32.mrb[0].mxu0
      %v2943 = vadd.f32 0.0, %v2942
      %v2944 = vpop.f32.mrb[0].mxu0
      %2945 = vmatprep.mubr.bf16.mxu0 0
      %2946 = vmatmul.mubr.bf16.gmra.mrb[0].mxu0 %v2882
      %v2947 = vpop.f32.mrb[0].mxu0
      %v2948 = vadd.f32 0.0, %v2947
      %v2949 = vpop.f32.mrb[0].mxu0
      %v2950 = vpop.f32.mrb[0].mxu0
      %v2951 = vadd.f32 0.0, %v2950
      %v2952 = vpop.f32.mrb[0].mxu0
      %2953 = vmatprep.mubr.bf16.mxu0 0
      %2954 = vmatmul.mubr.bf16.gmra.mrb[0].mxu0 %v2885
      %v2955 = vpop.f32.mrb[0].mxu0
      %v2956 = vadd.f32 0.0, %v2955
      %v2957 = vpop.f32.mrb[0].mxu0
      %v2958 = vpop.f32.mrb[0].mxu0
      %v2959 = vadd.f32 0.0, %v2958
      %v2960 = vpop.f32.mrb[0].mxu0
      %2961 = vmatprep.mubr.bf16.mxu0 0
      %2962 = vmatmul.mubr.bf16.gmra.mrb[0].mxu0 %v2888
      %v2963 = vpop.f32.mrb[0].mxu0
      %v2964 = vadd.f32 0.0, %v2963
      %v2965 = vpop.f32.mrb[0].mxu0
      %v2966 = vpop.f32.mrb[0].mxu0
      %v2967 = vadd.f32 0.0, %v2966
      %v2968 = vpop.f32.mrb[0].mxu0
      %2969 = vmatprep.mubr.bf16.mxu0 0
      %2970 = vmatmul.mubr.bf16.gmra.mrb[0].mxu0 %v2891
      %v2971 = vpop.f32.mrb[0].mxu0
      %v2972 = vadd.f32 0.0, %v2971
      %v2973 = vpop.f32.mrb[0].mxu0
      %v2974 = vpop.f32.mrb[0].mxu0
      %v2975 = vadd.f32 0.0, %v2974
      %v2976 = vpop.f32.mrb[0].mxu0
      %2977 = vmatprep.mubr.bf16.mxu0 0
      %2978 = vmatmul.mubr.bf16.gmra.mrb[0].mxu0 %v2894
      %v2979 = vpop.f32.mrb[0].mxu0
      %v2980 = vadd.f32 0.0, %v2979
      %v2981 = vpop.f32.mrb[0].mxu0
      %v2982 = vpop.f32.mrb[0].mxu0
      %v2983 = vadd.f32 0.0, %v2982
      %v2984 = vpop.f32.mrb[0].mxu0
      %2985 = vmatprep.mubr.bf16.mxu0 0
      %2986 = vmatmul.mubr.bf16.gmra.mrb[0].mxu0 %v2897
      %v2987 = vpop.f32.mrb[0].mxu0
      %v2988 = vadd.f32 0.0, %v2987
      %v2989 = vpop.f32.mrb[0].mxu0
      %v2990 = vpop.f32.mrb[0].mxu0
      %v2991 = vadd.f32 0.0, %v2990
      %v2992 = vpop.f32.mrb[0].mxu0
      %2993 = vmatprep.mubr.bf16.mxu0 0
      %2994 = vmatmul.mubr.bf16.gmra.mrb[0].mxu0 %v2900
      %v2995 = vpop.f32.mrb[0].mxu0
      %v2996 = vadd.f32 0.0, %v2995
      %v2997 = vpop.f32.mrb[0].mxu0
      %v2998 = vpop.f32.mrb[0].mxu0
      %v2999 = vadd.f32 0.0, %v2998
      %v3000 = vpop.f32.mrb[0].mxu0
      %3001 = vdwg.mxu0
      %v3002 = vld [vmem:[#allocation3] sm:$0xff]
      %v3003 = vld [vmem:[#allocation3 + $0x8] sm:$0xff]
      %v3004 = vld [vmem:[#allocation3 + $0x10] sm:$0xff]
      %v3005 = vld [vmem:[#allocation3 + $0x18] sm:$0xff]
      %v3006 = vld [vmem:[#allocation3 + $0x20] sm:$0xff]
      %v3007 = vld [vmem:[#allocation3 + $0x28] sm:$0xff]
      %v3008 = vld [vmem:[#allocation3 + $0x30] sm:$0xff]
      %v3009 = vld [vmem:[#allocation3 + $0x38] sm:$0xff]
      %v3010 = vld [vmem:[#allocation3 + $0x40] sm:$0xff]
      %v3011 = vld [vmem:[#allocation3 + $0x48] sm:$0xff]
      %v3012 = vld [vmem:[#allocation3 + $0x50] sm:$0xff]
      %v3013 = vld [vmem:[#allocation3 + $0x58] sm:$0xff]
      %v3014 = vld [vmem:[#allocation3 + $0x60] sm:$0xff]
      %v3015 = vld [vmem:[#allocation3 + $0x68] sm:$0xff]
      %v3016 = vld [vmem:[#allocation3 + $0x70] sm:$0xff]
      %v3017 = vld [vmem:[#allocation3 + $0x78] sm:$0xff]
      %v3018 = vadd.f32 %v3002, %v2940
      %v3019 = vadd.f32 %v3003, %v2943
      %v3020 = vadd.f32 %v3004, %v2948
      %v3021 = vadd.f32 %v3005, %v2951
      %v3022 = vadd.f32 %v3006, %v2956
      %v3023 = vadd.f32 %v3007, %v2959
      %v3024 = vadd.f32 %v3008, %v2964
      %v3025 = vadd.f32 %v3009, %v2967
      %v3026 = vadd.f32 %v3010, %v2972
      %v3027 = vadd.f32 %v3011, %v2975
      %v3028 = vadd.f32 %v3012, %v2980
      %v3029 = vadd.f32 %v3013, %v2983
      %v3030 = vadd.f32 %v3014, %v2988
      %v3031 = vadd.f32 %v3015, %v2991
      %v3032 = vadd.f32 %v3016, %v2996
      %v3033 = vadd.f32 %v3017, %v2999
      %3034 = vst.msk [vmem:[#allocation3] sm:$0xff] %vm528, %v3018
      %3035 = vst.msk [vmem:[#allocation3 + $0x8] sm:$0xff] %vm528, %v3019
      %3036 = vst.msk [vmem:[#allocation3 + $0x10] sm:$0xff] %vm528, %v3020
      %3037 = vst.msk [vmem:[#allocation3 + $0x18] sm:$0xff] %vm528, %v3021
      %3038 = vst.msk [vmem:[#allocation3 + $0x20] sm:$0xff] %vm528, %v3022
      %3039 = vst.msk [vmem:[#allocation3 + $0x28] sm:$0xff] %vm528, %v3023
      %3040 = vst.msk [vmem:[#allocation3 + $0x30] sm:$0xff] %vm528, %v3024
      %3041 = vst.msk [vmem:[#allocation3 + $0x38] sm:$0xff] %vm528, %v3025
      %3042 = vst.msk [vmem:[#allocation3 + $0x40] sm:$0xff] %vm528, %v3026
      %3043 = vst.msk [vmem:[#allocation3 + $0x48] sm:$0xff] %vm528, %v3027
      %3044 = vst.msk [vmem:[#allocation3 + $0x50] sm:$0xff] %vm528, %v3028
      %3045 = vst.msk [vmem:[#allocation3 + $0x58] sm:$0xff] %vm528, %v3029
      %3046 = vst.msk [vmem:[#allocation3 + $0x60] sm:$0xff] %vm528, %v3030
      %3047 = vst.msk [vmem:[#allocation3 + $0x68] sm:$0xff] %vm528, %v3031
      %3048 = vst.msk [vmem:[#allocation3 + $0x70] sm:$0xff] %vm528, %v3032
      %3049 = vst.msk [vmem:[#allocation3 + $0x78] sm:$0xff] %vm528, %v3033
      %v3050 = vld [vmem:[#allocation2 + $0x18] sm:$0xff]
      %v3051 = vld [vmem:[#allocation2 + $0x20] sm:$0xff]
      %v3052 = vld [vmem:[#allocation2 + $0x28] sm:$0xff]
      %v3053 = vld [vmem:[#allocation2 + $0x30] sm:$0xff]
      %v3054 = vld [vmem:[#allocation2 + $0x38] sm:$0xff]
      %v3055 = vld [vmem:[#allocation2 + $0x40] sm:$0xff]
      %v3056 = vld [vmem:[#allocation2 + $0x48] sm:$0xff]
      %v3057 = vld [vmem:[#allocation2 + $0x50] sm:$0xff]
      %v3058 = vld [vmem:[#allocation2 + $0x58] sm:$0x1]
      %v3059 = vsel %vm1646, %v3050, 0
      %v3060 = vsel %vm1647, %v3051, 0
      %v3061 = vsel %vm1648, %v3052, 0
      %v3062 = vsel %vm1649, %v3053, 0
      %v3063 = vsel %vm1650, %v3054, 0
      %v3064 = vsel %vm1651, %v3055, 0
      %v3065 = vsel %vm1652, %v3056, 0
      %v3066 = vsel %vm1653, %v3057, 0
      %v3067 = vsel %vm1654, %v3058, 0
      %s3068 = scalar_lea.vmem %s3, 16
      %v3069 = vld [vmem:[%s3068] sm:$0x3]
      %v3071 = vshrl.u32 %v3059, 16
      %v3073 = vshll.u32 %v3059, 16
      %v3075 = vrot.slane %v3073, 1
      %v3076 = vor.u32 %v3071, %v3075
      %v3078 = vshll.u32 %v3060, 16
      %v3080 = vrot.slane %v3078, 1
      %v3081 = vsel %vm1011, %v3076, %v3080
      %v3082 = vshrl.u32 %v3060, 16
      %v3084 = vor.u32 %v3082, %v3080
      %v3086 = vshll.u32 %v3061, 16
      %v3088 = vrot.slane %v3086, 1
      %v3089 = vsel %vm1011, %v3084, %v3088
      %v3090 = vshrl.u32 %v3061, 16
      %v3092 = vor.u32 %v3090, %v3088
      %v3094 = vshll.u32 %v3062, 16
      %v3096 = vrot.slane %v3094, 1
      %v3097 = vsel %vm1011, %v3092, %v3096
      %v3098 = vshrl.u32 %v3062, 16
      %v3100 = vor.u32 %v3098, %v3096
      %v3102 = vshll.u32 %v3063, 16
      %v3104 = vrot.slane %v3102, 1
      %v3105 = vsel %vm1011, %v3100, %v3104
      %v3106 = vshrl.u32 %v3063, 16
      %v3108 = vor.u32 %v3106, %v3104
      %v3110 = vshll.u32 %v3064, 16
      %v3112 = vrot.slane %v3110, 1
      %v3113 = vsel %vm1011, %v3108, %v3112
      %v3114 = vshrl.u32 %v3064, 16
      %v3116 = vor.u32 %v3114, %v3112
      %v3118 = vshll.u32 %v3065, 16
      %v3120 = vrot.slane %v3118, 1
      %v3121 = vsel %vm1011, %v3116, %v3120
      %v3122 = vshrl.u32 %v3065, 16
      %v3124 = vor.u32 %v3122, %v3120
      %v3126 = vshll.u32 %v3066, 16
      %v3128 = vrot.slane %v3126, 1
      %v3129 = vsel %vm1011, %v3124, %v3128
      %v3130 = vshrl.u32 %v3066, 16
      %v3132 = vor.u32 %v3130, %v3128
      %v3134 = vshll.u32 %v3067, 16
      %v3136 = vrot.slane %v3134, 1
      %v3137 = vsel %vm1011, %v3132, %v3136
      %v3139 = vsel %vm528, %v3081, 0
      %v3142 = vsel %vm528, %v3089, 0
      %v3145 = vsel %vm528, %v3097, 0
      %v3148 = vsel %vm528, %v3105, 0
      %v3151 = vsel %vm528, %v3113, 0
      %v3154 = vsel %vm528, %v3121, 0
      %v3157 = vsel %vm528, %v3129, 0
      %v3160 = vsel %vm528, %v3137, 0
      %v3163 = vsel %vm1187, %v3069, 0
      %3165 = vmatprep.subr.bf16.mxu0 0
      %3166 = vmatpush1.bf16.msra.mxu0 %v3163
      %3167 = vmatprep.subr.bf16.mxu0 0
      %3168 = vmatpush1.bf16.msra.mxu0 0
      %3169 = vmatprep.subr.bf16.mxu0 0
      %3170 = vmatpush1.bf16.msra.mxu0 0
      %3171 = vmatprep.subr.bf16.mxu0 0
      %3172 = vmatpush1.bf16.msra.mxu0 0
      %3173 = vmatprep.subr.bf16.mxu0 0
      %3174 = vmatpush1.bf16.msra.mxu0 0
      %3175 = vmatprep.subr.bf16.mxu0 0
      %3176 = vmatpush1.bf16.msra.mxu0 0
      %3177 = vmatprep.subr.bf16.mxu0 0
      %3178 = vmatpush1.bf16.msra.mxu0 0
      %3179 = vmatprep.subr.bf16.mxu0 0
      %3180 = vmatpush1.bf16.msra.mxu0 0
      %3181 = vmatprep.subr.bf16.mxu0 0
      %3182 = vmatpush1.bf16.msra.mxu0 0
      %3183 = vmatprep.subr.bf16.mxu0 0
      %3184 = vmatpush1.bf16.msra.mxu0 0
      %3185 = vmatprep.subr.bf16.mxu0 0
      %3186 = vmatpush1.bf16.msra.mxu0 0
      %3187 = vmatprep.subr.bf16.mxu0 0
      %3188 = vmatpush1.bf16.msra.mxu0 0
      %3189 = vmatprep.subr.bf16.mxu0 0
      %3190 = vmatpush1.bf16.msra.mxu0 0
      %3191 = vmatprep.subr.bf16.mxu0 0
      %3192 = vmatpush1.bf16.msra.mxu0 0
      %3193 = vmatprep.subr.bf16.mxu0 0
      %3194 = vmatpush1.bf16.msra.mxu0 0
      %3195 = vmatprep.subr.bf16.mxu0 0
      %3196 = vmatpush1.bf16.msra.mxu0 0
      %3197 = vmatprep.mubr.bf16.mxu0 0
      %3198 = vmatmul.mubr.bf16.gmra.mrb[0].mxu0 %v3139
      %v3199 = vpop.f32.mrb[0].mxu0
      %v3200 = vadd.f32 0.0, %v3199
      %v3201 = vpop.f32.mrb[0].mxu0
      %v3202 = vpop.f32.mrb[0].mxu0
      %v3203 = vadd.f32 0.0, %v3202
      %v3204 = vpop.f32.mrb[0].mxu0
      %3205 = vmatprep.mubr.bf16.mxu0 0
      %3206 = vmatmul.mubr.bf16.gmra.mrb[0].mxu0 %v3142
      %v3207 = vpop.f32.mrb[0].mxu0
      %v3208 = vadd.f32 0.0, %v3207
      %v3209 = vpop.f32.mrb[0].mxu0
      %v3210 = vpop.f32.mrb[0].mxu0
      %v3211 = vadd.f32 0.0, %v3210
      %v3212 = vpop.f32.mrb[0].mxu0
      %3213 = vmatprep.mubr.bf16.mxu0 0
      %3214 = vmatmul.mubr.bf16.gmra.mrb[0].mxu0 %v3145
      %v3215 = vpop.f32.mrb[0].mxu0
      %v3216 = vadd.f32 0.0, %v3215
      %v3217 = vpop.f32.mrb[0].mxu0
      %v3218 = vpop.f32.mrb[0].mxu0
      %v3219 = vadd.f32 0.0, %v3218
      %v3220 = vpop.f32.mrb[0].mxu0
      %3221 = vmatprep.mubr.bf16.mxu0 0
      %3222 = vmatmul.mubr.bf16.gmra.mrb[0].mxu0 %v3148
      %v3223 = vpop.f32.mrb[0].mxu0
      %v3224 = vadd.f32 0.0, %v3223
      %v3225 = vpop.f32.mrb[0].mxu0
      %v3226 = vpop.f32.mrb[0].mxu0
      %v3227 = vadd.f32 0.0, %v3226
      %v3228 = vpop.f32.mrb[0].mxu0
      %3229 = vmatprep.mubr.bf16.mxu0 0
      %3230 = vmatmul.mubr.bf16.gmra.mrb[0].mxu0 %v3151
      %v3231 = vpop.f32.mrb[0].mxu0
      %v3232 = vadd.f32 0.0, %v3231
      %v3233 = vpop.f32.mrb[0].mxu0
      %v3234 = vpop.f32.mrb[0].mxu0
      %v3235 = vadd.f32 0.0, %v3234
      %v3236 = vpop.f32.mrb[0].mxu0
      %3237 = vmatprep.mubr.bf16.mxu0 0
      %3238 = vmatmul.mubr.bf16.gmra.mrb[0].mxu0 %v3154
      %v3239 = vpop.f32.mrb[0].mxu0
      %v3240 = vadd.f32 0.0, %v3239
      %v3241 = vpop.f32.mrb[0].mxu0
      %v3242 = vpop.f32.mrb[0].mxu0
      %v3243 = vadd.f32 0.0, %v3242
      %v3244 = vpop.f32.mrb[0].mxu0
      %3245 = vmatprep.mubr.bf16.mxu0 0
      %3246 = vmatmul.mubr.bf16.gmra.mrb[0].mxu0 %v3157
      %v3247 = vpop.f32.mrb[0].mxu0
      %v3248 = vadd.f32 0.0, %v3247
      %v3249 = vpop.f32.mrb[0].mxu0
      %v3250 = vpop.f32.mrb[0].mxu0
      %v3251 = vadd.f32 0.0, %v3250
      %v3252 = vpop.f32.mrb[0].mxu0
      %3253 = vmatprep.mubr.bf16.mxu0 0
      %3254 = vmatmul.mubr.bf16.gmra.mrb[0].mxu0 %v3160
      %v3255 = vpop.f32.mrb[0].mxu0
      %v3256 = vadd.f32 0.0, %v3255
      %v3257 = vpop.f32.mrb[0].mxu0
      %v3258 = vpop.f32.mrb[0].mxu0
      %v3259 = vadd.f32 0.0, %v3258
      %v3260 = vpop.f32.mrb[0].mxu0
      %3261 = vdwg.mxu0
      %v3262 = vld [vmem:[#allocation3] sm:$0xff]
      %v3263 = vld [vmem:[#allocation3 + $0x8] sm:$0xff]
      %v3264 = vld [vmem:[#allocation3 + $0x10] sm:$0xff]
      %v3265 = vld [vmem:[#allocation3 + $0x18] sm:$0xff]
      %v3266 = vld [vmem:[#allocation3 + $0x20] sm:$0xff]
      %v3267 = vld [vmem:[#allocation3 + $0x28] sm:$0xff]
      %v3268 = vld [vmem:[#allocation3 + $0x30] sm:$0xff]
      %v3269 = vld [vmem:[#allocation3 + $0x38] sm:$0xff]
      %v3270 = vld [vmem:[#allocation3 + $0x40] sm:$0xff]
      %v3271 = vld [vmem:[#allocation3 + $0x48] sm:$0xff]
      %v3272 = vld [vmem:[#allocation3 + $0x50] sm:$0xff]
      %v3273 = vld [vmem:[#allocation3 + $0x58] sm:$0xff]
      %v3274 = vld [vmem:[#allocation3 + $0x60] sm:$0xff]
      %v3275 = vld [vmem:[#allocation3 + $0x68] sm:$0xff]
      %v3276 = vld [vmem:[#allocation3 + $0x70] sm:$0xff]
      %v3277 = vld [vmem:[#allocation3 + $0x78] sm:$0xff]
      %v3278 = vadd.f32 %v3262, %v3200
      %v3279 = vadd.f32 %v3263, %v3203
      %v3280 = vadd.f32 %v3264, %v3208
      %v3281 = vadd.f32 %v3265, %v3211
      %v3282 = vadd.f32 %v3266, %v3216
      %v3283 = vadd.f32 %v3267, %v3219
      %v3284 = vadd.f32 %v3268, %v3224
      %v3285 = vadd.f32 %v3269, %v3227
      %v3286 = vadd.f32 %v3270, %v3232
      %v3287 = vadd.f32 %v3271, %v3235
      %v3288 = vadd.f32 %v3272, %v3240
      %v3289 = vadd.f32 %v3273, %v3243
      %v3290 = vadd.f32 %v3274, %v3248
      %v3291 = vadd.f32 %v3275, %v3251
      %v3292 = vadd.f32 %v3276, %v3256
      %v3293 = vadd.f32 %v3277, %v3259
      %3294 = vst.msk [vmem:[#allocation3] sm:$0xff] %vm528, %v3278
      %3295 = vst.msk [vmem:[#allocation3 + $0x8] sm:$0xff] %vm528, %v3279
      %3296 = vst.msk [vmem:[#allocation3 + $0x10] sm:$0xff] %vm528, %v3280
      %3297 = vst.msk [vmem:[#allocation3 + $0x18] sm:$0xff] %vm528, %v3281
      %3298 = vst.msk [vmem:[#allocation3 + $0x20] sm:$0xff] %vm528, %v3282
      %3299 = vst.msk [vmem:[#allocation3 + $0x28] sm:$0xff] %vm528, %v3283
      %3300 = vst.msk [vmem:[#allocation3 + $0x30] sm:$0xff] %vm528, %v3284
      %3301 = vst.msk [vmem:[#allocation3 + $0x38] sm:$0xff] %vm528, %v3285
      %3302 = vst.msk [vmem:[#allocation3 + $0x40] sm:$0xff] %vm528, %v3286
      %3303 = vst.msk [vmem:[#allocation3 + $0x48] sm:$0xff] %vm528, %v3287
      %3304 = vst.msk [vmem:[#allocation3 + $0x50] sm:$0xff] %vm528, %v3288
      %3305 = vst.msk [vmem:[#allocation3 + $0x58] sm:$0xff] %vm528, %v3289
      %3306 = vst.msk [vmem:[#allocation3 + $0x60] sm:$0xff] %vm528, %v3290
      %3307 = vst.msk [vmem:[#allocation3 + $0x68] sm:$0xff] %vm528, %v3291
      %3308 = vst.msk [vmem:[#allocation3 + $0x70] sm:$0xff] %vm528, %v3292
      %3309 = vst.msk [vmem:[#allocation3 + $0x78] sm:$0xff] %vm528, %v3293
      %v3310 = vld [vmem:[#allocation3] sm:$0xff]
      %v3311 = vld [vmem:[#allocation3 + $0x8] sm:$0xff]
      %v3312 = vld [vmem:[#allocation3 + $0x10] sm:$0xff]
      %v3313 = vld [vmem:[#allocation3 + $0x18] sm:$0xff]
      %v3314 = vld [vmem:[#allocation3 + $0x20] sm:$0xff]
      %v3315 = vld [vmem:[#allocation3 + $0x28] sm:$0xff]
      %v3316 = vld [vmem:[#allocation3 + $0x30] sm:$0xff]
      %v3317 = vld [vmem:[#allocation3 + $0x38] sm:$0xff]
      %v3318 = vld [vmem:[#allocation3 + $0x40] sm:$0xff]
      %v3319 = vld [vmem:[#allocation3 + $0x48] sm:$0xff]
      %v3320 = vld [vmem:[#allocation3 + $0x50] sm:$0xff]
      %v3321 = vld [vmem:[#allocation3 + $0x58] sm:$0xff]
      %v3322 = vld [vmem:[#allocation3 + $0x60] sm:$0xff]
      %v3323 = vld [vmem:[#allocation3 + $0x68] sm:$0xff]
      %v3324 = vld [vmem:[#allocation3 + $0x70] sm:$0xff]
      %v3325 = vld [vmem:[#allocation3 + $0x78] sm:$0xff]
      %v3326 = vld [vmem:[%s4] sm:$0x1]
      %v3328 = vlaneseq
      %v3329 = vshrl.u32 %v3328, 7
      %v3330 = vsub.s32 0, %v3329
      %v3331 = vrot.slane %v3326, %v3330
      %v3333 = vadd.f32 %v3310, %v3331
      %v3334 = vadd.f32 %v3311, %v3331
      %v3335 = vadd.f32 %v3312, %v3331
      %v3336 = vadd.f32 %v3313, %v3331
      %v3337 = vadd.f32 %v3314, %v3331
      %v3338 = vadd.f32 %v3315, %v3331
      %v3339 = vadd.f32 %v3316, %v3331
      %v3340 = vadd.f32 %v3317, %v3331
      %v3341 = vadd.f32 %v3318, %v3331
      %v3342 = vadd.f32 %v3319, %v3331
      %v3343 = vadd.f32 %v3320, %v3331
      %v3344 = vadd.f32 %v3321, %v3331
      %v3345 = vadd.f32 %v3322, %v3331
      %v3346 = vadd.f32 %v3323, %v3331
      %v3347 = vadd.f32 %v3324, %v3331
      %v3348 = vadd.f32 %v3325, %v3331
      %v3349 = vmax.f32 %v3333, 0.0
      %v3350 = vmax.f32 %v3334, 0.0
      %v3351 = vmax.f32 %v3335, 0.0
      %v3352 = vmax.f32 %v3336, 0.0
      %v3353 = vmax.f32 %v3337, 0.0
      %v3354 = vmax.f32 %v3338, 0.0
      %v3355 = vmax.f32 %v3339, 0.0
      %v3356 = vmax.f32 %v3340, 0.0
      %v3357 = vmax.f32 %v3341, 0.0
      %v3358 = vmax.f32 %v3342, 0.0
      %v3359 = vmax.f32 %v3343, 0.0
      %v3360 = vmax.f32 %v3344, 0.0
      %v3361 = vmax.f32 %v3345, 0.0
      %v3362 = vmax.f32 %v3346, 0.0
      %v3363 = vmax.f32 %v3347, 0.0
      %v3364 = vmax.f32 %v3348, 0.0
      %v3365 = vpack.c.bf16 %v3350, %v3349
      %v3366 = vpack.c.bf16 %v3352, %v3351
      %v3367 = vpack.c.bf16 %v3354, %v3353
      %v3368 = vpack.c.bf16 %v3356, %v3355
      %v3369 = vpack.c.bf16 %v3358, %v3357
      %v3370 = vpack.c.bf16 %v3360, %v3359
      %v3371 = vpack.c.bf16 %v3362, %v3361
      %v3372 = vpack.c.bf16 %v3364, %v3363
      %v3373 = vld [vmem:[%s5] sm:$0x3]
      %v3374 = vld [vmem:[%s313] sm:$0xf]
      %v3375 = vld [vmem:[%s313 + $0x4] sm:$0xf]
      %v3376 = vld [vmem:[%s313 + $0x8] sm:$0xf]
      %v3377 = vld [vmem:[%s313 + $0xc] sm:$0xf]
      %v3378 = vld [vmem:[%s313 + $0x10] sm:$0xf]
      %v3379 = vld [vmem:[%s313 + $0x14] sm:$0xf]
      %v3380 = vld [vmem:[%s313 + $0x18] sm:$0xf]
      %v3381 = vld [vmem:[%s313 + $0x1c] sm:$0xf]
      %v3382 = vld [vmem:[%s313 + $0x20] sm:$0xf]
      %v3383 = vld [vmem:[%s313 + $0x24] sm:$0xf]
      %v3384 = vld [vmem:[%s313 + $0x28] sm:$0xf]
      %v3385 = vld [vmem:[%s313 + $0x2c] sm:$0xf]
      %v3386 = vld [vmem:[%s313 + $0x30] sm:$0xf]
      %v3387 = vld [vmem:[%s313 + $0x34] sm:$0xf]
      %v3388 = vld [vmem:[%s313 + $0x38] sm:$0xf]
      %v3389 = vld [vmem:[%s313 + $0x3c] sm:$0xf]
      %v3390 = vunpack.c.l.bf16 %v3374
      %v3391 = vunpack.c.l.bf16 %v3375
      %v3392 = vunpack.c.l.bf16 %v3376
      %v3393 = vunpack.c.l.bf16 %v3377
      %v3394 = vunpack.c.l.bf16 %v3378
      %v3395 = vunpack.c.l.bf16 %v3379
      %v3396 = vunpack.c.l.bf16 %v3380
      %v3397 = vunpack.c.l.bf16 %v3381
      %v3398 = vunpack.c.l.bf16 %v3382
      %v3399 = vunpack.c.l.bf16 %v3383
      %v3400 = vunpack.c.l.bf16 %v3384
      %v3401 = vunpack.c.l.bf16 %v3385
      %v3402 = vunpack.c.l.bf16 %v3386
      %v3403 = vunpack.c.l.bf16 %v3387
      %v3404 = vunpack.c.l.bf16 %v3388
      %v3405 = vunpack.c.l.bf16 %v3389
      %v3406 = vld [vmem:[%s6] sm:$0x1]
      %v3408 = vlaneseq
      %v3409 = vshrl.u32 %v3408, 7
      %v3410 = vsub.s32 0, %v3409
      %v3411 = vrot.slane %v3406, %v3410
      %v3414 = vsel %vm528, %v3365, 0
      %v3417 = vsel %vm528, %v3366, 0
      %v3420 = vsel %vm528, %v3367, 0
      %v3423 = vsel %vm528, %v3368, 0
      %v3426 = vsel %vm528, %v3369, 0
      %v3429 = vsel %vm528, %v3370, 0
      %v3432 = vsel %vm528, %v3371, 0
      %v3435 = vsel %vm528, %v3372, 0
      %v3438 = vsel %vm1187, %v3373, 0
      %3440 = vmatprep.subr.bf16.mxu0 0
      %3441 = vmatpush1.bf16.msra.mxu0 %v3438
      %3442 = vmatprep.subr.bf16.mxu0 0
      %3443 = vmatpush1.bf16.msra.mxu0 0
      %3444 = vmatprep.subr.bf16.mxu0 0
      %3445 = vmatpush1.bf16.msra.mxu0 0
      %3446 = vmatprep.subr.bf16.mxu0 0
      %3447 = vmatpush1.bf16.msra.mxu0 0
      %3448 = vmatprep.subr.bf16.mxu0 0
      %3449 = vmatpush1.bf16.msra.mxu0 0
      %3450 = vmatprep.subr.bf16.mxu0 0
      %3451 = vmatpush1.bf16.msra.mxu0 0
      %3452 = vmatprep.subr.bf16.mxu0 0
      %3453 = vmatpush1.bf16.msra.mxu0 0
      %3454 = vmatprep.subr.bf16.mxu0 0
      %3455 = vmatpush1.bf16.msra.mxu0 0
      %3456 = vmatprep.subr.bf16.mxu0 0
      %3457 = vmatpush1.bf16.msra.mxu0 0
      %3458 = vmatprep.subr.bf16.mxu0 0
      %3459 = vmatpush1.bf16.msra.mxu0 0
      %3460 = vmatprep.subr.bf16.mxu0 0
      %3461 = vmatpush1.bf16.msra.mxu0 0
      %3462 = vmatprep.subr.bf16.mxu0 0
      %3463 = vmatpush1.bf16.msra.mxu0 0
      %3464 = vmatprep.subr.bf16.mxu0 0
      %3465 = vmatpush1.bf16.msra.mxu0 0
      %3466 = vmatprep.subr.bf16.mxu0 0
      %3467 = vmatpush1.bf16.msra.mxu0 0
      %3468 = vmatprep.subr.bf16.mxu0 0
      %3469 = vmatpush1.bf16.msra.mxu0 0
      %3470 = vmatprep.subr.bf16.mxu0 0
      %3471 = vmatpush1.bf16.msra.mxu0 0
      %3472 = vmatprep.mubr.bf16.mxu0 0
      %3473 = vmatmul.mubr.bf16.gmra.mrb[0].mxu0 %v3414
      %v3474 = vpop.f32.mrb[0].mxu0
      %v3475 = vadd.f32 %v3411, %v3474
      %v3476 = vpop.f32.mrb[0].mxu0
      %v3477 = vpop.f32.mrb[0].mxu0
      %v3478 = vadd.f32 %v3411, %v3477
      %v3479 = vpop.f32.mrb[0].mxu0
      %3480 = vmatprep.mubr.bf16.mxu0 0
      %3481 = vmatmul.mubr.bf16.gmra.mrb[0].mxu0 %v3417
      %v3482 = vpop.f32.mrb[0].mxu0
      %v3483 = vadd.f32 %v3411, %v3482
      %v3484 = vpop.f32.mrb[0].mxu0
      %v3485 = vpop.f32.mrb[0].mxu0
      %v3486 = vadd.f32 %v3411, %v3485
      %v3487 = vpop.f32.mrb[0].mxu0
      %3488 = vmatprep.mubr.bf16.mxu0 0
      %3489 = vmatmul.mubr.bf16.gmra.mrb[0].mxu0 %v3420
      %v3490 = vpop.f32.mrb[0].mxu0
      %v3491 = vadd.f32 %v3411, %v3490
      %v3492 = vpop.f32.mrb[0].mxu0
      %v3493 = vpop.f32.mrb[0].mxu0
      %v3494 = vadd.f32 %v3411, %v3493
      %v3495 = vpop.f32.mrb[0].mxu0
      %3496 = vmatprep.mubr.bf16.mxu0 0
      %3497 = vmatmul.mubr.bf16.gmra.mrb[0].mxu0 %v3423
      %v3498 = vpop.f32.mrb[0].mxu0
      %v3499 = vadd.f32 %v3411, %v3498
      %v3500 = vpop.f32.mrb[0].mxu0
      %v3501 = vpop.f32.mrb[0].mxu0
      %v3502 = vadd.f32 %v3411, %v3501
      %v3503 = vpop.f32.mrb[0].mxu0
      %3504 = vmatprep.mubr.bf16.mxu0 0
      %3505 = vmatmul.mubr.bf16.gmra.mrb[0].mxu0 %v3426
      %v3506 = vpop.f32.mrb[0].mxu0
      %v3507 = vadd.f32 %v3411, %v3506
      %v3508 = vpop.f32.mrb[0].mxu0
      %v3509 = vpop.f32.mrb[0].mxu0
      %v3510 = vadd.f32 %v3411, %v3509
      %v3511 = vpop.f32.mrb[0].mxu0
      %3512 = vmatprep.mubr.bf16.mxu0 0
      %3513 = vmatmul.mubr.bf16.gmra.mrb[0].mxu0 %v3429
      %v3514 = vpop.f32.mrb[0].mxu0
      %v3515 = vadd.f32 %v3411, %v3514
      %v3516 = vpop.f32.mrb[0].mxu0
      %v3517 = vpop.f32.mrb[0].mxu0
      %v3518 = vadd.f32 %v3411, %v3517
      %v3519 = vpop.f32.mrb[0].mxu0
      %3520 = vmatprep.mubr.bf16.mxu0 0
      %3521 = vmatmul.mubr.bf16.gmra.mrb[0].mxu0 %v3432
      %v3522 = vpop.f32.mrb[0].mxu0
      %v3523 = vadd.f32 %v3411, %v3522
      %v3524 = vpop.f32.mrb[0].mxu0
      %v3525 = vpop.f32.mrb[0].mxu0
      %v3526 = vadd.f32 %v3411, %v3525
      %v3527 = vpop.f32.mrb[0].mxu0
      %3528 = vmatprep.mubr.bf16.mxu0 0
      %3529 = vmatmul.mubr.bf16.gmra.mrb[0].mxu0 %v3435
      %v3530 = vpop.f32.mrb[0].mxu0
      %v3531 = vadd.f32 %v3411, %v3530
      %v3532 = vpop.f32.mrb[0].mxu0
      %v3533 = vpop.f32.mrb[0].mxu0
      %v3534 = vadd.f32 %v3411, %v3533
      %v3535 = vpop.f32.mrb[0].mxu0
      %3536 = vdwg.mxu0
      %v3537 = vadd.f32 %v3475, %v3390
      %v3538 = vadd.f32 %v3478, %v3391
      %v3539 = vadd.f32 %v3483, %v3392
      %v3540 = vadd.f32 %v3486, %v3393
      %v3541 = vadd.f32 %v3491, %v3394
      %v3542 = vadd.f32 %v3494, %v3395
      %v3543 = vadd.f32 %v3499, %v3396
      %v3544 = vadd.f32 %v3502, %v3397
      %v3545 = vadd.f32 %v3507, %v3398
      %v3546 = vadd.f32 %v3510, %v3399
      %v3547 = vadd.f32 %v3515, %v3400
      %v3548 = vadd.f32 %v3518, %v3401
      %v3549 = vadd.f32 %v3523, %v3402
      %v3550 = vadd.f32 %v3526, %v3403
      %v3551 = vadd.f32 %v3531, %v3404
      %v3552 = vadd.f32 %v3534, %v3405
      %v3553 = vmax.f32 %v3537, 0.0
      %v3554 = vmax.f32 %v3538, 0.0
      %v3555 = vmax.f32 %v3539, 0.0
      %v3556 = vmax.f32 %v3540, 0.0
      %v3557 = vmax.f32 %v3541, 0.0
      %v3558 = vmax.f32 %v3542, 0.0
      %v3559 = vmax.f32 %v3543, 0.0
      %v3560 = vmax.f32 %v3544, 0.0
      %v3561 = vmax.f32 %v3545, 0.0
      %v3562 = vmax.f32 %v3546, 0.0
      %v3563 = vmax.f32 %v3547, 0.0
      %v3564 = vmax.f32 %v3548, 0.0
      %v3565 = vmax.f32 %v3549, 0.0
      %v3566 = vmax.f32 %v3550, 0.0
      %v3567 = vmax.f32 %v3551, 0.0
      %v3568 = vmax.f32 %v3552, 0.0
      %v3569 = vpack.c.bf16 %v3554, %v3553
      %v3570 = vpack.c.bf16 %v3556, %v3555
      %v3571 = vpack.c.bf16 %v3558, %v3557
      %v3572 = vpack.c.bf16 %v3560, %v3559
      %v3573 = vpack.c.bf16 %v3562, %v3561
      %v3574 = vpack.c.bf16 %v3564, %v3563
      %v3575 = vpack.c.bf16 %v3566, %v3565
      %v3576 = vpack.c.bf16 %v3568, %v3567
      %v3585 = vunpack.c.l.b16 %v3569
      %v3586 = vunpack.c.h.b16 %v3569
      %v3587 = vunpack.c.l.b16 %v3570
      %v3588 = vunpack.c.h.b16 %v3570
      %v3589 = vunpack.c.l.b16 %v3571
      %v3590 = vunpack.c.h.b16 %v3571
      %v3591 = vunpack.c.l.b16 %v3572
      %v3592 = vunpack.c.h.b16 %v3572
      %v3593 = vunpack.c.l.b16 %v3573
      %v3594 = vunpack.c.h.b16 %v3573
      %v3595 = vunpack.c.l.b16 %v3574
      %v3596 = vunpack.c.h.b16 %v3574
      %v3597 = vunpack.c.l.b16 %v3575
      %v3598 = vunpack.c.h.b16 %v3575
      %v3599 = vunpack.c.l.b16 %v3576
      %v3600 = vunpack.c.h.b16 %v3576
      %v3601 = vpack.c.b16 %v3585, %v3585
      %v3602 = vpack.c.b16 %v3586, %v3586
      %v3603 = vpack.c.b16 %v3587, %v3587
      %v3604 = vpack.c.b16 %v3588, %v3588
      %v3605 = vpack.c.b16 %v3589, %v3589
      %v3606 = vpack.c.b16 %v3590, %v3590
      %v3607 = vpack.c.b16 %v3591, %v3591
      %v3608 = vpack.c.b16 %v3592, %v3592
      %v3609 = vpack.c.b16 %v3593, %v3593
      %v3610 = vpack.c.b16 %v3594, %v3594
      %v3611 = vpack.c.b16 %v3595, %v3595
      %v3612 = vpack.c.b16 %v3596, %v3596
      %v3613 = vpack.c.b16 %v3597, %v3597
      %v3614 = vpack.c.b16 %v3598, %v3598
      %v3615 = vpack.c.b16 %v3599, %v3599
      %v3616 = vpack.c.b16 %v3600, %v3600
      %vm3633 = vcmask 125952
      %3634 = vst.msk [vmem:[%s300] sm:$0xf] %vm3633, %v3601
      %3635 = vst.msk [vmem:[%s300 + $0x4] sm:$0xf] %vm3633, %v3602
      %3636 = vst.msk [vmem:[%s300 + $0x8] sm:$0xf] %vm3633, %v3603
      %3637 = vst.msk [vmem:[%s300 + $0xc] sm:$0xf] %vm3633, %v3604
      %3638 = vst.msk [vmem:[%s300 + $0x10] sm:$0xf] %vm3633, %v3605
      %3639 = vst.msk [vmem:[%s300 + $0x14] sm:$0xf] %vm3633, %v3606
      %3640 = vst.msk [vmem:[%s300 + $0x18] sm:$0xf] %vm3633, %v3607
      %3641 = vst.msk [vmem:[%s300 + $0x1c] sm:$0xf] %vm3633, %v3608
      %3642 = vst.msk [vmem:[%s300 + $0x20] sm:$0xf] %vm3633, %v3609
      %3643 = vst.msk [vmem:[%s300 + $0x24] sm:$0xf] %vm3633, %v3610
      %3644 = vst.msk [vmem:[%s300 + $0x28] sm:$0xf] %vm3633, %v3611
      %3645 = vst.msk [vmem:[%s300 + $0x2c] sm:$0xf] %vm3633, %v3612
      %3646 = vst.msk [vmem:[%s300 + $0x30] sm:$0xf] %vm3633, %v3613
      %3647 = vst.msk [vmem:[%s300 + $0x34] sm:$0xf] %vm3633, %v3614
      %3648 = vst.msk [vmem:[%s300 + $0x38] sm:$0xf] %vm3633, %v3615
      %3649 = vst.msk [vmem:[%s300 + $0x3c] sm:$0xf] %vm3633, %v3616
      %s3650 = smul.u32 16, %s23
      %p3651 = scmp.lt.s32.totalorder %s22, 1
      %s3652 = scalar_select %p3651, %s22, 1
      %p3653 = scmp.lt.s32.totalorder %s3650, 31
      %s3654 = scalar_select %p3653, %s3650, 31
      %s3655 = smul.addr %s3652, 32
      %s3656 = sadd.s32 %s3654, %s3655
      %s3657 = smul.addr %s3656, 4
      %s3658 = scalar_lea.vmem %s7, %s3657
      // Predicated region
      $region49: #{bottleneck_forward.1} parent=47 // pred_check
        %p3659 = pneg %p202
      $region50: #{bottleneck_forward.1} parent=47 // pred_check_branch
        %3661 = sbr.rel (%p3659) target = $region52
      $region51: #{bottleneck_forward.1} parent=47 // pred_region
        %s3662 = smul.u32 16, %s23
      $region52: #{bottleneck_forward.1} parent=47 // pred_fallthru
        _
    $region48: #{bottleneck_forward.1} parent=5 // pred_fallthru
      _
    %p3663 = scmp.le.s32.totalorder 2, %s13
    // Predicated region
    $region53: #{bottleneck_forward.1} parent=5 // pred_check
      %p3664 = pneg %p3663
    $region54: #{bottleneck_forward.1} parent=5 // pred_check_branch
      %3666 = sbr.rel (%p3664) target = $region56
    $region55: #{bottleneck_forward.1} parent=5 // pred_region
      %s3667 = ssub.s32 %s13, 2
      // Predicated region
      $region57: #{bottleneck_forward.1} parent=55 // pred_check
        %p3668 = pneg %p208
      $region58: #{bottleneck_forward.1} parent=55 // pred_check_branch
        %3670 = sbr.rel (%p3668) target = $region60
      $region59: #{bottleneck_forward.1} parent=55 // pred_region
        %s3671 = smul.u32 16, %s25
        %p3672 = scmp.lt.s32.totalorder %s24, 1
        %s3673 = scalar_select %p3672, %s24, 1
        %p3674 = scmp.lt.s32.totalorder %s3671, 31
        %s3675 = scalar_select %p3674, %s3671, 31
        %s3676 = smul.addr %s3673, 32
        %s3677 = sadd.s32 %s3675, %s3676
        %s3678 = smul.addr %s3677, 4
        %s3679 = scalar_lea.vmem %s7, %s3678
      $region60: #{bottleneck_forward.1} parent=55 // pred_fallthru
        _
    $region56: #{bottleneck_forward.1} parent=5 // pred_fallthru
      _
  $region6: #{bottleneck_forward.1} parent=0 // loop_footer
    %s17 = sadd.s32 1, %s13
  $region7: #{bottleneck_forward.1} parent=0 // loop_footer_branch
    %12 = sbr.rel target = $region3
  $region8: #{bottleneck_forward.1} parent=0 // loop_exit
    _

</llo_original>
